<compile_context>
chip_gen: v6e
topology: v6e:2x2x1
jax: 0.10.0
libtpu: 0.0.40
codegen_flags: <defaults>
</compile_context>

<pallas_src>
import functools

import jax
import jax.numpy as jnp
from jax.experimental import pallas as pl
from jax.experimental.pallas import tpu as pltpu


# --------------------------------------------------------------------------- #
# Tiling / padding selection
# --------------------------------------------------------------------------- #
def _choose_tiles(n, max_tile=512, min_row_tiles=2):
    """Pad the node dim to a multiple of 128 and pick (tm, tk) that divide it.

    tk (adj reduction tile, lane dim) is the largest multiple of 128 dividing
    n_pad, capped at max_tile. tm (row tile, sublane dim) is additionally capped
    so there are at least `min_row_tiles` row tiles, letting the "parallel" grid
    axis shard across both v7x TensorCores (no effect on single-TC v5e/v6e).
    """
    max_tile = max(128, (max_tile // 128) * 128)
    n_pad = ((n + 127) // 128) * 128

    tk = 128
    for cand in range(min(max_tile, n_pad), 127, -128):
        if n_pad % cand == 0:
            tk = cand
            break

    tm = tk
    if n_pad // tm < min_row_tiles:
        for cand in range(min(max_tile, n_pad // min_row_tiles), 7, -8):
            if n_pad % cand == 0:
                tm = cand
                break
    return n_pad, tm, tk


# Keep a resident support buffer (double-buffered by the pipeline) comfortably
# inside v5e's 16 MiB scoped-VMEM default alongside 512-wide adj tiles.
_RESIDENT_SUPPORT_BYTES = 2 << 20


def _support_spec(n_pad, tk, fout, resident):
    if resident:
        return pl.BlockSpec((n_pad, fout), lambda i, k: (0, 0))   # VMEM-resident
    return pl.BlockSpec((tk, fout), lambda i, k: (k, 0))          # streamed per k


# --------------------------------------------------------------------------- #
# GCN layer kernel:  out = [relu](adj @ support + b)
# grid = (row tiles i  [parallel], adj-column / reduction tiles k [arbitrary])
# --------------------------------------------------------------------------- #
def _gcn_layer_kernel(sup_ref, adj_ref, b_ref, out_ref, acc_ref, *,
                      apply_relu, tk, resident_support):
    k = pl.program_id(1)

    @pl.when(k == 0)
    def _():
        acc_ref[...] = jnp.zeros_like(acc_ref)

    if resident_support:
        off = pl.multiple_of(k * tk, 128)
        s = sup_ref[pl.ds(off, tk), :]
    else:
        s = sup_ref[...]
    acc_ref[...] += jnp.dot(adj_ref[...], s, preferred_element_type=jnp.float32)

    @pl.when(k == pl.num_programs(1) - 1)
    def _():
        h = acc_ref[...] + b_ref[...]          # single fused bias add on f32 acc
        if apply_relu:
            h = jnp.maximum(h, 0.0)
        out_ref[...] = h.astype(out_ref.dtype)


def _gcn_layer(support, adj, b2d, *, apply_relu, tm, tk):
    n_pad, fout = support.shape
    resident = support.size * support.dtype.itemsize <= _RESIDENT_SUPPORT_BYTES
    kernel = functools.partial(_gcn_layer_kernel, apply_relu=apply_relu, tk=tk,
                               resident_support=resident)
    return pl.pallas_call(
        kernel,
        out_shape=jax.ShapeDtypeStruct((n_pad, fout), jnp.bfloat16),
        grid_spec=pltpu.PrefetchScalarGridSpec(
            num_scalar_prefetch=0,
            grid=(n_pad // tm, n_pad // tk),
            in_specs=[
                _support_spec(n_pad, tk, fout, resident),       # support = x @ W
                pl.BlockSpec((tm, tk), lambda i, k: (i, k)),    # adj (dominant stream)
                pl.BlockSpec((1, fout), lambda i, k: (0, 0)),   # bias (resident)
            ],
            out_specs=pl.BlockSpec((tm, fout), lambda i, k: (i, 0)),
            scratch_shapes=[pltpu.VMEM((tm, fout), jnp.float32)],
        ),
        compiler_params=pltpu.CompilerParams(
            dimension_semantics=("parallel", "arbitrary")
        ),
    )(support, adj, b2d)


# --------------------------------------------------------------------------- #
# Layer 3 with the head fused into its finalize:
#   x3 = adj @ support3 + b3                                   (no relu)
#   out = log_softmax(x1 @ wl1 + x2 @ wl2 + x3 @ wl3 + bl)     (padded classes
#   carry bias -1e9 so they vanish from the max / sum-exp; output stays f32)
# --------------------------------------------------------------------------- #
def _gcn_layer3_head_kernel(sup_ref, adj_ref, x1_ref, x2_ref, b3_ref,
                            wl1_ref, wl2_ref, wl3_ref, bl_ref,
                            out_ref, acc_ref, *, tk, resident_support):
    k = pl.program_id(1)

    @pl.when(k == 0)
    def _():
        acc_ref[...] = jnp.zeros_like(acc_ref)

    if resident_support:
        off = pl.multiple_of(k * tk, 128)
        s = sup_ref[pl.ds(off, tk), :]
    else:
        s = sup_ref[...]
    acc_ref[...] += jnp.dot(adj_ref[...], s, preferred_element_type=jnp.float32)

    @pl.when(k == pl.num_programs(1) - 1)
    def _():
        x3 = acc_ref[...] + b3_ref[...]   # (tm, nout) f32, never written to HBM
        logits = (
            jnp.dot(x1_ref[...], wl1_ref[...], preferred_element_type=jnp.float32)
            + jnp.dot(x2_ref[...], wl2_ref[...], preferred_element_type=jnp.float32)
            + jnp.dot(x3.astype(wl3_ref.dtype), wl3_ref[...],
                      preferred_element_type=jnp.float32)
            + bl_ref[...]
        )
        m = jnp.max(logits, axis=1, keepdims=True)
        lse = m + jnp.log(jnp.sum(jnp.exp(logits - m), axis=1, keepdims=True))
        out_ref[...] = logits - lse


def _gcn_layer3_head(support, adj, x1, x2, b3_2d, wl1, wl2, wl3, bl_pad, *, tm, tk):
    n_pad, nout = support.shape
    nhid = x1.shape[1]
    c_pad = wl1.shape[1]
    resident = support.size * support.dtype.itemsize <= _RESIDENT_SUPPORT_BYTES
    kernel = functools.partial(_gcn_layer3_head_kernel, tk=tk,
                               resident_support=resident)
    return pl.pallas_call(
        kernel,
        out_shape=jax.ShapeDtypeStruct((n_pad, c_pad), jnp.float32),
        grid_spec=pltpu.PrefetchScalarGridSpec(
            num_scalar_prefetch=0,
            grid=(n_pad // tm, n_pad // tk),
            in_specs=[
                _support_spec(n_pad, tk, nout, resident),          # support3
                pl.BlockSpec((tm, tk), lambda i, k: (i, k)),        # adj tile
                pl.BlockSpec((tm, nhid), lambda i, k: (i, 0)),      # x1 row tile
                pl.BlockSpec((tm, nhid), lambda i, k: (i, 0)),      # x2 row tile
                pl.BlockSpec((1, nout), lambda i, k: (0, 0)),       # b3 (resident)
                pl.BlockSpec((nhid, c_pad), lambda i, k: (0, 0)),   # wl block for x1
                pl.BlockSpec((nhid, c_pad), lambda i, k: (0, 0)),   # wl block for x2
                pl.BlockSpec((nout, c_pad), lambda i, k: (0, 0)),   # wl block for x3
                pl.BlockSpec((1, c_pad), lambda i, k: (0, 0)),      # bl (-1e9 pad)
            ],
            out_specs=pl.BlockSpec((tm, c_pad), lambda i, k: (i, 0)),
            scratch_shapes=[pltpu.VMEM((tm, nout), jnp.float32)],
        ),
        compiler_params=pltpu.CompilerParams(
            dimension_semantics=("parallel", "arbitrary")
        ),
    )(support, adj, x1, x2, b3_2d, wl1, wl2, wl3, bl_pad)


# --------------------------------------------------------------------------- #
# Full forward pass
# --------------------------------------------------------------------------- #
def gcn_synthetic_forward(x, adj, params, *, max_tile=512):
    """Inference forward. Pads the node dim to a multiple of 128 and the class dim
    to a lane-dense 128; slices both back at the end."""
    (w1, b1, w2, b2, w3, b3, wl, bl) = params
    n = x.shape[0]
    nhid = w1.shape[1]
    nclass = wl.shape[1]
    bf = jnp.bfloat16

    n_pad, tm, tk = _choose_tiles(n, max_tile=max_tile)

    # Cast first, pad second (pads the half-width bf16 arrays). Zero rows/cols are
    # inert: padded adj *columns* are exactly 0, so padded rows never leak into
    # real rows; padded output rows are sliced off below.
    # TODO(synk): on v7x, adj could additionally be cast to float8_e4m3 (MXU-native
    # there) to halve the dominant HBM stream; needs accuracy validation first.
    adj_b = adj.astype(bf)
    x_b = x.astype(bf)
    if n_pad != n:
        pad = n_pad - n
        adj_b = jnp.pad(adj_b, ((0, pad), (0, pad)))
        x_b = jnp.pad(x_b, ((0, pad), (0, 0)))

    w1_b, w2_b, w3_b = w1.astype(bf), w2.astype(bf), w3.astype(bf)
    b1_2d = b1.reshape(1, -1).astype(jnp.float32)
    b2_2d = b2.reshape(1, -1).astype(jnp.float32)
    b3_2d = b3.reshape(1, -1).astype(jnp.float32)

    # Hoisted support matmuls: tiny (n, fin) @ (fin, fout) done once in plain XLA
    # (instead of redundantly per row tile inside the adj kernels).
    # Dropout between layers is identity in eval mode.
    sup1 = jnp.dot(x_b, w1_b, preferred_element_type=jnp.float32).astype(bf)
    x1 = _gcn_layer(sup1, adj_b, b1_2d, apply_relu=True, tm=tm, tk=tk)

    sup2 = jnp.dot(x1, w2_b, preferred_element_type=jnp.float32).astype(bf)
    x2 = _gcn_layer(sup2, adj_b, b2_2d, apply_relu=True, tm=tm, tk=tk)

    sup3 = jnp.dot(x2, w3_b, preferred_element_type=jnp.float32).astype(bf)

    # Head weights: split wl to match cat([x1, x2, x3]) ordering (no in-kernel
    # concat); zero-pad the class dim to a lane-dense 128, mask padded classes via
    # a -1e9 bias (safe because logits / output stay f32).
    c_pad = ((nclass + 127) // 128) * 128

    def pad_cols(m):
        return jnp.pad(m, ((0, 0), (0, c_pad - nclass))).astype(bf)

    wl1_b = pad_cols(wl[:nhid, :])
    wl2_b = pad_cols(wl[nhid:2 * nhid, :])
    wl3_b = pad_cols(wl[2 * nhid:, :])
    bl_pad = jnp.concatenate(
        [bl.astype(jnp.float32), jnp.full((c_pad - nclass,), -1e9, jnp.float32)]
    ).reshape(1, -1)

    # Layer 3 with the linear head + log_softmax fused into its finalize step.
    out_pad = _gcn_layer3_head(sup3, adj_b, x1, x2, b3_2d, wl1_b, wl2_b, wl3_b,
                               bl_pad, tm=tm, tk=tk)
    return out_pad[:n, :nclass]


# --------------------------------------------------------------------------- #
# Parameter init + pure-JAX reference
# --------------------------------------------------------------------------- #
def init_params(key, nfeat, nhid, nout, nclass):
    """Deterministic init mirroring the PyTorch module's parameter shapes."""
    ks = jax.random.split(key, 8)

    def gcn_init(kw, kb, fan_in, fan_out):
        stdv = 1.0 / jnp.sqrt(jnp.float32(fan_out))
        w = jax.random.uniform(kw, (fan_in, fan_out), jnp.float32, -stdv, stdv)
        b = jax.random.uniform(kb, (fan_out,), jnp.float32, -stdv, stdv)
        return w, b

    w1, b1 = gcn_init(ks[0], ks[1], nfeat, nhid)
    w2, b2 = gcn_init(ks[2], ks[3], nhid, nhid)
    w3, b3 = gcn_init(ks[4], ks[5], nhid, nout)

    lin_in = nhid + nhid + nout
    bound = 1.0 / jnp.sqrt(jnp.float32(lin_in))
    # Stored as [in, out] (torch weight transposed) so the kernel does x @ W.
    wl = jax.random.uniform(ks[6], (lin_in, nclass), jnp.float32, -bound, bound)
    bl = jax.random.uniform(ks[7], (nclass,), jnp.float32, -bound, bound)

    return (w1, b1, w2, b2, w3, b3, wl, bl)


def reference_forward_bf16(x, adj, params):
    """Pure-JAX reference mirroring the kernel's bf16-input / f32-accumulate math."""
    (w1, b1, w2, b2, w3, b3, wl, bl) = params
    bf = jnp.bfloat16
    adj_b = adj.astype(bf)

    def layer(xp, w, b, relu):
        s = jnp.dot(xp.astype(bf), w.astype(bf), preferred_element_type=jnp.float32)
        h = jnp.dot(adj_b, s.astype(bf), preferred_element_type=jnp.float32) + b
        return jnp.maximum(h, 0.0) if relu else h

    x1 = layer(x, w1, b1, True)
    x2 = layer(x1, w2, b2, True)
    x3 = layer(x2, w3, b3, False)
    nhid = w1.shape[1]
    logits = (
        jnp.dot(x1.astype(bf), wl[:nhid].astype(bf), preferred_element_type=jnp.float32)
        + jnp.dot(x2.astype(bf), wl[nhid:2 * nhid].astype(bf),
                  preferred_element_type=jnp.float32)
        + jnp.dot(x3.astype(bf), wl[2 * nhid:].astype(bf),
                  preferred_element_type=jnp.float32)
        + bl
    )
    return jax.nn.log_softmax(logits, axis=1)


if __name__ == "__main__":
    # N=300 pads to 384 (not 512): tm=192, tk=384 -> 2 row tiles x 1 reduction tile
    # per GCN layer (exercises the parallel row axis and the accumulator finalize).
    N_NODES, NFEAT, NHID, NOUT, NCLASS = 300, 8, 32, 16, 4

    key = jax.random.PRNGKey(0)
    k_x, k_adj, k_p = jax.random.split(key, 3)

    x = jax.random.normal(k_x, (N_NODES, NFEAT), dtype=jnp.float32)

    # Symmetric, row-normalized dense adjacency with self loops.
    a = (jax.random.uniform(k_adj, (N_NODES, N_NODES)) > 0.9).astype(jnp.float32)
    a = jnp.maximum(a, a.T) + jnp.eye(N_NODES, dtype=jnp.float32)
    adj = a / jnp.sum(a, axis=1, keepdims=True)

    params = init_params(k_p, NFEAT, NHID, NOUT, NCLASS)

    out = jax.jit(gcn_synthetic_forward)(x, adj, params)
    out = jax.block_until_ready(out)

    ref = reference_forward_bf16(x, adj, params)
    assert out.shape == (N_NODES, NCLASS)
    assert jnp.allclose(out, ref, atol=1e-2, rtol=1e-2), "mismatch vs reference"

    print("KERNEL_OK")
</pallas_src>

<mosaic_0001>
module attributes {stable_mosaic.version = 11 : i64} {
  func.func @_gcn_layer_kernel(%arg0: i32, %arg1: i32, %arg2: memref<384x32xbf16, #tpu.memory_space<vmem>>, %arg3: memref<192x384xbf16, #tpu.memory_space<vmem>>, %arg4: memref<1x32xf32, #tpu.memory_space<vmem>>, %arg5: memref<192x32xbf16, #tpu.memory_space<vmem>>, %arg6: memref<192x32xf32, #tpu.memory_space<vmem>>) attributes {dimension_semantics = [#tpu.dimension_semantics<parallel>, #tpu.dimension_semantics<arbitrary>], iteration_bounds = array<i64: 2, 1>, scalar_prefetch = 0 : i64, scratch_operands = 1 : i64, tpu.core_type = #tpu.core_type<tc>, window_params = [{pipeline_mode = #tpu.pipeline_mode<synchronous>, transform_indices = @transform_0, window_bounds = array<i64: 384, 32>}, {transform_indices = @transform_1, window_bounds = array<i64: 192, 384>}, {pipeline_mode = #tpu.pipeline_mode<synchronous>, transform_indices = @transform_2, window_bounds = array<i64: 1, 32>}, {transform_indices = @transform_3, window_bounds = array<i64: 192, 32>}]} {
    %c0_i32 = arith.constant 0 : i32
    %0 = arith.cmpi eq, %arg1, %c0_i32 : i32
    %1 = arith.extui %0 : i1 to i32
    %c0_i32_0 = arith.constant 0 : i32
    %2 = arith.cmpi ne, %1, %c0_i32_0 : i32
    scf.if %2 {
      %cst_9 = arith.constant 0.000000e+00 : f32
      %15 = vector.broadcast %cst_9 : f32 to vector<192x32xf32>
      %c0_10 = arith.constant 0 : index
      %c0_11 = arith.constant 0 : index
      %16 = vector.load %arg6[%c0_10, %c0_11] : memref<192x32xf32, #tpu.memory_space<vmem>>, vector<192x32xf32>
      tpu.vector_store %arg6[%c0_10, %c0_11], %15 {strides = array<i32>} : memref<192x32xf32, #tpu.memory_space<vmem>>, vector<192x32xf32>,
    } else {
    }
    %c384_i32 = arith.constant 384 : i32
    %3 = arith.muli %arg1, %c384_i32 : i32
    %4 = tpu.assume_multiple %3, 128 : i32
    %5 = arith.index_cast %4 : i32 to index
    %c0 = arith.constant 0 : index
    %6 = vector.load %arg2[%5, %c0] : memref<384x32xbf16, #tpu.memory_space<vmem>>, vector<384x32xbf16>
    %c0_1 = arith.constant 0 : index
    %c0_2 = arith.constant 0 : index
    %7 = vector.load %arg6[%c0_1, %c0_2] : memref<192x32xf32, #tpu.memory_space<vmem>>, vector<192x32xf32>
    %c0_3 = arith.constant 0 : index
    %c0_4 = arith.constant 0 : index
    %8 = vector.load %arg3[%c0_3, %c0_4] : memref<192x384xbf16, #tpu.memory_space<vmem>>, vector<192x384xbf16>
    %cst = arith.constant dense<0.000000e+00> : vector<192x32xf32>
    %9 = tpu.matmul %8, %6, %cst {dimension_numbers = #tpu.dot_dimension_numbers<[1], [0], [0], [1], [0, 0, 1, 1], [], []>} : vector<192x384xbf16>, vector<384x32xbf16>, vector<192x32xf32> -> vector<192x32xf32>
    %10 = arith.addf %7, %9 : vector<192x32xf32>
    %c0_5 = arith.constant 0 : index
    %c0_6 = arith.constant 0 : index
    %11 = vector.load %arg6[%c0_5, %c0_6] : memref<192x32xf32, #tpu.memory_space<vmem>>, vector<192x32xf32>
    tpu.vector_store %arg6[%c0_5, %c0_6], %10 {strides = array<i32>} : memref<192x32xf32, #tpu.memory_space<vmem>>, vector<192x32xf32>,
    %c0_i32_7 = arith.constant 0 : i32
    %12 = arith.cmpi eq, %arg1, %c0_i32_7 : i32
    %13 = arith.extui %12 : i1 to i32
    %c0_i32_8 = arith.constant 0 : i32
    %14 = arith.cmpi ne, %13, %c0_i32_8 : i32
    scf.if %14 {
      %c0_9 = arith.constant 0 : index
      %c0_10 = arith.constant 0 : index
      %15 = vector.load %arg6[%c0_9, %c0_10] : memref<192x32xf32, #tpu.memory_space<vmem>>, vector<192x32xf32>
      %c0_11 = arith.constant 0 : index
      %c0_12 = arith.constant 0 : index
      %16 = vector.load %arg4[%c0_11, %c0_12] : memref<1x32xf32, #tpu.memory_space<vmem>>, vector<1x32xf32>
      %17 = vector.broadcast %16 : vector<1x32xf32> to vector<192x32xf32>
      %18 = arith.addf %15, %17 : vector<192x32xf32>
      %cst_13 = arith.constant 0.000000e+00 : f32
      %19 = vector.broadcast %cst_13 : f32 to vector<192x32xf32>
      %20 = arith.maximumf %18, %19 : vector<192x32xf32>
      %21 = arith.truncf %20 : vector<192x32xf32> to vector<192x32xbf16>
      %c0_14 = arith.constant 0 : index
      %c0_15 = arith.constant 0 : index
      %22 = vector.load %arg5[%c0_14, %c0_15] : memref<192x32xbf16, #tpu.memory_space<vmem>>, vector<192x32xbf16>
      tpu.vector_store %arg5[%c0_14, %c0_15], %21 {strides = array<i32>} : memref<192x32xbf16, #tpu.memory_space<vmem>>, vector<192x32xbf16>,
    } else {
    }
    return
  }
  func.func @transform_0(%arg0: i32, %arg1: i32) -> (i32, i32) {
    %c0_i32 = arith.constant 0 : i32
    %c0_i32_0 = arith.constant 0 : i32
    %c0_i32_1 = arith.constant 0 : i32
    return %c0_i32, %c0_i32_0 : i32, i32
  }
  func.func @transform_1(%arg0: i32, %arg1: i32) -> (i32, i32) {
    %c0_i32 = arith.constant 0 : i32
    return %arg0, %arg1 : i32, i32
  }
  func.func @transform_2(%arg0: i32, %arg1: i32) -> (i32, i32) {
    %c0_i32 = arith.constant 0 : i32
    %c0_i32_0 = arith.constant 0 : i32
    %c0_i32_1 = arith.constant 0 : i32
    return %c0_i32, %c0_i32_0 : i32, i32
  }
  func.func @transform_3(%arg0: i32, %arg1: i32) -> (i32, i32) {
    %c0_i32 = arith.constant 0 : i32
    %c0_i32_0 = arith.constant 0 : i32
    return %arg0, %c0_i32 : i32, i32
  }
}

module attributes {stable_mosaic.version = 11 : i64} {
  func.func @_gcn_layer3_head_kernel(%arg0: i32, %arg1: i32, %arg2: memref<384x16xbf16, #tpu.memory_space<vmem>>, %arg3: memref<192x384xbf16, #tpu.memory_space<vmem>>, %arg4: memref<192x32xbf16, #tpu.memory_space<vmem>>, %arg5: memref<192x32xbf16, #tpu.memory_space<vmem>>, %arg6: memref<1x16xf32, #tpu.memory_space<vmem>>, %arg7: memref<32x128xbf16, #tpu.memory_space<vmem>>, %arg8: memref<32x128xbf16, #tpu.memory_space<vmem>>, %arg9: memref<16x128xbf16, #tpu.memory_space<vmem>>, %arg10: memref<1x128xf32, #tpu.memory_space<vmem>>, %arg11: memref<192x128xf32, #tpu.memory_space<vmem>>, %arg12: memref<192x16xf32, #tpu.memory_space<vmem>>) attributes {dimension_semantics = [#tpu.dimension_semantics<parallel>, #tpu.dimension_semantics<arbitrary>], iteration_bounds = array<i64: 2, 1>, scalar_prefetch = 0 : i64, scratch_operands = 1 : i64, tpu.core_type = #tpu.core_type<tc>, window_params = [{pipeline_mode = #tpu.pipeline_mode<synchronous>, transform_indices = @transform_0, window_bounds = array<i64: 384, 16>}, {transform_indices = @transform_1, window_bounds = array<i64: 192, 384>}, {transform_indices = @transform_2, window_bounds = array<i64: 192, 32>}, {transform_indices = @transform_3, window_bounds = array<i64: 192, 32>}, {pipeline_mode = #tpu.pipeline_mode<synchronous>, transform_indices = @transform_4, window_bounds = array<i64: 1, 16>}, {pipeline_mode = #tpu.pipeline_mode<synchronous>, transform_indices = @transform_5, window_bounds = array<i64: 32, 128>}, {pipeline_mode = #tpu.pipeline_mode<synchronous>, transform_indices = @transform_6, window_bounds = array<i64: 32, 128>}, {pipeline_mode = #tpu.pipeline_mode<synchronous>, transform_indices = @transform_7, window_bounds = array<i64: 16, 128>}, {pipeline_mode = #tpu.pipeline_mode<synchronous>, transform_indices = @transform_8, window_bounds = array<i64: 1, 128>}, {transform_indices = @transform_9, window_bounds = array<i64: 192, 128>}]} {
    %c0_i32 = arith.constant 0 : i32
    %0 = arith.cmpi eq, %arg1, %c0_i32 : i32
    %1 = arith.extui %0 : i1 to i32
    %c0_i32_0 = arith.constant 0 : i32
    %2 = arith.cmpi ne, %1, %c0_i32_0 : i32
    scf.if %2 {
      %cst_9 = arith.constant 0.000000e+00 : f32
      %15 = vector.broadcast %cst_9 : f32 to vector<192x16xf32>
      %c0_10 = arith.constant 0 : index
      %c0_11 = arith.constant 0 : index
      %16 = vector.load %arg12[%c0_10, %c0_11] : memref<192x16xf32, #tpu.memory_space<vmem>>, vector<192x16xf32>
      tpu.vector_store %arg12[%c0_10, %c0_11], %15 {strides = array<i32>} : memref<192x16xf32, #tpu.memory_space<vmem>>, vector<192x16xf32>,
    } else {
    }
    %c384_i32 = arith.constant 384 : i32
    %3 = arith.muli %arg1, %c384_i32 : i32
    %4 = tpu.assume_multiple %3, 128 : i32
    %5 = arith.index_cast %4 : i32 to index
    %c0 = arith.constant 0 : index
    %6 = vector.load %arg2[%5, %c0] : memref<384x16xbf16, #tpu.memory_space<vmem>>, vector<384x16xbf16>
    %c0_1 = arith.constant 0 : index
    %c0_2 = arith.constant 0 : index
    %7 = vector.load %arg12[%c0_1, %c0_2] : memref<192x16xf32, #tpu.memory_space<vmem>>, vector<192x16xf32>
    %c0_3 = arith.constant 0 : index
    %c0_4 = arith.constant 0 : index
    %8 = vector.load %arg3[%c0_3, %c0_4] : memref<192x384xbf16, #tpu.memory_space<vmem>>, vector<192x384xbf16>
    %cst = arith.constant dense<0.000000e+00> : vector<192x16xf32>
    %9 = tpu.matmul %8, %6, %cst {dimension_numbers = #tpu.dot_dimension_numbers<[1], [0], [0], [1], [0, 0, 1, 1], [], []>} : vector<192x384xbf16>, vector<384x16xbf16>, vector<192x16xf32> -> vector<192x16xf32>
    %10 = arith.addf %7, %9 : vector<192x16xf32>
    %c0_5 = arith.constant 0 : index
    %c0_6 = arith.constant 0 : index
    %11 = vector.load %arg12[%c0_5, %c0_6] : memref<192x16xf32, #tpu.memory_space<vmem>>, vector<192x16xf32>
    tpu.vector_store %arg12[%c0_5, %c0_6], %10 {strides = array<i32>} : memref<192x16xf32, #tpu.memory_space<vmem>>, vector<192x16xf32>,
    %c0_i32_7 = arith.constant 0 : i32
    %12 = arith.cmpi eq, %arg1, %c0_i32_7 : i32
    %13 = arith.extui %12 : i1 to i32
    %c0_i32_8 = arith.constant 0 : i32
    %14 = arith.cmpi ne, %13, %c0_i32_8 : i32
    scf.if %14 {
      %c0_9 = arith.constant 0 : index
      %c0_10 = arith.constant 0 : index
      %15 = vector.load %arg12[%c0_9, %c0_10] : memref<192x16xf32, #tpu.memory_space<vmem>>, vector<192x16xf32>
      %c0_11 = arith.constant 0 : index
      %c0_12 = arith.constant 0 : index
      %16 = vector.load %arg6[%c0_11, %c0_12] : memref<1x16xf32, #tpu.memory_space<vmem>>, vector<1x16xf32>
      %17 = vector.broadcast %16 : vector<1x16xf32> to vector<192x16xf32>
      %18 = arith.addf %15, %17 : vector<192x16xf32>
      %c0_13 = arith.constant 0 : index
      %c0_14 = arith.constant 0 : index
      %19 = vector.load %arg4[%c0_13, %c0_14] : memref<192x32xbf16, #tpu.memory_space<vmem>>, vector<192x32xbf16>
      %c0_15 = arith.constant 0 : index
      %c0_16 = arith.constant 0 : index
      %20 = vector.load %arg7[%c0_15, %c0_16] : memref<32x128xbf16, #tpu.memory_space<vmem>>, vector<32x128xbf16>
      %cst_17 = arith.constant dense<0.000000e+00> : vector<192x128xf32>
      %21 = tpu.matmul %19, %20, %cst_17 {dimension_numbers = #tpu.dot_dimension_numbers<[1], [0], [0], [1], [0, 0, 1, 1], [], []>} : vector<192x32xbf16>, vector<32x128xbf16>, vector<192x128xf32> -> vector<192x128xf32>
      %c0_18 = arith.constant 0 : index
      %c0_19 = arith.constant 0 : index
      %22 = vector.load %arg5[%c0_18, %c0_19] : memref<192x32xbf16, #tpu.memory_space<vmem>>, vector<192x32xbf16>
      %c0_20 = arith.constant 0 : index
      %c0_21 = arith.constant 0 : index
      %23 = vector.load %arg8[%c0_20, %c0_21] : memref<32x128xbf16, #tpu.memory_space<vmem>>, vector<32x128xbf16>
      %cst_22 = arith.constant dense<0.000000e+00> : vector<192x128xf32>
      %24 = tpu.matmul %22, %23, %cst_22 {dimension_numbers = #tpu.dot_dimension_numbers<[1], [0], [0], [1], [0, 0, 1, 1], [], []>} : vector<192x32xbf16>, vector<32x128xbf16>, vector<192x128xf32> -> vector<192x128xf32>
      %25 = arith.addf %21, %24 : vector<192x128xf32>
      %26 = arith.truncf %18 : vector<192x16xf32> to vector<192x16xbf16>
      %c0_23 = arith.constant 0 : index
      %c0_24 = arith.constant 0 : index
      %27 = vector.load %arg9[%c0_23, %c0_24] : memref<16x128xbf16, #tpu.memory_space<vmem>>, vector<16x128xbf16>
      %cst_25 = arith.constant dense<0.000000e+00> : vector<192x128xf32>
      %28 = tpu.matmul %26, %27, %cst_25 {dimension_numbers = #tpu.dot_dimension_numbers<[1], [0], [0], [1], [0, 0, 1, 1], [], []>} : vector<192x16xbf16>, vector<16x128xbf16>, vector<192x128xf32> -> vector<192x128xf32>
      %29 = arith.addf %25, %28 : vector<192x128xf32>
      %c0_26 = arith.constant 0 : index
      %c0_27 = arith.constant 0 : index
      %30 = vector.load %arg10[%c0_26, %c0_27] : memref<1x128xf32, #tpu.memory_space<vmem>>, vector<1x128xf32>
      %31 = vector.broadcast %30 : vector<1x128xf32> to vector<192x128xf32>
      %32 = arith.addf %29, %31 : vector<192x128xf32>
      %cst_28 = arith.constant dense<0xFF800000> : vector<192xf32>
      %33 = vector.multi_reduction <maximumf>, %32, %cst_28 [1] : vector<192x128xf32> to vector<192xf32>
      %34 = vector.shape_cast %33 : vector<192xf32> to vector<192x1xf32>
      %35 = vector.broadcast %34 : vector<192x1xf32> to vector<192x128xf32>
      %36 = arith.subf %32, %35 : vector<192x128xf32>
      %37 = math.exp %36 : vector<192x128xf32>
      %cst_29 = arith.constant dense<0.000000e+00> : vector<192xf32>
      %38 = vector.multi_reduction <add>, %37, %cst_29 [1] : vector<192x128xf32> to vector<192xf32>
      %39 = vector.shape_cast %38 : vector<192xf32> to vector<192x1xf32>
      %40 = math.log %39 : vector<192x1xf32>
      %41 = arith.addf %34, %40 : vector<192x1xf32>
      %42 = vector.broadcast %41 : vector<192x1xf32> to vector<192x128xf32>
      %43 = arith.subf %32, %42 : vector<192x128xf32>
      %c0_30 = arith.constant 0 : index
      %c0_31 = arith.constant 0 : index
      %44 = vector.load %arg11[%c0_30, %c0_31] : memref<192x128xf32, #tpu.memory_space<vmem>>, vector<192x128xf32>
      tpu.vector_store %arg11[%c0_30, %c0_31], %43 {strides = array<i32>} : memref<192x128xf32, #tpu.memory_space<vmem>>, vector<192x128xf32>,
    } else {
    }
    return
  }
  func.func @transform_0(%arg0: i32, %arg1: i32) -> (i32, i32) {
    %c0_i32 = arith.constant 0 : i32
    %c0_i32_0 = arith.constant 0 : i32
    %c0_i32_1 = arith.constant 0 : i32
    return %c0_i32, %c0_i32_0 : i32, i32
  }
  func.func @transform_1(%arg0: i32, %arg1: i32) -> (i32, i32) {
    %c0_i32 = arith.constant 0 : i32
    return %arg0, %arg1 : i32, i32
  }
  func.func @transform_2(%arg0: i32, %arg1: i32) -> (i32, i32) {
    %c0_i32 = arith.constant 0 : i32
    %c0_i32_0 = arith.constant 0 : i32
    return %arg0, %c0_i32 : i32, i32
  }
  func.func @transform_3(%arg0: i32, %arg1: i32) -> (i32, i32) {
    %c0_i32 = arith.constant 0 : i32
    %c0_i32_0 = arith.constant 0 : i32
    return %arg0, %c0_i32 : i32, i32
  }
  func.func @transform_4(%arg0: i32, %arg1: i32) -> (i32, i32) {
    %c0_i32 = arith.constant 0 : i32
    %c0_i32_0 = arith.constant 0 : i32
    %c0_i32_1 = arith.constant 0 : i32
    return %c0_i32, %c0_i32_0 : i32, i32
  }
  func.func @transform_5(%arg0: i32, %arg1: i32) -> (i32, i32) {
    %c0_i32 = arith.constant 0 : i32
    %c0_i32_0 = arith.constant 0 : i32
    %c0_i32_1 = arith.constant 0 : i32
    return %c0_i32, %c0_i32_0 : i32, i32
  }
  func.func @transform_6(%arg0: i32, %arg1: i32) -> (i32, i32) {
    %c0_i32 = arith.constant 0 : i32
    %c0_i32_0 = arith.constant 0 : i32
    %c0_i32_1 = arith.constant 0 : i32
    return %c0_i32, %c0_i32_0 : i32, i32
  }
  func.func @transform_7(%arg0: i32, %arg1: i32) -> (i32, i32) {
    %c0_i32 = arith.constant 0 : i32
    %c0_i32_0 = arith.constant 0 : i32
    %c0_i32_1 = arith.constant 0 : i32
    return %c0_i32, %c0_i32_0 : i32, i32
  }
  func.func @transform_8(%arg0: i32, %arg1: i32) -> (i32, i32) {
    %c0_i32 = arith.constant 0 : i32
    %c0_i32_0 = arith.constant 0 : i32
    %c0_i32_1 = arith.constant 0 : i32
    return %c0_i32, %c0_i32_0 : i32, i32
  }
  func.func @transform_9(%arg0: i32, %arg1: i32) -> (i32, i32) {
    %c0_i32 = arith.constant 0 : i32
    %c0_i32_0 = arith.constant 0 : i32
    return %arg0, %c0_i32 : i32, i32
  }
}

</mosaic_0001>

<llo_original>
// kernel: gcn_synthetic_forward.3
$region0: #{gcn_synthetic_forward.3}
  #allocation0 [shape = 'u32[]', space=smem, size = 0x4, offset = 0x4, fixed_abs, tag = 'smem constant byte address 0x4 - core index']
  #allocation1 [shape = 'u32[144,128]{1,0:T(1,128)}', space=vmem, size = 0x12000, scoped, tag = 'internal scratch']
  #allocation2 [shape = 'f32[192,32]{1,0:T(8,128)}', space=vmem, size = 0x18000, scoped, tag = 'scratch operand']
  %s0 = inlined_call_operand.vmem [shape: bf16[384,32], index: 0, kind: input, shape index: {}]
  %s1 = inlined_call_operand.vmem [shape: bf16[384,384], index: 1, kind: input, shape index: {}]
  %s2 = inlined_call_operand.vmem [shape: f32[1,32], index: 2, kind: input, shape index: {}]
  %s3 = inlined_call_operand.vmem [shape: bf16[384,32], index: 3, kind: output, shape index: {}]
  %s4 = sld [smem:[#allocation0]]
  $region53: #{gcn_synthetic_forward.3} parent=0
    _
  %s6 = ssub.s32 1, %s4
  %s7 = scalar_select 0, %s6, %s4
  loop: start=0, step=1, limit=4
  $region2: #{gcn_synthetic_forward.3} parent=0 // loop_pre_header
    _
  $region3: #{gcn_synthetic_forward.3} parent=0 // loop_header
    %s9 = sphi 0, %s13
    %p10 = scmp.ge.s32.totalorder %s9, 4
    %s16 = sphi 0, %s28
    %s17 = sphi 0, %s24
    %s18 = sphi 0, %s16
    %s19 = sphi 0, %s17
    %s20 = sphi 0, %s18
    %s21 = sphi 0, %s19
    %s29 = sphi 0, %s29
    %s31 = sphi 0, %s29
    %s32 = sphi 0, %s31
    %s46 = sphi 0, %s32
    %s54 = sphi 0, %s56
    %s57 = sphi 0, %s54
    %s58 = sphi 0, %s57
    %s74 = sphi 0, %s58
    %s78 = sphi 0, %s78
    %s80 = sphi 0, %s78
    %s81 = sphi 0, %s80
    %s95 = sphi 0, %s81
    %s101 = sphi 0, %s103
    %s104 = sphi 0, %s101
    %s105 = sphi 0, %s104
    %s121 = sphi 0, %s105
  $region4: #{gcn_synthetic_forward.3} parent=0 // loop_header_branch
    %12 = sbr.rel (%p10) target = $region8
  $region5: #{gcn_synthetic_forward.3} parent=0 // loop_body
    %s14 = ssub.s32 %s9, 1
    %s15 = ssub.s32 %s9, 2
    %s22 = sadd.s32 1, %s17
    %p23 = scmp.ge.s32.totalorder %s22, 1
    %s24 = scalar_select %p23, 0, %s22
    %s25 = sadd.s32 1, %s16
    %s26 = scalar_select %p23, %s25, %s16
    %p27 = scmp.ge.s32.totalorder %s26, 2
    %s28 = scalar_select %p27, 0, %s26
    %s30 = sadd.s32 %s29, 1
    %p33 = scmp.eq.s32.totalorder %s9, 1
    %p34 = scmp.ne.s32.totalorder %s29, %s31
    %p35 = scmp.eq.s32.totalorder %s9, 0
    %p36 = por %p34, %p35
    %p37 = scmp.ne.s32.totalorder %s29, %s31
    %p38 = scmp.eq.s32.totalorder %s14, 1
    %p39 = por %p37, %p38
    %p40 = scmp.ne.s32.totalorder %s31, %s32
    %p41 = scmp.eq.s32.totalorder %s14, 0
    %p42 = por %p40, %p41
    %p43 = scmp.ne.s32.totalorder %s31, %s32
    %p44 = scmp.eq.s32.totalorder %s15, 1
    %p45 = por %p43, %p44
    %p47 = scmp.ne.s32.totalorder %s32, %s46
    %p48 = scmp.eq.s32.totalorder %s15, 0
    %p49 = por %p47, %p48
    %s50 = ssub.s32 %s16, %s28
    %s51 = ssub.s32 %s17, %s24
    %s52 = sor.u32 %s50, %s51
    %p53 = scmp.eq.s32.totalorder %s52, 0
    %s55 = sadd.s32 %s54, 1
    %s56 = scalar_select %p53, %s54, %s55
    %p59 = pneg %p53
    %p60 = scmp.eq.s32.totalorder %s9, 1
    %p61 = por %p59, %p60
    %p62 = scmp.ne.s32.totalorder %s54, %s57
    %p63 = scmp.eq.s32.totalorder %s9, 0
    %p64 = por %p62, %p63
    %p65 = scmp.ne.s32.totalorder %s54, %s57
    %p66 = scmp.eq.s32.totalorder %s14, 1
    %p67 = por %p65, %p66
    %p68 = scmp.ne.s32.totalorder %s57, %s58
    %p69 = scmp.eq.s32.totalorder %s14, 0
    %p70 = por %p68, %p69
    %p71 = scmp.ne.s32.totalorder %s57, %s58
    %p72 = scmp.eq.s32.totalorder %s15, 1
    %p73 = por %p71, %p72
    %p75 = scmp.ne.s32.totalorder %s58, %s74
    %p76 = scmp.eq.s32.totalorder %s15, 0
    %p77 = por %p75, %p76
    %s79 = sadd.s32 %s78, 1
    %p82 = scmp.eq.s32.totalorder %s9, 1
    %p83 = scmp.ne.s32.totalorder %s78, %s80
    %p84 = scmp.eq.s32.totalorder %s9, 0
    %p85 = por %p83, %p84
    %p86 = scmp.ne.s32.totalorder %s78, %s80
    %p87 = scmp.eq.s32.totalorder %s14, 1
    %p88 = por %p86, %p87
    %p89 = scmp.ne.s32.totalorder %s80, %s81
    %p90 = scmp.eq.s32.totalorder %s14, 0
    %p91 = por %p89, %p90
    %p92 = scmp.ne.s32.totalorder %s80, %s81
    %p93 = scmp.eq.s32.totalorder %s15, 1
    %p94 = por %p92, %p93
    %p96 = scmp.ne.s32.totalorder %s81, %s95
    %p97 = scmp.eq.s32.totalorder %s15, 0
    %p98 = por %p96, %p97
    %s99 = ssub.s32 %s16, %s28
    %p100 = scmp.eq.s32.totalorder %s99, 0
    %s102 = sadd.s32 %s101, 1
    %s103 = scalar_select %p100, %s101, %s102
    %p106 = pneg %p100
    %p107 = scmp.eq.s32.totalorder %s9, 1
    %p108 = por %p106, %p107
    %p109 = scmp.ne.s32.totalorder %s101, %s104
    %p110 = scmp.eq.s32.totalorder %s9, 0
    %p111 = por %p109, %p110
    %p112 = scmp.ne.s32.totalorder %s101, %s104
    %p113 = scmp.eq.s32.totalorder %s14, 1
    %p114 = por %p112, %p113
    %p115 = scmp.ne.s32.totalorder %s104, %s105
    %p116 = scmp.eq.s32.totalorder %s14, 0
    %p117 = por %p115, %p116
    %p118 = scmp.ne.s32.totalorder %s104, %s105
    %p119 = scmp.eq.s32.totalorder %s15, 1
    %p120 = por %p118, %p119
    %p122 = scmp.ne.s32.totalorder %s105, %s121
    %p123 = scmp.eq.s32.totalorder %s15, 0
    %p124 = por %p122, %p123
    %p125 = scmp.le.s32.totalorder 1, %s9
    %p126 = scmp.lt.s32.totalorder %s9, 3
    %p127 = pnand %p125, %p126
    %p128 = pneg %p127
    // Predicated region
    $region9: #{gcn_synthetic_forward.3} parent=5 // pred_check
      _
    $region10: #{gcn_synthetic_forward.3} parent=5 // pred_check_branch
      %130 = sbr.rel (%p127) target = $region12
    $region11: #{gcn_synthetic_forward.3} parent=5 // pred_region
      %s131 = ssub.s32 %s9, 1
      // Predicated region
      $region13: #{gcn_synthetic_forward.3} parent=11 // pred_check
        %p132 = pneg %p42
      $region14: #{gcn_synthetic_forward.3} parent=11 // pred_check_branch
        %134 = sbr.rel (%p132) target = $region16
      $region15: #{gcn_synthetic_forward.3} parent=11 // pred_region
        _
      $region16: #{gcn_synthetic_forward.3} parent=11 // pred_fallthru
        _
      // Predicated region
      $region17: #{gcn_synthetic_forward.3} parent=11 // pred_check
        %p135 = pneg %p91
      $region18: #{gcn_synthetic_forward.3} parent=11 // pred_check_branch
        %137 = sbr.rel (%p135) target = $region20
      $region19: #{gcn_synthetic_forward.3} parent=11 // pred_region
        _
      $region20: #{gcn_synthetic_forward.3} parent=11 // pred_fallthru
        _
    $region12: #{gcn_synthetic_forward.3} parent=5 // pred_fallthru
      _
    %p138 = scmp.lt.s32.totalorder %s9, 2
    // Predicated region
    $region21: #{gcn_synthetic_forward.3} parent=5 // pred_check
      %p139 = pneg %p138
    $region22: #{gcn_synthetic_forward.3} parent=5 // pred_check_branch
      %141 = sbr.rel (%p139) target = $region24
    $region23: #{gcn_synthetic_forward.3} parent=5 // pred_region
      // Predicated region
      $region25: #{gcn_synthetic_forward.3} parent=23 // pred_check
        %p142 = pneg %p64
      $region26: #{gcn_synthetic_forward.3} parent=23 // pred_check_branch
        %144 = sbr.rel (%p142) target = $region28
      $region27: #{gcn_synthetic_forward.3} parent=23 // pred_region
        %s145 = smul.u32 24, %s16
        %s146 = smul.u32 3, %s17
        %p147 = scmp.lt.s32.totalorder %s145, 47
        %s148 = scalar_select %p147, %s145, 47
        %p149 = scmp.lt.s32.totalorder %s146, 2
        %s150 = scalar_select %p149, %s146, 2
        %s151 = smul.addr %s148, 3
        %s152 = sadd.s32 %s150, %s151
        %s153 = smul.addr %s152, 4
        %s154 = scalar_lea.vmem %s1, %s153
        %s155 = smul.u32 24, %s16
        %s156 = smul.u32 3, %s17
      $region28: #{gcn_synthetic_forward.3} parent=23 // pred_fallthru
        _
    $region24: #{gcn_synthetic_forward.3} parent=5 // pred_fallthru
      _
    %p157 = scmp.le.s32.totalorder 1, %s9
    %p158 = scmp.lt.s32.totalorder %s9, 3
    %p159 = pnand %p157, %p158
    %p160 = pneg %p159
    // Predicated region
    $region29: #{gcn_synthetic_forward.3} parent=5 // pred_check
      _
    $region30: #{gcn_synthetic_forward.3} parent=5 // pred_check_branch
      %162 = sbr.rel (%p159) target = $region32
    $region31: #{gcn_synthetic_forward.3} parent=5 // pred_region
      %s163 = ssub.s32 %s9, 1
      %p164 = pneg %p42
      %p165 = pneg %p39
      %s166 = smul.u32 24, %s18
      %s167 = smul.u32 3, %s19
      %p168 = scmp.lt.s32.totalorder %s166, 47
      %s169 = scalar_select %p168, %s166, 47
      %p170 = scmp.lt.s32.totalorder %s167, 2
      %s171 = scalar_select %p170, %s167, 2
      %s172 = smul.addr %s169, 3
      %s173 = sadd.s32 %s171, %s172
      %s174 = smul.addr %s173, 4
      %s175 = scalar_lea.vmem %s1, %s174
      %p176 = pneg %p70
      %p177 = pneg %p67
      %p178 = pneg %p91
      %p179 = pneg %p88
      %p180 = pneg %p117
      %p181 = pneg %p114
      %s182 = smul.u32 24, %s18
      %p183 = scmp.lt.s32.totalorder %s182, 47
      %s184 = scalar_select %p183, %s182, 47
      %s185 = smul.addr %s184, 4
      %s186 = scalar_lea.vmem %s3, %s185
      %s187 = smul.u32 24, %s18
      %s188 = smul.u32 3, %s19
      %p189 = scmp.lt.s32.totalorder %s187, 47
      %s190 = scalar_select %p189, %s187, 47
      %p191 = scmp.lt.s32.totalorder %s188, 2
      %s192 = scalar_select %p191, %s188, 2
      %s193 = smul.addr %s190, 3
      %s194 = sadd.s32 %s192, %s193
      %s195 = smul.addr %s194, 4
      %s196 = scalar_lea.vmem %s1, %s195
      %s197 = smul.u32 24, %s18
      %s198 = smul.u32 3, %s19
      %s199 = smul.u32 24, %s18
      %p200 = scmp.lt.s32.totalorder %s199, 47
      %s201 = scalar_select %p200, %s199, 47
      %s202 = smul.addr %s201, 4
      %s203 = scalar_lea.vmem %s3, %s202
      %s204 = smul.u32 24, %s18
      %p206 = scmp.eq.s32.totalorder %s19, 0
      // Predicated region
      $region33: #{gcn_synthetic_forward.3} parent=31 // pred_check
        %p207 = pneg %p206
      $region34: #{gcn_synthetic_forward.3} parent=31 // pred_check_branch
        %209 = sbr.rel (%p207) target = $region36
      $region35: #{gcn_synthetic_forward.3} parent=31 // pred_region
        %vm210 = vcmask 261120
        %211 = vst.msk [vmem:[#allocation2] sm:$0xff] %vm210, 0.0
        %212 = vst.msk [vmem:[#allocation2 + $0x8] sm:$0xff] %vm210, 0.0
        %213 = vst.msk [vmem:[#allocation2 + $0x10] sm:$0xff] %vm210, 0.0
        %214 = vst.msk [vmem:[#allocation2 + $0x18] sm:$0xff] %vm210, 0.0
        %215 = vst.msk [vmem:[#allocation2 + $0x20] sm:$0xff] %vm210, 0.0
        %216 = vst.msk [vmem:[#allocation2 + $0x28] sm:$0xff] %vm210, 0.0
        %217 = vst.msk [vmem:[#allocation2 + $0x30] sm:$0xff] %vm210, 0.0
        %218 = vst.msk [vmem:[#allocation2 + $0x38] sm:$0xff] %vm210, 0.0
        %219 = vst.msk [vmem:[#allocation2 + $0x40] sm:$0xff] %vm210, 0.0
        %220 = vst.msk [vmem:[#allocation2 + $0x48] sm:$0xff] %vm210, 0.0
        %221 = vst.msk [vmem:[#allocation2 + $0x50] sm:$0xff] %vm210, 0.0
        %222 = vst.msk [vmem:[#allocation2 + $0x58] sm:$0xff] %vm210, 0.0
        %223 = vst.msk [vmem:[#allocation2 + $0x60] sm:$0xff] %vm210, 0.0
        %224 = vst.msk [vmem:[#allocation2 + $0x68] sm:$0xff] %vm210, 0.0
        %225 = vst.msk [vmem:[#allocation2 + $0x70] sm:$0xff] %vm210, 0.0
        %226 = vst.msk [vmem:[#allocation2 + $0x78] sm:$0xff] %vm210, 0.0
        %227 = vst.msk [vmem:[#allocation2 + $0x80] sm:$0xff] %vm210, 0.0
        %228 = vst.msk [vmem:[#allocation2 + $0x88] sm:$0xff] %vm210, 0.0
        %229 = vst.msk [vmem:[#allocation2 + $0x90] sm:$0xff] %vm210, 0.0
        %230 = vst.msk [vmem:[#allocation2 + $0x98] sm:$0xff] %vm210, 0.0
        %231 = vst.msk [vmem:[#allocation2 + $0xa0] sm:$0xff] %vm210, 0.0
        %232 = vst.msk [vmem:[#allocation2 + $0xa8] sm:$0xff] %vm210, 0.0
        %233 = vst.msk [vmem:[#allocation2 + $0xb0] sm:$0xff] %vm210, 0.0
        %234 = vst.msk [vmem:[#allocation2 + $0xb8] sm:$0xff] %vm210, 0.0
      $region36: #{gcn_synthetic_forward.3} parent=31 // pred_fallthru
        _
      %s235 = smul.u32 %s19, 384
      %s236 = sshra.s32 %s235, 3
      %s237 = sand.u32 %s235, 7
      %s238 = smul.addr %s236, 4
      %s239 = scalar_lea.vmem %s0, %s238
      %v240 = vld [vmem:[%s239] sm:$0xf]
      %v241 = vld [vmem:[%s239 + $0x4] sm:$0xf]
      %v242 = vld [vmem:[%s239 + $0x8] sm:$0xf]
      %v243 = vld [vmem:[%s239 + $0xc] sm:$0xf]
      %v244 = vld [vmem:[%s239 + $0x10] sm:$0xf]
      %v245 = vld [vmem:[%s239 + $0x14] sm:$0xf]
      %v246 = vld [vmem:[%s239 + $0x18] sm:$0xf]
      %v247 = vld [vmem:[%s239 + $0x1c] sm:$0xf]
      %v248 = vld [vmem:[%s239 + $0x20] sm:$0xf]
      %v249 = vld [vmem:[%s239 + $0x24] sm:$0xf]
      %v250 = vld [vmem:[%s239 + $0x28] sm:$0xf]
      %v251 = vld [vmem:[%s239 + $0x2c] sm:$0xf]
      %v252 = vld [vmem:[%s239 + $0x30] sm:$0xf]
      %v253 = vld [vmem:[%s239 + $0x34] sm:$0xf]
      %v254 = vld [vmem:[%s239 + $0x38] sm:$0xf]
      %v255 = vld [vmem:[%s239 + $0x3c] sm:$0xf]
      %v256 = vld [vmem:[%s239 + $0x40] sm:$0xf]
      %v257 = vld [vmem:[%s239 + $0x44] sm:$0xf]
      %v258 = vld [vmem:[%s239 + $0x48] sm:$0xf]
      %v259 = vld [vmem:[%s239 + $0x4c] sm:$0xf]
      %v260 = vld [vmem:[%s239 + $0x50] sm:$0xf]
      %v261 = vld [vmem:[%s239 + $0x54] sm:$0xf]
      %v262 = vld [vmem:[%s239 + $0x58] sm:$0xf]
      %v263 = vld [vmem:[%s239 + $0x5c] sm:$0xf]
      %v264 = vld [vmem:[%s239 + $0x60] sm:$0xf]
      %v265 = vld [vmem:[%s239 + $0x64] sm:$0xf]
      %v266 = vld [vmem:[%s239 + $0x68] sm:$0xf]
      %v267 = vld [vmem:[%s239 + $0x6c] sm:$0xf]
      %v268 = vld [vmem:[%s239 + $0x70] sm:$0xf]
      %v269 = vld [vmem:[%s239 + $0x74] sm:$0xf]
      %v270 = vld [vmem:[%s239 + $0x78] sm:$0xf]
      %v271 = vld [vmem:[%s239 + $0x7c] sm:$0xf]
      %v272 = vld [vmem:[%s239 + $0x80] sm:$0xf]
      %v273 = vld [vmem:[%s239 + $0x84] sm:$0xf]
      %v274 = vld [vmem:[%s239 + $0x88] sm:$0xf]
      %v275 = vld [vmem:[%s239 + $0x8c] sm:$0xf]
      %v276 = vld [vmem:[%s239 + $0x90] sm:$0xf]
      %v277 = vld [vmem:[%s239 + $0x94] sm:$0xf]
      %v278 = vld [vmem:[%s239 + $0x98] sm:$0xf]
      %v279 = vld [vmem:[%s239 + $0x9c] sm:$0xf]
      %v280 = vld [vmem:[%s239 + $0xa0] sm:$0xf]
      %v281 = vld [vmem:[%s239 + $0xa4] sm:$0xf]
      %v282 = vld [vmem:[%s239 + $0xa8] sm:$0xf]
      %v283 = vld [vmem:[%s239 + $0xac] sm:$0xf]
      %v284 = vld [vmem:[%s239 + $0xb0] sm:$0xf]
      %v285 = vld [vmem:[%s239 + $0xb4] sm:$0xf]
      %v286 = vld [vmem:[%s239 + $0xb8] sm:$0xf]
      %v287 = vld [vmem:[%s239 + $0xbc] sm:$0xf]
      %v288 = vld [vmem:[#allocation2] sm:$0xff]
      %v289 = vld [vmem:[#allocation2 + $0x8] sm:$0xff]
      %v290 = vld [vmem:[#allocation2 + $0x10] sm:$0xff]
      %v291 = vld [vmem:[#allocation2 + $0x18] sm:$0xff]
      %v292 = vld [vmem:[#allocation2 + $0x20] sm:$0xff]
      %v293 = vld [vmem:[#allocation2 + $0x28] sm:$0xff]
      %v294 = vld [vmem:[#allocation2 + $0x30] sm:$0xff]
      %v295 = vld [vmem:[#allocation2 + $0x38] sm:$0xff]
      %v296 = vld [vmem:[#allocation2 + $0x40] sm:$0xff]
      %v297 = vld [vmem:[#allocation2 + $0x48] sm:$0xff]
      %v298 = vld [vmem:[#allocation2 + $0x50] sm:$0xff]
      %v299 = vld [vmem:[#allocation2 + $0x58] sm:$0xff]
      %v300 = vld [vmem:[#allocation2 + $0x60] sm:$0xff]
      %v301 = vld [vmem:[#allocation2 + $0x68] sm:$0xff]
      %v302 = vld [vmem:[#allocation2 + $0x70] sm:$0xff]
      %v303 = vld [vmem:[#allocation2 + $0x78] sm:$0xff]
      %v304 = vld [vmem:[#allocation2 + $0x80] sm:$0xff]
      %v305 = vld [vmem:[#allocation2 + $0x88] sm:$0xff]
      %v306 = vld [vmem:[#allocation2 + $0x90] sm:$0xff]
      %v307 = vld [vmem:[#allocation2 + $0x98] sm:$0xff]
      %v308 = vld [vmem:[#allocation2 + $0xa0] sm:$0xff]
      %v309 = vld [vmem:[#allocation2 + $0xa8] sm:$0xff]
      %v310 = vld [vmem:[#allocation2 + $0xb0] sm:$0xff]
      %v311 = vld [vmem:[#allocation2 + $0xb8] sm:$0xff]
      %v312 = vld [vmem:[%s196] sm:$0xff]
      %v313 = vld [vmem:[%s196 + $0x8] sm:$0xf]
      %v314 = vld [vmem:[%s196 + $0xc] sm:$0xff]
      %v315 = vld [vmem:[%s196 + $0x14] sm:$0xf]
      %v316 = vld [vmem:[%s196 + $0x18] sm:$0xff]
      %v317 = vld [vmem:[%s196 + $0x20] sm:$0xf]
      %v318 = vld [vmem:[%s196 + $0x24] sm:$0xff]
      %v319 = vld [vmem:[%s196 + $0x2c] sm:$0xf]
      %v320 = vld [vmem:[%s196 + $0x30] sm:$0xff]
      %v321 = vld [vmem:[%s196 + $0x38] sm:$0xf]
      %v322 = vld [vmem:[%s196 + $0x3c] sm:$0xff]
      %v323 = vld [vmem:[%s196 + $0x44] sm:$0xf]
      %v324 = vld [vmem:[%s196 + $0x48] sm:$0xff]
      %v325 = vld [vmem:[%s196 + $0x50] sm:$0xf]
      %v326 = vld [vmem:[%s196 + $0x54] sm:$0xff]
      %v327 = vld [vmem:[%s196 + $0x5c] sm:$0xf]
      %v328 = vld [vmem:[%s196 + $0x60] sm:$0xff]
      %v329 = vld [vmem:[%s196 + $0x68] sm:$0xf]
      %v330 = vld [vmem:[%s196 + $0x6c] sm:$0xff]
      %v331 = vld [vmem:[%s196 + $0x74] sm:$0xf]
      %v332 = vld [vmem:[%s196 + $0x78] sm:$0xff]
      %v333 = vld [vmem:[%s196 + $0x80] sm:$0xf]
      %v334 = vld [vmem:[%s196 + $0x84] sm:$0xff]
      %v335 = vld [vmem:[%s196 + $0x8c] sm:$0xf]
      %v336 = vld [vmem:[%s196 + $0x90] sm:$0xff]
      %v337 = vld [vmem:[%s196 + $0x98] sm:$0xf]
      %v338 = vld [vmem:[%s196 + $0x9c] sm:$0xff]
      %v339 = vld [vmem:[%s196 + $0xa4] sm:$0xf]
      %v340 = vld [vmem:[%s196 + $0xa8] sm:$0xff]
      %v341 = vld [vmem:[%s196 + $0xb0] sm:$0xf]
      %v342 = vld [vmem:[%s196 + $0xb4] sm:$0xff]
      %v343 = vld [vmem:[%s196 + $0xbc] sm:$0xf]
      %v344 = vld [vmem:[%s196 + $0xc0] sm:$0xff]
      %v345 = vld [vmem:[%s196 + $0xc8] sm:$0xf]
      %v346 = vld [vmem:[%s196 + $0xcc] sm:$0xff]
      %v347 = vld [vmem:[%s196 + $0xd4] sm:$0xf]
      %v348 = vld [vmem:[%s196 + $0xd8] sm:$0xff]
      %v349 = vld [vmem:[%s196 + $0xe0] sm:$0xf]
      %v350 = vld [vmem:[%s196 + $0xe4] sm:$0xff]
      %v351 = vld [vmem:[%s196 + $0xec] sm:$0xf]
      %v352 = vld [vmem:[%s196 + $0xf0] sm:$0xff]
      %v353 = vld [vmem:[%s196 + $0xf8] sm:$0xf]
      %v354 = vld [vmem:[%s196 + $0xfc] sm:$0xff]
      %v355 = vld [vmem:[%s196 + $0x104] sm:$0xf]
      %v356 = vld [vmem:[%s196 + $0x108] sm:$0xff]
      %v357 = vld [vmem:[%s196 + $0x110] sm:$0xf]
      %v358 = vld [vmem:[%s196 + $0x114] sm:$0xff]
      %v359 = vld [vmem:[%s196 + $0x11c] sm:$0xf]
      %v408 = vunpack.c.l.b16 %v312
      %v409 = vunpack.c.h.b16 %v312
      %v410 = vunpack.c.l.b16 %v313
      %v411 = vunpack.c.l.b16 %v314
      %v412 = vunpack.c.h.b16 %v314
      %v413 = vunpack.c.l.b16 %v315
      %v414 = vunpack.c.l.b16 %v316
      %v415 = vunpack.c.h.b16 %v316
      %v416 = vunpack.c.l.b16 %v317
      %v417 = vunpack.c.l.b16 %v318
      %v418 = vunpack.c.h.b16 %v318
      %v419 = vunpack.c.l.b16 %v319
      %v420 = vunpack.c.l.b16 %v320
      %v421 = vunpack.c.h.b16 %v320
      %v422 = vunpack.c.l.b16 %v321
      %v423 = vunpack.c.l.b16 %v322
      %v424 = vunpack.c.h.b16 %v322
      %v425 = vunpack.c.l.b16 %v323
      %v426 = vunpack.c.l.b16 %v324
      %v427 = vunpack.c.h.b16 %v324
      %v428 = vunpack.c.l.b16 %v325
      %v429 = vunpack.c.l.b16 %v326
      %v430 = vunpack.c.h.b16 %v326
      %v431 = vunpack.c.l.b16 %v327
      %v432 = vunpack.c.l.b16 %v328
      %v433 = vunpack.c.h.b16 %v328
      %v434 = vunpack.c.l.b16 %v329
      %v435 = vunpack.c.l.b16 %v330
      %v436 = vunpack.c.h.b16 %v330
      %v437 = vunpack.c.l.b16 %v331
      %v438 = vunpack.c.l.b16 %v332
      %v439 = vunpack.c.h.b16 %v332
      %v440 = vunpack.c.l.b16 %v333
      %v441 = vunpack.c.l.b16 %v334
      %v442 = vunpack.c.h.b16 %v334
      %v443 = vunpack.c.l.b16 %v335
      %v444 = vunpack.c.l.b16 %v336
      %v445 = vunpack.c.h.b16 %v336
      %v446 = vunpack.c.l.b16 %v337
      %v447 = vunpack.c.l.b16 %v338
      %v448 = vunpack.c.h.b16 %v338
      %v449 = vunpack.c.l.b16 %v339
      %v450 = vunpack.c.l.b16 %v340
      %v451 = vunpack.c.h.b16 %v340
      %v452 = vunpack.c.l.b16 %v341
      %v453 = vunpack.c.l.b16 %v342
      %v454 = vunpack.c.h.b16 %v342
      %v455 = vunpack.c.l.b16 %v343
      %v456 = vunpack.c.l.b16 %v344
      %v457 = vunpack.c.h.b16 %v344
      %v458 = vunpack.c.l.b16 %v345
      %v459 = vunpack.c.l.b16 %v346
      %v460 = vunpack.c.h.b16 %v346
      %v461 = vunpack.c.l.b16 %v347
      %v462 = vunpack.c.l.b16 %v348
      %v463 = vunpack.c.h.b16 %v348
      %v464 = vunpack.c.l.b16 %v349
      %v465 = vunpack.c.l.b16 %v350
      %v466 = vunpack.c.h.b16 %v350
      %v467 = vunpack.c.l.b16 %v351
      %v468 = vunpack.c.l.b16 %v352
      %v469 = vunpack.c.h.b16 %v352
      %v470 = vunpack.c.l.b16 %v353
      %v471 = vunpack.c.l.b16 %v354
      %v472 = vunpack.c.h.b16 %v354
      %v473 = vunpack.c.l.b16 %v355
      %v474 = vunpack.c.l.b16 %v356
      %v475 = vunpack.c.h.b16 %v356
      %v476 = vunpack.c.l.b16 %v357
      %v477 = vunpack.c.l.b16 %v358
      %v478 = vunpack.c.h.b16 %v358
      %v479 = vunpack.c.l.b16 %v359
      %v480 = vpack.c.b16 %v411, %v408
      %v481 = vpack.c.b16 %v412, %v409
      %v482 = vpack.c.b16 %v413, %v410
      %v483 = vpack.c.b16 %v417, %v414
      %v484 = vpack.c.b16 %v418, %v415
      %v485 = vpack.c.b16 %v419, %v416
      %v486 = vpack.c.b16 %v423, %v420
      %v487 = vpack.c.b16 %v424, %v421
      %v488 = vpack.c.b16 %v425, %v422
      %v489 = vpack.c.b16 %v429, %v426
      %v490 = vpack.c.b16 %v430, %v427
      %v491 = vpack.c.b16 %v431, %v428
      %v492 = vpack.c.b16 %v435, %v432
      %v493 = vpack.c.b16 %v436, %v433
      %v494 = vpack.c.b16 %v437, %v434
      %v495 = vpack.c.b16 %v441, %v438
      %v496 = vpack.c.b16 %v442, %v439
      %v497 = vpack.c.b16 %v443, %v440
      %v498 = vpack.c.b16 %v447, %v444
      %v499 = vpack.c.b16 %v448, %v445
      %v500 = vpack.c.b16 %v449, %v446
      %v501 = vpack.c.b16 %v453, %v450
      %v502 = vpack.c.b16 %v454, %v451
      %v503 = vpack.c.b16 %v455, %v452
      %v504 = vpack.c.b16 %v459, %v456
      %v505 = vpack.c.b16 %v460, %v457
      %v506 = vpack.c.b16 %v461, %v458
      %v507 = vpack.c.b16 %v465, %v462
      %v508 = vpack.c.b16 %v466, %v463
      %v509 = vpack.c.b16 %v467, %v464
      %v510 = vpack.c.b16 %v471, %v468
      %v511 = vpack.c.b16 %v472, %v469
      %v512 = vpack.c.b16 %v473, %v470
      %v513 = vpack.c.b16 %v477, %v474
      %v514 = vpack.c.b16 %v478, %v475
      %v515 = vpack.c.b16 %v479, %v476
      %v600 = vunpack.c.l.b16 %v240
      %v601 = vunpack.c.l.b16 %v241
      %v602 = vunpack.c.l.b16 %v242
      %v603 = vunpack.c.l.b16 %v243
      %v604 = vunpack.c.l.b16 %v244
      %v605 = vunpack.c.l.b16 %v245
      %v606 = vunpack.c.l.b16 %v246
      %v607 = vunpack.c.l.b16 %v247
      %v608 = vunpack.c.l.b16 %v248
      %v609 = vunpack.c.l.b16 %v249
      %v610 = vunpack.c.l.b16 %v250
      %v611 = vunpack.c.l.b16 %v251
      %v612 = vunpack.c.l.b16 %v252
      %v613 = vunpack.c.l.b16 %v253
      %v614 = vunpack.c.l.b16 %v254
      %v615 = vunpack.c.l.b16 %v255
      %v616 = vunpack.c.l.b16 %v256
      %v617 = vunpack.c.l.b16 %v257
      %v618 = vunpack.c.l.b16 %v258
      %v619 = vunpack.c.l.b16 %v259
      %v620 = vunpack.c.l.b16 %v260
      %v621 = vunpack.c.l.b16 %v261
      %v622 = vunpack.c.l.b16 %v262
      %v623 = vunpack.c.l.b16 %v263
      %v624 = vunpack.c.l.b16 %v264
      %v625 = vunpack.c.l.b16 %v265
      %v626 = vunpack.c.l.b16 %v266
      %v627 = vunpack.c.l.b16 %v267
      %v628 = vunpack.c.l.b16 %v268
      %v629 = vunpack.c.l.b16 %v269
      %v630 = vunpack.c.l.b16 %v270
      %v631 = vunpack.c.l.b16 %v271
      %v632 = vunpack.c.l.b16 %v272
      %v633 = vunpack.c.l.b16 %v273
      %v634 = vunpack.c.l.b16 %v274
      %v635 = vunpack.c.l.b16 %v275
      %v636 = vunpack.c.l.b16 %v276
      %v637 = vunpack.c.l.b16 %v277
      %v638 = vunpack.c.l.b16 %v278
      %v639 = vunpack.c.l.b16 %v279
      %v640 = vunpack.c.l.b16 %v280
      %v641 = vunpack.c.l.b16 %v281
      %v642 = vunpack.c.l.b16 %v282
      %v643 = vunpack.c.l.b16 %v283
      %v644 = vunpack.c.l.b16 %v284
      %v645 = vunpack.c.l.b16 %v285
      %v646 = vunpack.c.l.b16 %v286
      %v647 = vunpack.c.l.b16 %v287
      %v648 = vpack.c.b16 %v601, %v600
      %v649 = vpack.c.b16 %v603, %v602
      %v650 = vpack.c.b16 %v605, %v604
      %v651 = vpack.c.b16 %v607, %v606
      %v652 = vpack.c.b16 %v609, %v608
      %v653 = vpack.c.b16 %v611, %v610
      %v654 = vpack.c.b16 %v613, %v612
      %v655 = vpack.c.b16 %v615, %v614
      %v656 = vpack.c.b16 %v617, %v616
      %v657 = vpack.c.b16 %v619, %v618
      %v658 = vpack.c.b16 %v621, %v620
      %v659 = vpack.c.b16 %v623, %v622
      %v660 = vpack.c.b16 %v625, %v624
      %v661 = vpack.c.b16 %v627, %v626
      %v662 = vpack.c.b16 %v629, %v628
      %v663 = vpack.c.b16 %v631, %v630
      %v664 = vpack.c.b16 %v633, %v632
      %v665 = vpack.c.b16 %v635, %v634
      %v666 = vpack.c.b16 %v637, %v636
      %v667 = vpack.c.b16 %v639, %v638
      %v668 = vpack.c.b16 %v641, %v640
      %v669 = vpack.c.b16 %v643, %v642
      %v670 = vpack.c.b16 %v645, %v644
      %v671 = vpack.c.b16 %v647, %v646
      %696 = vmatprep.subr.bf16.mxu0 0
      %697 = vmatpush1.bf16.msra.mxu0 %v655
      %698 = vmatprep.subr.bf16.mxu0 0
      %699 = vmatpush1.bf16.msra.mxu0 %v654
      %700 = vmatprep.subr.bf16.mxu0 0
      %701 = vmatpush1.bf16.msra.mxu0 %v653
      %702 = vmatprep.subr.bf16.mxu0 0
      %703 = vmatpush1.bf16.msra.mxu0 %v652
      %704 = vmatprep.subr.bf16.mxu0 0
      %705 = vmatpush1.bf16.msra.mxu0 %v651
      %706 = vmatprep.subr.bf16.mxu0 0
      %707 = vmatpush1.bf16.msra.mxu0 %v650
      %708 = vmatprep.subr.bf16.mxu0 0
      %709 = vmatpush1.bf16.msra.mxu0 %v649
      %710 = vmatprep.subr.bf16.mxu0 0
      %711 = vmatpush1.bf16.msra.mxu0 %v648
      %712 = vmatprep.subr.bf16.mxu0 0
      %713 = vmatpush2.bf16.msra.mxu0 %v663
      %714 = vmatprep.subr.bf16.mxu0 0
      %715 = vmatpush2.bf16.msra.mxu0 %v662
      %716 = vmatprep.subr.bf16.mxu0 0
      %717 = vmatpush2.bf16.msra.mxu0 %v661
      %718 = vmatprep.subr.bf16.mxu0 0
      %719 = vmatpush2.bf16.msra.mxu0 %v660
      %720 = vmatprep.subr.bf16.mxu0 0
      %721 = vmatpush2.bf16.msra.mxu0 %v659
      %722 = vmatprep.subr.bf16.mxu0 0
      %723 = vmatpush2.bf16.msra.mxu0 %v658
      %724 = vmatprep.subr.bf16.mxu0 0
      %725 = vmatpush2.bf16.msra.mxu0 %v657
      %726 = vmatprep.subr.bf16.mxu0 0
      %727 = vmatpush2.bf16.msra.mxu0 %v656
      %728 = vmatprep.mubr.bf16.mxu0 %v481
      %729 = vmatmul.mubr.bf16.gmra.mxu0 %v480
      %v730 = vpop.f32.mrf.mxu0
      %v731 = vadd.f32 0.0, %v730
      %v732 = vpop.f32.mrf.mxu0
      %v733 = vpop.f32.mrf.mxu0
      %v734 = vadd.f32 0.0, %v733
      %v735 = vpop.f32.mrf.mxu0
      %736 = vmatprep.mubr.bf16.mxu0 %v484
      %737 = vmatmul.mubr.bf16.gmra.mxu0 %v483
      %v738 = vpop.f32.mrf.mxu0
      %v739 = vadd.f32 0.0, %v738
      %v740 = vpop.f32.mrf.mxu0
      %v741 = vpop.f32.mrf.mxu0
      %v742 = vadd.f32 0.0, %v741
      %v743 = vpop.f32.mrf.mxu0
      %744 = vmatprep.mubr.bf16.mxu0 %v487
      %745 = vmatmul.mubr.bf16.gmra.mxu0 %v486
      %v746 = vpop.f32.mrf.mxu0
      %v747 = vadd.f32 0.0, %v746
      %v748 = vpop.f32.mrf.mxu0
      %v749 = vpop.f32.mrf.mxu0
      %v750 = vadd.f32 0.0, %v749
      %v751 = vpop.f32.mrf.mxu0
      %752 = vmatprep.mubr.bf16.mxu0 %v490
      %753 = vmatmul.mubr.bf16.gmra.mxu0 %v489
      %v754 = vpop.f32.mrf.mxu0
      %v755 = vadd.f32 0.0, %v754
      %v756 = vpop.f32.mrf.mxu0
      %v757 = vpop.f32.mrf.mxu0
      %v758 = vadd.f32 0.0, %v757
      %v759 = vpop.f32.mrf.mxu0
      %760 = vmatprep.mubr.bf16.mxu0 %v493
      %761 = vmatmul.mubr.bf16.gmra.mxu0 %v492
      %v762 = vpop.f32.mrf.mxu0
      %v763 = vadd.f32 0.0, %v762
      %v764 = vpop.f32.mrf.mxu0
      %v765 = vpop.f32.mrf.mxu0
      %v766 = vadd.f32 0.0, %v765
      %v767 = vpop.f32.mrf.mxu0
      %768 = vmatprep.mubr.bf16.mxu0 %v496
      %769 = vmatmul.mubr.bf16.gmra.mxu0 %v495
      %v770 = vpop.f32.mrf.mxu0
      %v771 = vadd.f32 0.0, %v770
      %v772 = vpop.f32.mrf.mxu0
      %v773 = vpop.f32.mrf.mxu0
      %v774 = vadd.f32 0.0, %v773
      %v775 = vpop.f32.mrf.mxu0
      %776 = vmatprep.mubr.bf16.mxu0 %v499
      %777 = vmatmul.mubr.bf16.gmra.mxu0 %v498
      %v778 = vpop.f32.mrf.mxu0
      %v779 = vadd.f32 0.0, %v778
      %v780 = vpop.f32.mrf.mxu0
      %v781 = vpop.f32.mrf.mxu0
      %v782 = vadd.f32 0.0, %v781
      %v783 = vpop.f32.mrf.mxu0
      %784 = vmatprep.mubr.bf16.mxu0 %v502
      %785 = vmatmul.mubr.bf16.gmra.mxu0 %v501
      %v786 = vpop.f32.mrf.mxu0
      %v787 = vadd.f32 0.0, %v786
      %v788 = vpop.f32.mrf.mxu0
      %v789 = vpop.f32.mrf.mxu0
      %v790 = vadd.f32 0.0, %v789
      %v791 = vpop.f32.mrf.mxu0
      %792 = vmatprep.mubr.bf16.mxu0 %v505
      %793 = vmatmul.mubr.bf16.gmra.mxu0 %v504
      %v794 = vpop.f32.mrf.mxu0
      %v795 = vadd.f32 0.0, %v794
      %v796 = vpop.f32.mrf.mxu0
      %v797 = vpop.f32.mrf.mxu0
      %v798 = vadd.f32 0.0, %v797
      %v799 = vpop.f32.mrf.mxu0
      %800 = vmatprep.mubr.bf16.mxu0 %v508
      %801 = vmatmul.mubr.bf16.gmra.mxu0 %v507
      %v802 = vpop.f32.mrf.mxu0
      %v803 = vadd.f32 0.0, %v802
      %v804 = vpop.f32.mrf.mxu0
      %v805 = vpop.f32.mrf.mxu0
      %v806 = vadd.f32 0.0, %v805
      %v807 = vpop.f32.mrf.mxu0
      %808 = vmatprep.mubr.bf16.mxu0 %v511
      %809 = vmatmul.mubr.bf16.gmra.mxu0 %v510
      %v810 = vpop.f32.mrf.mxu0
      %v811 = vadd.f32 0.0, %v810
      %v812 = vpop.f32.mrf.mxu0
      %v813 = vpop.f32.mrf.mxu0
      %v814 = vadd.f32 0.0, %v813
      %v815 = vpop.f32.mrf.mxu0
      %816 = vmatprep.mubr.bf16.mxu0 %v514
      %817 = vmatmul.mubr.bf16.gmra.mxu0 %v513
      %v818 = vpop.f32.mrf.mxu0
      %v819 = vadd.f32 0.0, %v818
      %v820 = vpop.f32.mrf.mxu0
      %v821 = vpop.f32.mrf.mxu0
      %v822 = vadd.f32 0.0, %v821
      %v823 = vpop.f32.mrf.mxu0
      %824 = vdwg.mxu0
      %825 = vmatprep.subr.bf16.mxu0 0
      %826 = vmatpush1.bf16.msra.mxu0 %v671
      %827 = vmatprep.subr.bf16.mxu0 0
      %828 = vmatpush1.bf16.msra.mxu0 %v670
      %829 = vmatprep.subr.bf16.mxu0 0
      %830 = vmatpush1.bf16.msra.mxu0 %v669
      %831 = vmatprep.subr.bf16.mxu0 0
      %832 = vmatpush1.bf16.msra.mxu0 %v668
      %833 = vmatprep.subr.bf16.mxu0 0
      %834 = vmatpush1.bf16.msra.mxu0 %v667
      %835 = vmatprep.subr.bf16.mxu0 0
      %836 = vmatpush1.bf16.msra.mxu0 %v666
      %837 = vmatprep.subr.bf16.mxu0 0
      %838 = vmatpush1.bf16.msra.mxu0 %v665
      %839 = vmatprep.subr.bf16.mxu0 0
      %840 = vmatpush1.bf16.msra.mxu0 %v664
      %841 = vmatprep.subr.bf16.mxu0 0
      %842 = vmatpush2.bf16.msra.mxu0 0
      %843 = vmatprep.subr.bf16.mxu0 0
      %844 = vmatpush2.bf16.msra.mxu0 0
      %845 = vmatprep.subr.bf16.mxu0 0
      %846 = vmatpush2.bf16.msra.mxu0 0
      %847 = vmatprep.subr.bf16.mxu0 0
      %848 = vmatpush2.bf16.msra.mxu0 0
      %849 = vmatprep.subr.bf16.mxu0 0
      %850 = vmatpush2.bf16.msra.mxu0 0
      %851 = vmatprep.subr.bf16.mxu0 0
      %852 = vmatpush2.bf16.msra.mxu0 0
      %853 = vmatprep.subr.bf16.mxu0 0
      %854 = vmatpush2.bf16.msra.mxu0 0
      %855 = vmatprep.subr.bf16.mxu0 0
      %856 = vmatpush2.bf16.msra.mxu0 0
      %857 = vmatprep.mubr.bf16.mxu0 0
      %858 = vmatmul.mubr.bf16.gmra.mxu0 %v482
      %v859 = vpop.f32.mrf.mxu0
      %v860 = vadd.f32 %v731, %v859
      %v861 = vpop.f32.mrf.mxu0
      %v862 = vpop.f32.mrf.mxu0
      %v863 = vadd.f32 %v734, %v862
      %v864 = vpop.f32.mrf.mxu0
      %865 = vmatprep.mubr.bf16.mxu0 0
      %866 = vmatmul.mubr.bf16.gmra.mxu0 %v485
      %v867 = vpop.f32.mrf.mxu0
      %v868 = vadd.f32 %v739, %v867
      %v869 = vpop.f32.mrf.mxu0
      %v870 = vpop.f32.mrf.mxu0
      %v871 = vadd.f32 %v742, %v870
      %v872 = vpop.f32.mrf.mxu0
      %873 = vmatprep.mubr.bf16.mxu0 0
      %874 = vmatmul.mubr.bf16.gmra.mxu0 %v488
      %v875 = vpop.f32.mrf.mxu0
      %v876 = vadd.f32 %v747, %v875
      %v877 = vpop.f32.mrf.mxu0
      %v878 = vpop.f32.mrf.mxu0
      %v879 = vadd.f32 %v750, %v878
      %v880 = vpop.f32.mrf.mxu0
      %881 = vmatprep.mubr.bf16.mxu0 0
      %882 = vmatmul.mubr.bf16.gmra.mxu0 %v491
      %v883 = vpop.f32.mrf.mxu0
      %v884 = vadd.f32 %v755, %v883
      %v885 = vpop.f32.mrf.mxu0
      %v886 = vpop.f32.mrf.mxu0
      %v887 = vadd.f32 %v758, %v886
      %v888 = vpop.f32.mrf.mxu0
      %889 = vmatprep.mubr.bf16.mxu0 0
      %890 = vmatmul.mubr.bf16.gmra.mxu0 %v494
      %v891 = vpop.f32.mrf.mxu0
      %v892 = vadd.f32 %v763, %v891
      %v893 = vpop.f32.mrf.mxu0
      %v894 = vpop.f32.mrf.mxu0
      %v895 = vadd.f32 %v766, %v894
      %v896 = vpop.f32.mrf.mxu0
      %897 = vmatprep.mubr.bf16.mxu0 0
      %898 = vmatmul.mubr.bf16.gmra.mxu0 %v497
      %v899 = vpop.f32.mrf.mxu0
      %v900 = vadd.f32 %v771, %v899
      %v901 = vpop.f32.mrf.mxu0
      %v902 = vpop.f32.mrf.mxu0
      %v903 = vadd.f32 %v774, %v902
      %v904 = vpop.f32.mrf.mxu0
      %905 = vmatprep.mubr.bf16.mxu0 0
      %906 = vmatmul.mubr.bf16.gmra.mxu0 %v500
      %v907 = vpop.f32.mrf.mxu0
      %v908 = vadd.f32 %v779, %v907
      %v909 = vpop.f32.mrf.mxu0
      %v910 = vpop.f32.mrf.mxu0
      %v911 = vadd.f32 %v782, %v910
      %v912 = vpop.f32.mrf.mxu0
      %913 = vmatprep.mubr.bf16.mxu0 0
      %914 = vmatmul.mubr.bf16.gmra.mxu0 %v503
      %v915 = vpop.f32.mrf.mxu0
      %v916 = vadd.f32 %v787, %v915
      %v917 = vpop.f32.mrf.mxu0
      %v918 = vpop.f32.mrf.mxu0
      %v919 = vadd.f32 %v790, %v918
      %v920 = vpop.f32.mrf.mxu0
      %921 = vmatprep.mubr.bf16.mxu0 0
      %922 = vmatmul.mubr.bf16.gmra.mxu0 %v506
      %v923 = vpop.f32.mrf.mxu0
      %v924 = vadd.f32 %v795, %v923
      %v925 = vpop.f32.mrf.mxu0
      %v926 = vpop.f32.mrf.mxu0
      %v927 = vadd.f32 %v798, %v926
      %v928 = vpop.f32.mrf.mxu0
      %929 = vmatprep.mubr.bf16.mxu0 0
      %930 = vmatmul.mubr.bf16.gmra.mxu0 %v509
      %v931 = vpop.f32.mrf.mxu0
      %v932 = vadd.f32 %v803, %v931
      %v933 = vpop.f32.mrf.mxu0
      %v934 = vpop.f32.mrf.mxu0
      %v935 = vadd.f32 %v806, %v934
      %v936 = vpop.f32.mrf.mxu0
      %937 = vmatprep.mubr.bf16.mxu0 0
      %938 = vmatmul.mubr.bf16.gmra.mxu0 %v512
      %v939 = vpop.f32.mrf.mxu0
      %v940 = vadd.f32 %v811, %v939
      %v941 = vpop.f32.mrf.mxu0
      %v942 = vpop.f32.mrf.mxu0
      %v943 = vadd.f32 %v814, %v942
      %v944 = vpop.f32.mrf.mxu0
      %945 = vmatprep.mubr.bf16.mxu0 0
      %946 = vmatmul.mubr.bf16.gmra.mxu0 %v515
      %v947 = vpop.f32.mrf.mxu0
      %v948 = vadd.f32 %v819, %v947
      %v949 = vpop.f32.mrf.mxu0
      %v950 = vpop.f32.mrf.mxu0
      %v951 = vadd.f32 %v822, %v950
      %v952 = vpop.f32.mrf.mxu0
      %953 = vdwg.mxu0
      %v954 = vadd.f32 %v288, %v860
      %v955 = vadd.f32 %v289, %v863
      %v956 = vadd.f32 %v290, %v868
      %v957 = vadd.f32 %v291, %v871
      %v958 = vadd.f32 %v292, %v876
      %v959 = vadd.f32 %v293, %v879
      %v960 = vadd.f32 %v294, %v884
      %v961 = vadd.f32 %v295, %v887
      %v962 = vadd.f32 %v296, %v892
      %v963 = vadd.f32 %v297, %v895
      %v964 = vadd.f32 %v298, %v900
      %v965 = vadd.f32 %v299, %v903
      %v966 = vadd.f32 %v300, %v908
      %v967 = vadd.f32 %v301, %v911
      %v968 = vadd.f32 %v302, %v916
      %v969 = vadd.f32 %v303, %v919
      %v970 = vadd.f32 %v304, %v924
      %v971 = vadd.f32 %v305, %v927
      %v972 = vadd.f32 %v306, %v932
      %v973 = vadd.f32 %v307, %v935
      %v974 = vadd.f32 %v308, %v940
      %v975 = vadd.f32 %v309, %v943
      %v976 = vadd.f32 %v310, %v948
      %v977 = vadd.f32 %v311, %v951
      %vm978 = vcmask 261120
      %979 = vst.msk [vmem:[#allocation2] sm:$0xff] %vm978, %v954
      %980 = vst.msk [vmem:[#allocation2 + $0x8] sm:$0xff] %vm978, %v955
      %981 = vst.msk [vmem:[#allocation2 + $0x10] sm:$0xff] %vm978, %v956
      %982 = vst.msk [vmem:[#allocation2 + $0x18] sm:$0xff] %vm978, %v957
      %983 = vst.msk [vmem:[#allocation2 + $0x20] sm:$0xff] %vm978, %v958
      %984 = vst.msk [vmem:[#allocation2 + $0x28] sm:$0xff] %vm978, %v959
      %985 = vst.msk [vmem:[#allocation2 + $0x30] sm:$0xff] %vm978, %v960
      %986 = vst.msk [vmem:[#allocation2 + $0x38] sm:$0xff] %vm978, %v961
      %987 = vst.msk [vmem:[#allocation2 + $0x40] sm:$0xff] %vm978, %v962
      %988 = vst.msk [vmem:[#allocation2 + $0x48] sm:$0xff] %vm978, %v963
      %989 = vst.msk [vmem:[#allocation2 + $0x50] sm:$0xff] %vm978, %v964
      %990 = vst.msk [vmem:[#allocation2 + $0x58] sm:$0xff] %vm978, %v965
      %991 = vst.msk [vmem:[#allocation2 + $0x60] sm:$0xff] %vm978, %v966
      %992 = vst.msk [vmem:[#allocation2 + $0x68] sm:$0xff] %vm978, %v967
      %993 = vst.msk [vmem:[#allocation2 + $0x70] sm:$0xff] %vm978, %v968
      %994 = vst.msk [vmem:[#allocation2 + $0x78] sm:$0xff] %vm978, %v969
      %995 = vst.msk [vmem:[#allocation2 + $0x80] sm:$0xff] %vm978, %v970
      %996 = vst.msk [vmem:[#allocation2 + $0x88] sm:$0xff] %vm978, %v971
      %997 = vst.msk [vmem:[#allocation2 + $0x90] sm:$0xff] %vm978, %v972
      %998 = vst.msk [vmem:[#allocation2 + $0x98] sm:$0xff] %vm978, %v973
      %999 = vst.msk [vmem:[#allocation2 + $0xa0] sm:$0xff] %vm978, %v974
      %1000 = vst.msk [vmem:[#allocation2 + $0xa8] sm:$0xff] %vm978, %v975
      %1001 = vst.msk [vmem:[#allocation2 + $0xb0] sm:$0xff] %vm978, %v976
      %1002 = vst.msk [vmem:[#allocation2 + $0xb8] sm:$0xff] %vm978, %v977
      // Predicated region
      $region37: #{gcn_synthetic_forward.3} parent=31 // pred_check
        %p1003 = pneg %p206
      $region38: #{gcn_synthetic_forward.3} parent=31 // pred_check_branch
        %1005 = sbr.rel (%p1003) target = $region40
      $region39: #{gcn_synthetic_forward.3} parent=31 // pred_region
        %v1006 = vld [vmem:[#allocation2] sm:$0xff]
        %v1007 = vld [vmem:[#allocation2 + $0x8] sm:$0xff]
        %v1008 = vld [vmem:[#allocation2 + $0x10] sm:$0xff]
        %v1009 = vld [vmem:[#allocation2 + $0x18] sm:$0xff]
        %v1010 = vld [vmem:[#allocation2 + $0x20] sm:$0xff]
        %v1011 = vld [vmem:[#allocation2 + $0x28] sm:$0xff]
        %v1012 = vld [vmem:[#allocation2 + $0x30] sm:$0xff]
        %v1013 = vld [vmem:[#allocation2 + $0x38] sm:$0xff]
        %v1014 = vld [vmem:[#allocation2 + $0x40] sm:$0xff]
        %v1015 = vld [vmem:[#allocation2 + $0x48] sm:$0xff]
        %v1016 = vld [vmem:[#allocation2 + $0x50] sm:$0xff]
        %v1017 = vld [vmem:[#allocation2 + $0x58] sm:$0xff]
        %v1018 = vld [vmem:[#allocation2 + $0x60] sm:$0xff]
        %v1019 = vld [vmem:[#allocation2 + $0x68] sm:$0xff]
        %v1020 = vld [vmem:[#allocation2 + $0x70] sm:$0xff]
        %v1021 = vld [vmem:[#allocation2 + $0x78] sm:$0xff]
        %v1022 = vld [vmem:[#allocation2 + $0x80] sm:$0xff]
        %v1023 = vld [vmem:[#allocation2 + $0x88] sm:$0xff]
        %v1024 = vld [vmem:[#allocation2 + $0x90] sm:$0xff]
        %v1025 = vld [vmem:[#allocation2 + $0x98] sm:$0xff]
        %v1026 = vld [vmem:[#allocation2 + $0xa0] sm:$0xff]
        %v1027 = vld [vmem:[#allocation2 + $0xa8] sm:$0xff]
        %v1028 = vld [vmem:[#allocation2 + $0xb0] sm:$0xff]
        %v1029 = vld [vmem:[#allocation2 + $0xb8] sm:$0xff]
        %v1030 = vld [vmem:[%s2] sm:$0x1]
        %v1032 = vlaneseq
        %v1033 = vshrl.u32 %v1032, 7
        %v1034 = vsub.s32 0, %v1033
        %v1035 = vrot.slane %v1030, %v1034
        %v1037 = vadd.f32 %v1006, %v1035
        %v1038 = vadd.f32 %v1007, %v1035
        %v1039 = vadd.f32 %v1008, %v1035
        %v1040 = vadd.f32 %v1009, %v1035
        %v1041 = vadd.f32 %v1010, %v1035
        %v1042 = vadd.f32 %v1011, %v1035
        %v1043 = vadd.f32 %v1012, %v1035
        %v1044 = vadd.f32 %v1013, %v1035
        %v1045 = vadd.f32 %v1014, %v1035
        %v1046 = vadd.f32 %v1015, %v1035
        %v1047 = vadd.f32 %v1016, %v1035
        %v1048 = vadd.f32 %v1017, %v1035
        %v1049 = vadd.f32 %v1018, %v1035
        %v1050 = vadd.f32 %v1019, %v1035
        %v1051 = vadd.f32 %v1020, %v1035
        %v1052 = vadd.f32 %v1021, %v1035
        %v1053 = vadd.f32 %v1022, %v1035
        %v1054 = vadd.f32 %v1023, %v1035
        %v1055 = vadd.f32 %v1024, %v1035
        %v1056 = vadd.f32 %v1025, %v1035
        %v1057 = vadd.f32 %v1026, %v1035
        %v1058 = vadd.f32 %v1027, %v1035
        %v1059 = vadd.f32 %v1028, %v1035
        %v1060 = vadd.f32 %v1029, %v1035
        %v1061 = vmax.f32 %v1037, 0.0
        %v1062 = vmax.f32 %v1038, 0.0
        %v1063 = vmax.f32 %v1039, 0.0
        %v1064 = vmax.f32 %v1040, 0.0
        %v1065 = vmax.f32 %v1041, 0.0
        %v1066 = vmax.f32 %v1042, 0.0
        %v1067 = vmax.f32 %v1043, 0.0
        %v1068 = vmax.f32 %v1044, 0.0
        %v1069 = vmax.f32 %v1045, 0.0
        %v1070 = vmax.f32 %v1046, 0.0
        %v1071 = vmax.f32 %v1047, 0.0
        %v1072 = vmax.f32 %v1048, 0.0
        %v1073 = vmax.f32 %v1049, 0.0
        %v1074 = vmax.f32 %v1050, 0.0
        %v1075 = vmax.f32 %v1051, 0.0
        %v1076 = vmax.f32 %v1052, 0.0
        %v1077 = vmax.f32 %v1053, 0.0
        %v1078 = vmax.f32 %v1054, 0.0
        %v1079 = vmax.f32 %v1055, 0.0
        %v1080 = vmax.f32 %v1056, 0.0
        %v1081 = vmax.f32 %v1057, 0.0
        %v1082 = vmax.f32 %v1058, 0.0
        %v1083 = vmax.f32 %v1059, 0.0
        %v1084 = vmax.f32 %v1060, 0.0
        %v1085 = vpack.c.bf16 %v1062, %v1061
        %v1086 = vpack.c.bf16 %v1064, %v1063
        %v1087 = vpack.c.bf16 %v1066, %v1065
        %v1088 = vpack.c.bf16 %v1068, %v1067
        %v1089 = vpack.c.bf16 %v1070, %v1069
        %v1090 = vpack.c.bf16 %v1072, %v1071
        %v1091 = vpack.c.bf16 %v1074, %v1073
        %v1092 = vpack.c.bf16 %v1076, %v1075
        %v1093 = vpack.c.bf16 %v1078, %v1077
        %v1094 = vpack.c.bf16 %v1080, %v1079
        %v1095 = vpack.c.bf16 %v1082, %v1081
        %v1096 = vpack.c.bf16 %v1084, %v1083
        %v1109 = vunpack.c.l.b16 %v1085
        %v1110 = vunpack.c.h.b16 %v1085
        %v1111 = vunpack.c.l.b16 %v1086
        %v1112 = vunpack.c.h.b16 %v1086
        %v1113 = vunpack.c.l.b16 %v1087
        %v1114 = vunpack.c.h.b16 %v1087
        %v1115 = vunpack.c.l.b16 %v1088
        %v1116 = vunpack.c.h.b16 %v1088
        %v1117 = vunpack.c.l.b16 %v1089
        %v1118 = vunpack.c.h.b16 %v1089
        %v1119 = vunpack.c.l.b16 %v1090
        %v1120 = vunpack.c.h.b16 %v1090
        %v1121 = vunpack.c.l.b16 %v1091
        %v1122 = vunpack.c.h.b16 %v1091
        %v1123 = vunpack.c.l.b16 %v1092
        %v1124 = vunpack.c.h.b16 %v1092
        %v1125 = vunpack.c.l.b16 %v1093
        %v1126 = vunpack.c.h.b16 %v1093
        %v1127 = vunpack.c.l.b16 %v1094
        %v1128 = vunpack.c.h.b16 %v1094
        %v1129 = vunpack.c.l.b16 %v1095
        %v1130 = vunpack.c.h.b16 %v1095
        %v1131 = vunpack.c.l.b16 %v1096
        %v1132 = vunpack.c.h.b16 %v1096
        %v1133 = vpack.c.b16 %v1109, %v1109
        %v1134 = vpack.c.b16 %v1110, %v1110
        %v1135 = vpack.c.b16 %v1111, %v1111
        %v1136 = vpack.c.b16 %v1112, %v1112
        %v1137 = vpack.c.b16 %v1113, %v1113
        %v1138 = vpack.c.b16 %v1114, %v1114
        %v1139 = vpack.c.b16 %v1115, %v1115
        %v1140 = vpack.c.b16 %v1116, %v1116
        %v1141 = vpack.c.b16 %v1117, %v1117
        %v1142 = vpack.c.b16 %v1118, %v1118
        %v1143 = vpack.c.b16 %v1119, %v1119
        %v1144 = vpack.c.b16 %v1120, %v1120
        %v1145 = vpack.c.b16 %v1121, %v1121
        %v1146 = vpack.c.b16 %v1122, %v1122
        %v1147 = vpack.c.b16 %v1123, %v1123
        %v1148 = vpack.c.b16 %v1124, %v1124
        %v1149 = vpack.c.b16 %v1125, %v1125
        %v1150 = vpack.c.b16 %v1126, %v1126
        %v1151 = vpack.c.b16 %v1127, %v1127
        %v1152 = vpack.c.b16 %v1128, %v1128
        %v1153 = vpack.c.b16 %v1129, %v1129
        %v1154 = vpack.c.b16 %v1130, %v1130
        %v1155 = vpack.c.b16 %v1131, %v1131
        %v1156 = vpack.c.b16 %v1132, %v1132
        %vm1181 = vcmask 257024
        %1182 = vst.msk [vmem:[%s203] sm:$0xf] %vm1181, %v1133
        %1183 = vst.msk [vmem:[%s203 + $0x4] sm:$0xf] %vm1181, %v1134
        %1184 = vst.msk [vmem:[%s203 + $0x8] sm:$0xf] %vm1181, %v1135
        %1185 = vst.msk [vmem:[%s203 + $0xc] sm:$0xf] %vm1181, %v1136
        %1186 = vst.msk [vmem:[%s203 + $0x10] sm:$0xf] %vm1181, %v1137
        %1187 = vst.msk [vmem:[%s203 + $0x14] sm:$0xf] %vm1181, %v1138
        %1188 = vst.msk [vmem:[%s203 + $0x18] sm:$0xf] %vm1181, %v1139
        %1189 = vst.msk [vmem:[%s203 + $0x1c] sm:$0xf] %vm1181, %v1140
        %1190 = vst.msk [vmem:[%s203 + $0x20] sm:$0xf] %vm1181, %v1141
        %1191 = vst.msk [vmem:[%s203 + $0x24] sm:$0xf] %vm1181, %v1142
        %1192 = vst.msk [vmem:[%s203 + $0x28] sm:$0xf] %vm1181, %v1143
        %1193 = vst.msk [vmem:[%s203 + $0x2c] sm:$0xf] %vm1181, %v1144
        %1194 = vst.msk [vmem:[%s203 + $0x30] sm:$0xf] %vm1181, %v1145
        %1195 = vst.msk [vmem:[%s203 + $0x34] sm:$0xf] %vm1181, %v1146
        %1196 = vst.msk [vmem:[%s203 + $0x38] sm:$0xf] %vm1181, %v1147
        %1197 = vst.msk [vmem:[%s203 + $0x3c] sm:$0xf] %vm1181, %v1148
        %1198 = vst.msk [vmem:[%s203 + $0x40] sm:$0xf] %vm1181, %v1149
        %1199 = vst.msk [vmem:[%s203 + $0x44] sm:$0xf] %vm1181, %v1150
        %1200 = vst.msk [vmem:[%s203 + $0x48] sm:$0xf] %vm1181, %v1151
        %1201 = vst.msk [vmem:[%s203 + $0x4c] sm:$0xf] %vm1181, %v1152
        %1202 = vst.msk [vmem:[%s203 + $0x50] sm:$0xf] %vm1181, %v1153
        %1203 = vst.msk [vmem:[%s203 + $0x54] sm:$0xf] %vm1181, %v1154
        %1204 = vst.msk [vmem:[%s203 + $0x58] sm:$0xf] %vm1181, %v1155
        %1205 = vst.msk [vmem:[%s203 + $0x5c] sm:$0xf] %vm1181, %v1156
      $region40: #{gcn_synthetic_forward.3} parent=31 // pred_fallthru
        _
      %s1206 = smul.u32 24, %s18
      %p1207 = scmp.lt.s32.totalorder %s1206, 47
      %s1208 = scalar_select %p1207, %s1206, 47
      %s1209 = smul.addr %s1208, 4
      %s1210 = scalar_lea.vmem %s3, %s1209
      // Predicated region
      $region41: #{gcn_synthetic_forward.3} parent=31 // pred_check
        %p1211 = pneg %p114
      $region42: #{gcn_synthetic_forward.3} parent=31 // pred_check_branch
        %1213 = sbr.rel (%p1211) target = $region44
      $region43: #{gcn_synthetic_forward.3} parent=31 // pred_region
        %s1214 = smul.u32 24, %s18
      $region44: #{gcn_synthetic_forward.3} parent=31 // pred_fallthru
        _
    $region32: #{gcn_synthetic_forward.3} parent=5 // pred_fallthru
      _
    %p1215 = scmp.le.s32.totalorder 2, %s9
    // Predicated region
    $region45: #{gcn_synthetic_forward.3} parent=5 // pred_check
      %p1216 = pneg %p1215
    $region46: #{gcn_synthetic_forward.3} parent=5 // pred_check_branch
      %1218 = sbr.rel (%p1216) target = $region48
    $region47: #{gcn_synthetic_forward.3} parent=5 // pred_region
      %s1219 = ssub.s32 %s9, 2
      // Predicated region
      $region49: #{gcn_synthetic_forward.3} parent=47 // pred_check
        %p1220 = pneg %p120
      $region50: #{gcn_synthetic_forward.3} parent=47 // pred_check_branch
        %1222 = sbr.rel (%p1220) target = $region52
      $region51: #{gcn_synthetic_forward.3} parent=47 // pred_region
        %s1223 = smul.u32 24, %s20
        %p1224 = scmp.lt.s32.totalorder %s1223, 47
        %s1225 = scalar_select %p1224, %s1223, 47
        %s1226 = smul.addr %s1225, 4
        %s1227 = scalar_lea.vmem %s3, %s1226
      $region52: #{gcn_synthetic_forward.3} parent=47 // pred_fallthru
        _
    $region48: #{gcn_synthetic_forward.3} parent=5 // pred_fallthru
      _
  $region6: #{gcn_synthetic_forward.3} parent=0 // loop_footer
    %s13 = sadd.s32 1, %s9
  $region7: #{gcn_synthetic_forward.3} parent=0 // loop_footer_branch
    %8 = sbr.rel target = $region3
  $region8: #{gcn_synthetic_forward.3} parent=0 // loop_exit
    _

// kernel: gcn_synthetic_forward.5
$region0: #{gcn_synthetic_forward.5}
  #allocation0 [shape = 'u32[]', space=smem, size = 0x4, offset = 0x4, fixed_abs, tag = 'smem constant byte address 0x4 - core index']
  #allocation1 [shape = 'u32[144,128]{1,0:T(1,128)}', space=vmem, size = 0x12000, scoped, tag = 'internal scratch']
  #allocation2 [shape = 'f32[192,16]{1,0:T(8,128)}', space=vmem, size = 0x18000, scoped, tag = 'scratch operand']
  %s0 = inlined_call_operand.vmem [shape: bf16[384,16], index: 0, kind: input, shape index: {}]
  %s1 = inlined_call_operand.vmem [shape: bf16[384,384], index: 1, kind: input, shape index: {}]
  %s2 = inlined_call_operand.vmem [shape: bf16[384,32], index: 2, kind: input, shape index: {}]
  %s3 = inlined_call_operand.vmem [shape: bf16[384,32], index: 3, kind: input, shape index: {}]
  %s4 = inlined_call_operand.vmem [shape: f32[1,16], index: 4, kind: input, shape index: {}]
  %s5 = inlined_call_operand.vmem [shape: bf16[32,128], index: 5, kind: input, shape index: {}]
  %s6 = inlined_call_operand.vmem [shape: bf16[32,128], index: 6, kind: input, shape index: {}]
  %s7 = inlined_call_operand.vmem [shape: bf16[16,128], index: 7, kind: input, shape index: {}]
  %s8 = inlined_call_operand.vmem [shape: f32[1,128], index: 8, kind: input, shape index: {}]
  %s9 = inlined_call_operand.vmem [shape: f32[384,128], index: 9, kind: output, shape index: {}]
  %s10 = sld [smem:[#allocation0]]
  $region77: #{gcn_synthetic_forward.5} parent=0
    _
  %s12 = ssub.s32 1, %s10
  %s13 = scalar_select 0, %s12, %s10
  loop: start=0, step=1, limit=4
  $region2: #{gcn_synthetic_forward.5} parent=0 // loop_pre_header
    _
  $region3: #{gcn_synthetic_forward.5} parent=0 // loop_header
    %s15 = sphi 0, %s19
    %p16 = scmp.ge.s32.totalorder %s15, 4
    %s22 = sphi 0, %s34
    %s23 = sphi 0, %s30
    %s24 = sphi 0, %s22
    %s25 = sphi 0, %s23
    %s26 = sphi 0, %s24
    %s27 = sphi 0, %s25
    %s35 = sphi 0, %s35
    %s37 = sphi 0, %s35
    %s38 = sphi 0, %s37
    %s52 = sphi 0, %s38
    %s60 = sphi 0, %s62
    %s63 = sphi 0, %s60
    %s64 = sphi 0, %s63
    %s80 = sphi 0, %s64
    %s86 = sphi 0, %s88
    %s89 = sphi 0, %s86
    %s90 = sphi 0, %s89
    %s106 = sphi 0, %s90
    %s112 = sphi 0, %s114
    %s115 = sphi 0, %s112
    %s116 = sphi 0, %s115
    %s132 = sphi 0, %s116
    %s136 = sphi 0, %s136
    %s138 = sphi 0, %s136
    %s139 = sphi 0, %s138
    %s153 = sphi 0, %s139
    %s157 = sphi 0, %s157
    %s159 = sphi 0, %s157
    %s160 = sphi 0, %s159
    %s174 = sphi 0, %s160
    %s178 = sphi 0, %s178
    %s180 = sphi 0, %s178
    %s181 = sphi 0, %s180
    %s195 = sphi 0, %s181
    %s199 = sphi 0, %s199
    %s201 = sphi 0, %s199
    %s202 = sphi 0, %s201
    %s216 = sphi 0, %s202
    %s220 = sphi 0, %s220
    %s222 = sphi 0, %s220
    %s223 = sphi 0, %s222
    %s237 = sphi 0, %s223
    %s243 = sphi 0, %s245
    %s246 = sphi 0, %s243
    %s247 = sphi 0, %s246
    %s263 = sphi 0, %s247
  $region4: #{gcn_synthetic_forward.5} parent=0 // loop_header_branch
    %18 = sbr.rel (%p16) target = $region8
  $region5: #{gcn_synthetic_forward.5} parent=0 // loop_body
    %s20 = ssub.s32 %s15, 1
    %s21 = ssub.s32 %s15, 2
    %s28 = sadd.s32 1, %s23
    %p29 = scmp.ge.s32.totalorder %s28, 1
    %s30 = scalar_select %p29, 0, %s28
    %s31 = sadd.s32 1, %s22
    %s32 = scalar_select %p29, %s31, %s22
    %p33 = scmp.ge.s32.totalorder %s32, 2
    %s34 = scalar_select %p33, 0, %s32
    %s36 = sadd.s32 %s35, 1
    %p39 = scmp.eq.s32.totalorder %s15, 1
    %p40 = scmp.ne.s32.totalorder %s35, %s37
    %p41 = scmp.eq.s32.totalorder %s15, 0
    %p42 = por %p40, %p41
    %p43 = scmp.ne.s32.totalorder %s35, %s37
    %p44 = scmp.eq.s32.totalorder %s20, 1
    %p45 = por %p43, %p44
    %p46 = scmp.ne.s32.totalorder %s37, %s38
    %p47 = scmp.eq.s32.totalorder %s20, 0
    %p48 = por %p46, %p47
    %p49 = scmp.ne.s32.totalorder %s37, %s38
    %p50 = scmp.eq.s32.totalorder %s21, 1
    %p51 = por %p49, %p50
    %p53 = scmp.ne.s32.totalorder %s38, %s52
    %p54 = scmp.eq.s32.totalorder %s21, 0
    %p55 = por %p53, %p54
    %s56 = ssub.s32 %s22, %s34
    %s57 = ssub.s32 %s23, %s30
    %s58 = sor.u32 %s56, %s57
    %p59 = scmp.eq.s32.totalorder %s58, 0
    %s61 = sadd.s32 %s60, 1
    %s62 = scalar_select %p59, %s60, %s61
    %p65 = pneg %p59
    %p66 = scmp.eq.s32.totalorder %s15, 1
    %p67 = por %p65, %p66
    %p68 = scmp.ne.s32.totalorder %s60, %s63
    %p69 = scmp.eq.s32.totalorder %s15, 0
    %p70 = por %p68, %p69
    %p71 = scmp.ne.s32.totalorder %s60, %s63
    %p72 = scmp.eq.s32.totalorder %s20, 1
    %p73 = por %p71, %p72
    %p74 = scmp.ne.s32.totalorder %s63, %s64
    %p75 = scmp.eq.s32.totalorder %s20, 0
    %p76 = por %p74, %p75
    %p77 = scmp.ne.s32.totalorder %s63, %s64
    %p78 = scmp.eq.s32.totalorder %s21, 1
    %p79 = por %p77, %p78
    %p81 = scmp.ne.s32.totalorder %s64, %s80
    %p82 = scmp.eq.s32.totalorder %s21, 0
    %p83 = por %p81, %p82
    %s84 = ssub.s32 %s22, %s34
    %p85 = scmp.eq.s32.totalorder %s84, 0
    %s87 = sadd.s32 %s86, 1
    %s88 = scalar_select %p85, %s86, %s87
    %p91 = pneg %p85
    %p92 = scmp.eq.s32.totalorder %s15, 1
    %p93 = por %p91, %p92
    %p94 = scmp.ne.s32.totalorder %s86, %s89
    %p95 = scmp.eq.s32.totalorder %s15, 0
    %p96 = por %p94, %p95
    %p97 = scmp.ne.s32.totalorder %s86, %s89
    %p98 = scmp.eq.s32.totalorder %s20, 1
    %p99 = por %p97, %p98
    %p100 = scmp.ne.s32.totalorder %s89, %s90
    %p101 = scmp.eq.s32.totalorder %s20, 0
    %p102 = por %p100, %p101
    %p103 = scmp.ne.s32.totalorder %s89, %s90
    %p104 = scmp.eq.s32.totalorder %s21, 1
    %p105 = por %p103, %p104
    %p107 = scmp.ne.s32.totalorder %s90, %s106
    %p108 = scmp.eq.s32.totalorder %s21, 0
    %p109 = por %p107, %p108
    %s110 = ssub.s32 %s22, %s34
    %p111 = scmp.eq.s32.totalorder %s110, 0
    %s113 = sadd.s32 %s112, 1
    %s114 = scalar_select %p111, %s112, %s113
    %p117 = pneg %p111
    %p118 = scmp.eq.s32.totalorder %s15, 1
    %p119 = por %p117, %p118
    %p120 = scmp.ne.s32.totalorder %s112, %s115
    %p121 = scmp.eq.s32.totalorder %s15, 0
    %p122 = por %p120, %p121
    %p123 = scmp.ne.s32.totalorder %s112, %s115
    %p124 = scmp.eq.s32.totalorder %s20, 1
    %p125 = por %p123, %p124
    %p126 = scmp.ne.s32.totalorder %s115, %s116
    %p127 = scmp.eq.s32.totalorder %s20, 0
    %p128 = por %p126, %p127
    %p129 = scmp.ne.s32.totalorder %s115, %s116
    %p130 = scmp.eq.s32.totalorder %s21, 1
    %p131 = por %p129, %p130
    %p133 = scmp.ne.s32.totalorder %s116, %s132
    %p134 = scmp.eq.s32.totalorder %s21, 0
    %p135 = por %p133, %p134
    %s137 = sadd.s32 %s136, 1
    %p140 = scmp.eq.s32.totalorder %s15, 1
    %p141 = scmp.ne.s32.totalorder %s136, %s138
    %p142 = scmp.eq.s32.totalorder %s15, 0
    %p143 = por %p141, %p142
    %p144 = scmp.ne.s32.totalorder %s136, %s138
    %p145 = scmp.eq.s32.totalorder %s20, 1
    %p146 = por %p144, %p145
    %p147 = scmp.ne.s32.totalorder %s138, %s139
    %p148 = scmp.eq.s32.totalorder %s20, 0
    %p149 = por %p147, %p148
    %p150 = scmp.ne.s32.totalorder %s138, %s139
    %p151 = scmp.eq.s32.totalorder %s21, 1
    %p152 = por %p150, %p151
    %p154 = scmp.ne.s32.totalorder %s139, %s153
    %p155 = scmp.eq.s32.totalorder %s21, 0
    %p156 = por %p154, %p155
    %s158 = sadd.s32 %s157, 1
    %p161 = scmp.eq.s32.totalorder %s15, 1
    %p162 = scmp.ne.s32.totalorder %s157, %s159
    %p163 = scmp.eq.s32.totalorder %s15, 0
    %p164 = por %p162, %p163
    %p165 = scmp.ne.s32.totalorder %s157, %s159
    %p166 = scmp.eq.s32.totalorder %s20, 1
    %p167 = por %p165, %p166
    %p168 = scmp.ne.s32.totalorder %s159, %s160
    %p169 = scmp.eq.s32.totalorder %s20, 0
    %p170 = por %p168, %p169
    %p171 = scmp.ne.s32.totalorder %s159, %s160
    %p172 = scmp.eq.s32.totalorder %s21, 1
    %p173 = por %p171, %p172
    %p175 = scmp.ne.s32.totalorder %s160, %s174
    %p176 = scmp.eq.s32.totalorder %s21, 0
    %p177 = por %p175, %p176
    %s179 = sadd.s32 %s178, 1
    %p182 = scmp.eq.s32.totalorder %s15, 1
    %p183 = scmp.ne.s32.totalorder %s178, %s180
    %p184 = scmp.eq.s32.totalorder %s15, 0
    %p185 = por %p183, %p184
    %p186 = scmp.ne.s32.totalorder %s178, %s180
    %p187 = scmp.eq.s32.totalorder %s20, 1
    %p188 = por %p186, %p187
    %p189 = scmp.ne.s32.totalorder %s180, %s181
    %p190 = scmp.eq.s32.totalorder %s20, 0
    %p191 = por %p189, %p190
    %p192 = scmp.ne.s32.totalorder %s180, %s181
    %p193 = scmp.eq.s32.totalorder %s21, 1
    %p194 = por %p192, %p193
    %p196 = scmp.ne.s32.totalorder %s181, %s195
    %p197 = scmp.eq.s32.totalorder %s21, 0
    %p198 = por %p196, %p197
    %s200 = sadd.s32 %s199, 1
    %p203 = scmp.eq.s32.totalorder %s15, 1
    %p204 = scmp.ne.s32.totalorder %s199, %s201
    %p205 = scmp.eq.s32.totalorder %s15, 0
    %p206 = por %p204, %p205
    %p207 = scmp.ne.s32.totalorder %s199, %s201
    %p208 = scmp.eq.s32.totalorder %s20, 1
    %p209 = por %p207, %p208
    %p210 = scmp.ne.s32.totalorder %s201, %s202
    %p211 = scmp.eq.s32.totalorder %s20, 0
    %p212 = por %p210, %p211
    %p213 = scmp.ne.s32.totalorder %s201, %s202
    %p214 = scmp.eq.s32.totalorder %s21, 1
    %p215 = por %p213, %p214
    %p217 = scmp.ne.s32.totalorder %s202, %s216
    %p218 = scmp.eq.s32.totalorder %s21, 0
    %p219 = por %p217, %p218
    %s221 = sadd.s32 %s220, 1
    %p224 = scmp.eq.s32.totalorder %s15, 1
    %p225 = scmp.ne.s32.totalorder %s220, %s222
    %p226 = scmp.eq.s32.totalorder %s15, 0
    %p227 = por %p225, %p226
    %p228 = scmp.ne.s32.totalorder %s220, %s222
    %p229 = scmp.eq.s32.totalorder %s20, 1
    %p230 = por %p228, %p229
    %p231 = scmp.ne.s32.totalorder %s222, %s223
    %p232 = scmp.eq.s32.totalorder %s20, 0
    %p233 = por %p231, %p232
    %p234 = scmp.ne.s32.totalorder %s222, %s223
    %p235 = scmp.eq.s32.totalorder %s21, 1
    %p236 = por %p234, %p235
    %p238 = scmp.ne.s32.totalorder %s223, %s237
    %p239 = scmp.eq.s32.totalorder %s21, 0
    %p240 = por %p238, %p239
    %s241 = ssub.s32 %s22, %s34
    %p242 = scmp.eq.s32.totalorder %s241, 0
    %s244 = sadd.s32 %s243, 1
    %s245 = scalar_select %p242, %s243, %s244
    %p248 = pneg %p242
    %p249 = scmp.eq.s32.totalorder %s15, 1
    %p250 = por %p248, %p249
    %p251 = scmp.ne.s32.totalorder %s243, %s246
    %p252 = scmp.eq.s32.totalorder %s15, 0
    %p253 = por %p251, %p252
    %p254 = scmp.ne.s32.totalorder %s243, %s246
    %p255 = scmp.eq.s32.totalorder %s20, 1
    %p256 = por %p254, %p255
    %p257 = scmp.ne.s32.totalorder %s246, %s247
    %p258 = scmp.eq.s32.totalorder %s20, 0
    %p259 = por %p257, %p258
    %p260 = scmp.ne.s32.totalorder %s246, %s247
    %p261 = scmp.eq.s32.totalorder %s21, 1
    %p262 = por %p260, %p261
    %p264 = scmp.ne.s32.totalorder %s247, %s263
    %p265 = scmp.eq.s32.totalorder %s21, 0
    %p266 = por %p264, %p265
    %p267 = scmp.le.s32.totalorder 1, %s15
    %p268 = scmp.lt.s32.totalorder %s15, 3
    %p269 = pnand %p267, %p268
    %p270 = pneg %p269
    // Predicated region
    $region9: #{gcn_synthetic_forward.5} parent=5 // pred_check
      _
    $region10: #{gcn_synthetic_forward.5} parent=5 // pred_check_branch
      %272 = sbr.rel (%p269) target = $region12
    $region11: #{gcn_synthetic_forward.5} parent=5 // pred_region
      %s273 = ssub.s32 %s15, 1
      // Predicated region
      $region13: #{gcn_synthetic_forward.5} parent=11 // pred_check
        %p274 = pneg %p48
      $region14: #{gcn_synthetic_forward.5} parent=11 // pred_check_branch
        %276 = sbr.rel (%p274) target = $region16
      $region15: #{gcn_synthetic_forward.5} parent=11 // pred_region
        _
      $region16: #{gcn_synthetic_forward.5} parent=11 // pred_fallthru
        _
      // Predicated region
      $region17: #{gcn_synthetic_forward.5} parent=11 // pred_check
        %p277 = pneg %p149
      $region18: #{gcn_synthetic_forward.5} parent=11 // pred_check_branch
        %279 = sbr.rel (%p277) target = $region20
      $region19: #{gcn_synthetic_forward.5} parent=11 // pred_region
        _
      $region20: #{gcn_synthetic_forward.5} parent=11 // pred_fallthru
        _
      // Predicated region
      $region21: #{gcn_synthetic_forward.5} parent=11 // pred_check
        %p280 = pneg %p170
      $region22: #{gcn_synthetic_forward.5} parent=11 // pred_check_branch
        %282 = sbr.rel (%p280) target = $region24
      $region23: #{gcn_synthetic_forward.5} parent=11 // pred_region
        _
      $region24: #{gcn_synthetic_forward.5} parent=11 // pred_fallthru
        _
      // Predicated region
      $region25: #{gcn_synthetic_forward.5} parent=11 // pred_check
        %p283 = pneg %p191
      $region26: #{gcn_synthetic_forward.5} parent=11 // pred_check_branch
        %285 = sbr.rel (%p283) target = $region28
      $region27: #{gcn_synthetic_forward.5} parent=11 // pred_region
        _
      $region28: #{gcn_synthetic_forward.5} parent=11 // pred_fallthru
        _
      // Predicated region
      $region29: #{gcn_synthetic_forward.5} parent=11 // pred_check
        %p286 = pneg %p212
      $region30: #{gcn_synthetic_forward.5} parent=11 // pred_check_branch
        %288 = sbr.rel (%p286) target = $region32
      $region31: #{gcn_synthetic_forward.5} parent=11 // pred_region
        _
      $region32: #{gcn_synthetic_forward.5} parent=11 // pred_fallthru
        _
      // Predicated region
      $region33: #{gcn_synthetic_forward.5} parent=11 // pred_check
        %p289 = pneg %p233
      $region34: #{gcn_synthetic_forward.5} parent=11 // pred_check_branch
        %291 = sbr.rel (%p289) target = $region36
      $region35: #{gcn_synthetic_forward.5} parent=11 // pred_region
        _
      $region36: #{gcn_synthetic_forward.5} parent=11 // pred_fallthru
        _
    $region12: #{gcn_synthetic_forward.5} parent=5 // pred_fallthru
      _
    %p292 = scmp.lt.s32.totalorder %s15, 2
    // Predicated region
    $region37: #{gcn_synthetic_forward.5} parent=5 // pred_check
      %p293 = pneg %p292
    $region38: #{gcn_synthetic_forward.5} parent=5 // pred_check_branch
      %295 = sbr.rel (%p293) target = $region40
    $region39: #{gcn_synthetic_forward.5} parent=5 // pred_region
      // Predicated region
      $region41: #{gcn_synthetic_forward.5} parent=39 // pred_check
        %p296 = pneg %p70
      $region42: #{gcn_synthetic_forward.5} parent=39 // pred_check_branch
        %298 = sbr.rel (%p296) target = $region44
      $region43: #{gcn_synthetic_forward.5} parent=39 // pred_region
        %s299 = smul.u32 24, %s22
        %s300 = smul.u32 3, %s23
        %p301 = scmp.lt.s32.totalorder %s299, 47
        %s302 = scalar_select %p301, %s299, 47
        %p303 = scmp.lt.s32.totalorder %s300, 2
        %s304 = scalar_select %p303, %s300, 2
        %s305 = smul.addr %s302, 3
        %s306 = sadd.s32 %s304, %s305
        %s307 = smul.addr %s306, 4
        %s308 = scalar_lea.vmem %s1, %s307
        %s309 = smul.u32 24, %s22
        %s310 = smul.u32 3, %s23
      $region44: #{gcn_synthetic_forward.5} parent=39 // pred_fallthru
        _
      // Predicated region
      $region45: #{gcn_synthetic_forward.5} parent=39 // pred_check
        %p311 = pneg %p96
      $region46: #{gcn_synthetic_forward.5} parent=39 // pred_check_branch
        %313 = sbr.rel (%p311) target = $region48
      $region47: #{gcn_synthetic_forward.5} parent=39 // pred_region
        %s314 = smul.u32 24, %s22
        %p315 = scmp.lt.s32.totalorder %s314, 47
        %s316 = scalar_select %p315, %s314, 47
        %s317 = smul.addr %s316, 4
        %s318 = scalar_lea.vmem %s2, %s317
        %s319 = smul.u32 24, %s22
      $region48: #{gcn_synthetic_forward.5} parent=39 // pred_fallthru
        _
      // Predicated region
      $region49: #{gcn_synthetic_forward.5} parent=39 // pred_check
        %p320 = pneg %p122
      $region50: #{gcn_synthetic_forward.5} parent=39 // pred_check_branch
        %322 = sbr.rel (%p320) target = $region52
      $region51: #{gcn_synthetic_forward.5} parent=39 // pred_region
        %s323 = smul.u32 24, %s22
        %p324 = scmp.lt.s32.totalorder %s323, 47
        %s325 = scalar_select %p324, %s323, 47
        %s326 = smul.addr %s325, 4
        %s327 = scalar_lea.vmem %s3, %s326
        %s328 = smul.u32 24, %s22
      $region52: #{gcn_synthetic_forward.5} parent=39 // pred_fallthru
        _
    $region40: #{gcn_synthetic_forward.5} parent=5 // pred_fallthru
      _
    %p329 = scmp.le.s32.totalorder 1, %s15
    %p330 = scmp.lt.s32.totalorder %s15, 3
    %p331 = pnand %p329, %p330
    %p332 = pneg %p331
    // Predicated region
    $region53: #{gcn_synthetic_forward.5} parent=5 // pred_check
      _
    $region54: #{gcn_synthetic_forward.5} parent=5 // pred_check_branch
      %334 = sbr.rel (%p331) target = $region56
    $region55: #{gcn_synthetic_forward.5} parent=5 // pred_region
      %s335 = ssub.s32 %s15, 1
      %p336 = pneg %p48
      %p337 = pneg %p45
      %s338 = smul.u32 24, %s24
      %s339 = smul.u32 3, %s25
      %p340 = scmp.lt.s32.totalorder %s338, 47
      %s341 = scalar_select %p340, %s338, 47
      %p342 = scmp.lt.s32.totalorder %s339, 2
      %s343 = scalar_select %p342, %s339, 2
      %s344 = smul.addr %s341, 3
      %s345 = sadd.s32 %s343, %s344
      %s346 = smul.addr %s345, 4
      %s347 = scalar_lea.vmem %s1, %s346
      %p348 = pneg %p76
      %p349 = pneg %p73
      %s350 = smul.u32 24, %s24
      %p351 = scmp.lt.s32.totalorder %s350, 47
      %s352 = scalar_select %p351, %s350, 47
      %s353 = smul.addr %s352, 4
      %s354 = scalar_lea.vmem %s2, %s353
      %p355 = pneg %p102
      %p356 = pneg %p99
      %s357 = smul.u32 24, %s24
      %p358 = scmp.lt.s32.totalorder %s357, 47
      %s359 = scalar_select %p358, %s357, 47
      %s360 = smul.addr %s359, 4
      %s361 = scalar_lea.vmem %s3, %s360
      %p362 = pneg %p128
      %p363 = pneg %p125
      %p364 = pneg %p149
      %p365 = pneg %p146
      %p366 = pneg %p170
      %p367 = pneg %p167
      %p368 = pneg %p191
      %p369 = pneg %p188
      %p370 = pneg %p212
      %p371 = pneg %p209
      %p372 = pneg %p233
      %p373 = pneg %p230
      %p374 = pneg %p259
      %p375 = pneg %p256
      %s376 = smul.u32 24, %s24
      %p377 = scmp.lt.s32.totalorder %s376, 47
      %s378 = scalar_select %p377, %s376, 47
      %s379 = smul.addr %s378, 8
      %s380 = scalar_lea.vmem %s9, %s379
      %s381 = smul.u32 24, %s24
      %s382 = smul.u32 3, %s25
      %p383 = scmp.lt.s32.totalorder %s381, 47
      %s384 = scalar_select %p383, %s381, 47
      %p385 = scmp.lt.s32.totalorder %s382, 2
      %s386 = scalar_select %p385, %s382, 2
      %s387 = smul.addr %s384, 3
      %s388 = sadd.s32 %s386, %s387
      %s389 = smul.addr %s388, 4
      %s390 = scalar_lea.vmem %s1, %s389
      %s391 = smul.u32 24, %s24
      %s392 = smul.u32 3, %s25
      %s393 = smul.u32 24, %s24
      %p394 = scmp.lt.s32.totalorder %s393, 47
      %s395 = scalar_select %p394, %s393, 47
      %s396 = smul.addr %s395, 4
      %s397 = scalar_lea.vmem %s2, %s396
      %s398 = smul.u32 24, %s24
      %s399 = smul.u32 24, %s24
      %p400 = scmp.lt.s32.totalorder %s399, 47
      %s401 = scalar_select %p400, %s399, 47
      %s402 = smul.addr %s401, 4
      %s403 = scalar_lea.vmem %s3, %s402
      %s404 = smul.u32 24, %s24
      %s405 = smul.u32 24, %s24
      %p406 = scmp.lt.s32.totalorder %s405, 47
      %s407 = scalar_select %p406, %s405, 47
      %s408 = smul.addr %s407, 8
      %s409 = scalar_lea.vmem %s9, %s408
      %s410 = smul.u32 24, %s24
      %p412 = scmp.eq.s32.totalorder %s25, 0
      // Predicated region
      $region57: #{gcn_synthetic_forward.5} parent=55 // pred_check
        %p413 = pneg %p412
      $region58: #{gcn_synthetic_forward.5} parent=55 // pred_check_branch
        %415 = sbr.rel (%p413) target = $region60
      $region59: #{gcn_synthetic_forward.5} parent=55 // pred_region
        %vm416 = vcmask 130048
        %417 = vst.msk [vmem:[#allocation2] sm:$0xff] %vm416, 0.0
        %418 = vst.msk [vmem:[#allocation2 + $0x8] sm:$0xff] %vm416, 0.0
        %419 = vst.msk [vmem:[#allocation2 + $0x10] sm:$0xff] %vm416, 0.0
        %420 = vst.msk [vmem:[#allocation2 + $0x18] sm:$0xff] %vm416, 0.0
        %421 = vst.msk [vmem:[#allocation2 + $0x20] sm:$0xff] %vm416, 0.0
        %422 = vst.msk [vmem:[#allocation2 + $0x28] sm:$0xff] %vm416, 0.0
        %423 = vst.msk [vmem:[#allocation2 + $0x30] sm:$0xff] %vm416, 0.0
        %424 = vst.msk [vmem:[#allocation2 + $0x38] sm:$0xff] %vm416, 0.0
        %425 = vst.msk [vmem:[#allocation2 + $0x40] sm:$0xff] %vm416, 0.0
        %426 = vst.msk [vmem:[#allocation2 + $0x48] sm:$0xff] %vm416, 0.0
        %427 = vst.msk [vmem:[#allocation2 + $0x50] sm:$0xff] %vm416, 0.0
        %428 = vst.msk [vmem:[#allocation2 + $0x58] sm:$0xff] %vm416, 0.0
        %429 = vst.msk [vmem:[#allocation2 + $0x60] sm:$0xff] %vm416, 0.0
        %430 = vst.msk [vmem:[#allocation2 + $0x68] sm:$0xff] %vm416, 0.0
        %431 = vst.msk [vmem:[#allocation2 + $0x70] sm:$0xff] %vm416, 0.0
        %432 = vst.msk [vmem:[#allocation2 + $0x78] sm:$0xff] %vm416, 0.0
        %433 = vst.msk [vmem:[#allocation2 + $0x80] sm:$0xff] %vm416, 0.0
        %434 = vst.msk [vmem:[#allocation2 + $0x88] sm:$0xff] %vm416, 0.0
        %435 = vst.msk [vmem:[#allocation2 + $0x90] sm:$0xff] %vm416, 0.0
        %436 = vst.msk [vmem:[#allocation2 + $0x98] sm:$0xff] %vm416, 0.0
        %437 = vst.msk [vmem:[#allocation2 + $0xa0] sm:$0xff] %vm416, 0.0
        %438 = vst.msk [vmem:[#allocation2 + $0xa8] sm:$0xff] %vm416, 0.0
        %439 = vst.msk [vmem:[#allocation2 + $0xb0] sm:$0xff] %vm416, 0.0
        %440 = vst.msk [vmem:[#allocation2 + $0xb8] sm:$0xff] %vm416, 0.0
      $region60: #{gcn_synthetic_forward.5} parent=55 // pred_fallthru
        _
      %s441 = smul.u32 %s25, 384
      %s442 = sshra.s32 %s441, 3
      %s443 = sand.u32 %s441, 7
      %s444 = smul.addr %s442, 4
      %s445 = scalar_lea.vmem %s0, %s444
      %v446 = vld [vmem:[%s445] sm:$0xf]
      %v447 = vld [vmem:[%s445 + $0x4] sm:$0xf]
      %v448 = vld [vmem:[%s445 + $0x8] sm:$0xf]
      %v449 = vld [vmem:[%s445 + $0xc] sm:$0xf]
      %v450 = vld [vmem:[%s445 + $0x10] sm:$0xf]
      %v451 = vld [vmem:[%s445 + $0x14] sm:$0xf]
      %v452 = vld [vmem:[%s445 + $0x18] sm:$0xf]
      %v453 = vld [vmem:[%s445 + $0x1c] sm:$0xf]
      %v454 = vld [vmem:[%s445 + $0x20] sm:$0xf]
      %v455 = vld [vmem:[%s445 + $0x24] sm:$0xf]
      %v456 = vld [vmem:[%s445 + $0x28] sm:$0xf]
      %v457 = vld [vmem:[%s445 + $0x2c] sm:$0xf]
      %v458 = vld [vmem:[%s445 + $0x30] sm:$0xf]
      %v459 = vld [vmem:[%s445 + $0x34] sm:$0xf]
      %v460 = vld [vmem:[%s445 + $0x38] sm:$0xf]
      %v461 = vld [vmem:[%s445 + $0x3c] sm:$0xf]
      %v462 = vld [vmem:[%s445 + $0x40] sm:$0xf]
      %v463 = vld [vmem:[%s445 + $0x44] sm:$0xf]
      %v464 = vld [vmem:[%s445 + $0x48] sm:$0xf]
      %v465 = vld [vmem:[%s445 + $0x4c] sm:$0xf]
      %v466 = vld [vmem:[%s445 + $0x50] sm:$0xf]
      %v467 = vld [vmem:[%s445 + $0x54] sm:$0xf]
      %v468 = vld [vmem:[%s445 + $0x58] sm:$0xf]
      %v469 = vld [vmem:[%s445 + $0x5c] sm:$0xf]
      %v470 = vld [vmem:[%s445 + $0x60] sm:$0xf]
      %v471 = vld [vmem:[%s445 + $0x64] sm:$0xf]
      %v472 = vld [vmem:[%s445 + $0x68] sm:$0xf]
      %v473 = vld [vmem:[%s445 + $0x6c] sm:$0xf]
      %v474 = vld [vmem:[%s445 + $0x70] sm:$0xf]
      %v475 = vld [vmem:[%s445 + $0x74] sm:$0xf]
      %v476 = vld [vmem:[%s445 + $0x78] sm:$0xf]
      %v477 = vld [vmem:[%s445 + $0x7c] sm:$0xf]
      %v478 = vld [vmem:[%s445 + $0x80] sm:$0xf]
      %v479 = vld [vmem:[%s445 + $0x84] sm:$0xf]
      %v480 = vld [vmem:[%s445 + $0x88] sm:$0xf]
      %v481 = vld [vmem:[%s445 + $0x8c] sm:$0xf]
      %v482 = vld [vmem:[%s445 + $0x90] sm:$0xf]
      %v483 = vld [vmem:[%s445 + $0x94] sm:$0xf]
      %v484 = vld [vmem:[%s445 + $0x98] sm:$0xf]
      %v485 = vld [vmem:[%s445 + $0x9c] sm:$0xf]
      %v486 = vld [vmem:[%s445 + $0xa0] sm:$0xf]
      %v487 = vld [vmem:[%s445 + $0xa4] sm:$0xf]
      %v488 = vld [vmem:[%s445 + $0xa8] sm:$0xf]
      %v489 = vld [vmem:[%s445 + $0xac] sm:$0xf]
      %v490 = vld [vmem:[%s445 + $0xb0] sm:$0xf]
      %v491 = vld [vmem:[%s445 + $0xb4] sm:$0xf]
      %v492 = vld [vmem:[%s445 + $0xb8] sm:$0xf]
      %v493 = vld [vmem:[%s445 + $0xbc] sm:$0xf]
      %v494 = vld [vmem:[#allocation2] sm:$0xff]
      %v495 = vld [vmem:[#allocation2 + $0x8] sm:$0xff]
      %v496 = vld [vmem:[#allocation2 + $0x10] sm:$0xff]
      %v497 = vld [vmem:[#allocation2 + $0x18] sm:$0xff]
      %v498 = vld [vmem:[#allocation2 + $0x20] sm:$0xff]
      %v499 = vld [vmem:[#allocation2 + $0x28] sm:$0xff]
      %v500 = vld [vmem:[#allocation2 + $0x30] sm:$0xff]
      %v501 = vld [vmem:[#allocation2 + $0x38] sm:$0xff]
      %v502 = vld [vmem:[#allocation2 + $0x40] sm:$0xff]
      %v503 = vld [vmem:[#allocation2 + $0x48] sm:$0xff]
      %v504 = vld [vmem:[#allocation2 + $0x50] sm:$0xff]
      %v505 = vld [vmem:[#allocation2 + $0x58] sm:$0xff]
      %v506 = vld [vmem:[#allocation2 + $0x60] sm:$0xff]
      %v507 = vld [vmem:[#allocation2 + $0x68] sm:$0xff]
      %v508 = vld [vmem:[#allocation2 + $0x70] sm:$0xff]
      %v509 = vld [vmem:[#allocation2 + $0x78] sm:$0xff]
      %v510 = vld [vmem:[#allocation2 + $0x80] sm:$0xff]
      %v511 = vld [vmem:[#allocation2 + $0x88] sm:$0xff]
      %v512 = vld [vmem:[#allocation2 + $0x90] sm:$0xff]
      %v513 = vld [vmem:[#allocation2 + $0x98] sm:$0xff]
      %v514 = vld [vmem:[#allocation2 + $0xa0] sm:$0xff]
      %v515 = vld [vmem:[#allocation2 + $0xa8] sm:$0xff]
      %v516 = vld [vmem:[#allocation2 + $0xb0] sm:$0xff]
      %v517 = vld [vmem:[#allocation2 + $0xb8] sm:$0xff]
      %v518 = vld [vmem:[%s390] sm:$0xff]
      %v519 = vld [vmem:[%s390 + $0x8] sm:$0xf]
      %v520 = vld [vmem:[%s390 + $0xc] sm:$0xff]
      %v521 = vld [vmem:[%s390 + $0x14] sm:$0xf]
      %v522 = vld [vmem:[%s390 + $0x18] sm:$0xff]
      %v523 = vld [vmem:[%s390 + $0x20] sm:$0xf]
      %v524 = vld [vmem:[%s390 + $0x24] sm:$0xff]
      %v525 = vld [vmem:[%s390 + $0x2c] sm:$0xf]
      %v526 = vld [vmem:[%s390 + $0x30] sm:$0xff]
      %v527 = vld [vmem:[%s390 + $0x38] sm:$0xf]
      %v528 = vld [vmem:[%s390 + $0x3c] sm:$0xff]
      %v529 = vld [vmem:[%s390 + $0x44] sm:$0xf]
      %v530 = vld [vmem:[%s390 + $0x48] sm:$0xff]
      %v531 = vld [vmem:[%s390 + $0x50] sm:$0xf]
      %v532 = vld [vmem:[%s390 + $0x54] sm:$0xff]
      %v533 = vld [vmem:[%s390 + $0x5c] sm:$0xf]
      %v534 = vld [vmem:[%s390 + $0x60] sm:$0xff]
      %v535 = vld [vmem:[%s390 + $0x68] sm:$0xf]
      %v536 = vld [vmem:[%s390 + $0x6c] sm:$0xff]
      %v537 = vld [vmem:[%s390 + $0x74] sm:$0xf]
      %v538 = vld [vmem:[%s390 + $0x78] sm:$0xff]
      %v539 = vld [vmem:[%s390 + $0x80] sm:$0xf]
      %v540 = vld [vmem:[%s390 + $0x84] sm:$0xff]
      %v541 = vld [vmem:[%s390 + $0x8c] sm:$0xf]
      %v542 = vld [vmem:[%s390 + $0x90] sm:$0xff]
      %v543 = vld [vmem:[%s390 + $0x98] sm:$0xf]
      %v544 = vld [vmem:[%s390 + $0x9c] sm:$0xff]
      %v545 = vld [vmem:[%s390 + $0xa4] sm:$0xf]
      %v546 = vld [vmem:[%s390 + $0xa8] sm:$0xff]
      %v547 = vld [vmem:[%s390 + $0xb0] sm:$0xf]
      %v548 = vld [vmem:[%s390 + $0xb4] sm:$0xff]
      %v549 = vld [vmem:[%s390 + $0xbc] sm:$0xf]
      %v550 = vld [vmem:[%s390 + $0xc0] sm:$0xff]
      %v551 = vld [vmem:[%s390 + $0xc8] sm:$0xf]
      %v552 = vld [vmem:[%s390 + $0xcc] sm:$0xff]
      %v553 = vld [vmem:[%s390 + $0xd4] sm:$0xf]
      %v554 = vld [vmem:[%s390 + $0xd8] sm:$0xff]
      %v555 = vld [vmem:[%s390 + $0xe0] sm:$0xf]
      %v556 = vld [vmem:[%s390 + $0xe4] sm:$0xff]
      %v557 = vld [vmem:[%s390 + $0xec] sm:$0xf]
      %v558 = vld [vmem:[%s390 + $0xf0] sm:$0xff]
      %v559 = vld [vmem:[%s390 + $0xf8] sm:$0xf]
      %v560 = vld [vmem:[%s390 + $0xfc] sm:$0xff]
      %v561 = vld [vmem:[%s390 + $0x104] sm:$0xf]
      %v562 = vld [vmem:[%s390 + $0x108] sm:$0xff]
      %v563 = vld [vmem:[%s390 + $0x110] sm:$0xf]
      %v564 = vld [vmem:[%s390 + $0x114] sm:$0xff]
      %v565 = vld [vmem:[%s390 + $0x11c] sm:$0xf]
      %v614 = vunpack.c.l.b16 %v518
      %v615 = vunpack.c.h.b16 %v518
      %v616 = vunpack.c.l.b16 %v519
      %v617 = vunpack.c.l.b16 %v520
      %v618 = vunpack.c.h.b16 %v520
      %v619 = vunpack.c.l.b16 %v521
      %v620 = vunpack.c.l.b16 %v522
      %v621 = vunpack.c.h.b16 %v522
      %v622 = vunpack.c.l.b16 %v523
      %v623 = vunpack.c.l.b16 %v524
      %v624 = vunpack.c.h.b16 %v524
      %v625 = vunpack.c.l.b16 %v525
      %v626 = vunpack.c.l.b16 %v526
      %v627 = vunpack.c.h.b16 %v526
      %v628 = vunpack.c.l.b16 %v527
      %v629 = vunpack.c.l.b16 %v528
      %v630 = vunpack.c.h.b16 %v528
      %v631 = vunpack.c.l.b16 %v529
      %v632 = vunpack.c.l.b16 %v530
      %v633 = vunpack.c.h.b16 %v530
      %v634 = vunpack.c.l.b16 %v531
      %v635 = vunpack.c.l.b16 %v532
      %v636 = vunpack.c.h.b16 %v532
      %v637 = vunpack.c.l.b16 %v533
      %v638 = vunpack.c.l.b16 %v534
      %v639 = vunpack.c.h.b16 %v534
      %v640 = vunpack.c.l.b16 %v535
      %v641 = vunpack.c.l.b16 %v536
      %v642 = vunpack.c.h.b16 %v536
      %v643 = vunpack.c.l.b16 %v537
      %v644 = vunpack.c.l.b16 %v538
      %v645 = vunpack.c.h.b16 %v538
      %v646 = vunpack.c.l.b16 %v539
      %v647 = vunpack.c.l.b16 %v540
      %v648 = vunpack.c.h.b16 %v540
      %v649 = vunpack.c.l.b16 %v541
      %v650 = vunpack.c.l.b16 %v542
      %v651 = vunpack.c.h.b16 %v542
      %v652 = vunpack.c.l.b16 %v543
      %v653 = vunpack.c.l.b16 %v544
      %v654 = vunpack.c.h.b16 %v544
      %v655 = vunpack.c.l.b16 %v545
      %v656 = vunpack.c.l.b16 %v546
      %v657 = vunpack.c.h.b16 %v546
      %v658 = vunpack.c.l.b16 %v547
      %v659 = vunpack.c.l.b16 %v548
      %v660 = vunpack.c.h.b16 %v548
      %v661 = vunpack.c.l.b16 %v549
      %v662 = vunpack.c.l.b16 %v550
      %v663 = vunpack.c.h.b16 %v550
      %v664 = vunpack.c.l.b16 %v551
      %v665 = vunpack.c.l.b16 %v552
      %v666 = vunpack.c.h.b16 %v552
      %v667 = vunpack.c.l.b16 %v553
      %v668 = vunpack.c.l.b16 %v554
      %v669 = vunpack.c.h.b16 %v554
      %v670 = vunpack.c.l.b16 %v555
      %v671 = vunpack.c.l.b16 %v556
      %v672 = vunpack.c.h.b16 %v556
      %v673 = vunpack.c.l.b16 %v557
      %v674 = vunpack.c.l.b16 %v558
      %v675 = vunpack.c.h.b16 %v558
      %v676 = vunpack.c.l.b16 %v559
      %v677 = vunpack.c.l.b16 %v560
      %v678 = vunpack.c.h.b16 %v560
      %v679 = vunpack.c.l.b16 %v561
      %v680 = vunpack.c.l.b16 %v562
      %v681 = vunpack.c.h.b16 %v562
      %v682 = vunpack.c.l.b16 %v563
      %v683 = vunpack.c.l.b16 %v564
      %v684 = vunpack.c.h.b16 %v564
      %v685 = vunpack.c.l.b16 %v565
      %v686 = vpack.c.b16 %v617, %v614
      %v687 = vpack.c.b16 %v618, %v615
      %v688 = vpack.c.b16 %v619, %v616
      %v689 = vpack.c.b16 %v623, %v620
      %v690 = vpack.c.b16 %v624, %v621
      %v691 = vpack.c.b16 %v625, %v622
      %v692 = vpack.c.b16 %v629, %v626
      %v693 = vpack.c.b16 %v630, %v627
      %v694 = vpack.c.b16 %v631, %v628
      %v695 = vpack.c.b16 %v635, %v632
      %v696 = vpack.c.b16 %v636, %v633
      %v697 = vpack.c.b16 %v637, %v634
      %v698 = vpack.c.b16 %v641, %v638
      %v699 = vpack.c.b16 %v642, %v639
      %v700 = vpack.c.b16 %v643, %v640
      %v701 = vpack.c.b16 %v647, %v644
      %v702 = vpack.c.b16 %v648, %v645
      %v703 = vpack.c.b16 %v649, %v646
      %v704 = vpack.c.b16 %v653, %v650
      %v705 = vpack.c.b16 %v654, %v651
      %v706 = vpack.c.b16 %v655, %v652
      %v707 = vpack.c.b16 %v659, %v656
      %v708 = vpack.c.b16 %v660, %v657
      %v709 = vpack.c.b16 %v661, %v658
      %v710 = vpack.c.b16 %v665, %v662
      %v711 = vpack.c.b16 %v666, %v663
      %v712 = vpack.c.b16 %v667, %v664
      %v713 = vpack.c.b16 %v671, %v668
      %v714 = vpack.c.b16 %v672, %v669
      %v715 = vpack.c.b16 %v673, %v670
      %v716 = vpack.c.b16 %v677, %v674
      %v717 = vpack.c.b16 %v678, %v675
      %v718 = vpack.c.b16 %v679, %v676
      %v719 = vpack.c.b16 %v683, %v680
      %v720 = vpack.c.b16 %v684, %v681
      %v721 = vpack.c.b16 %v685, %v682
      %v806 = vunpack.c.l.b16 %v446
      %v807 = vunpack.c.l.b16 %v447
      %v808 = vunpack.c.l.b16 %v448
      %v809 = vunpack.c.l.b16 %v449
      %v810 = vunpack.c.l.b16 %v450
      %v811 = vunpack.c.l.b16 %v451
      %v812 = vunpack.c.l.b16 %v452
      %v813 = vunpack.c.l.b16 %v453
      %v814 = vunpack.c.l.b16 %v454
      %v815 = vunpack.c.l.b16 %v455
      %v816 = vunpack.c.l.b16 %v456
      %v817 = vunpack.c.l.b16 %v457
      %v818 = vunpack.c.l.b16 %v458
      %v819 = vunpack.c.l.b16 %v459
      %v820 = vunpack.c.l.b16 %v460
      %v821 = vunpack.c.l.b16 %v461
      %v822 = vunpack.c.l.b16 %v462
      %v823 = vunpack.c.l.b16 %v463
      %v824 = vunpack.c.l.b16 %v464
      %v825 = vunpack.c.l.b16 %v465
      %v826 = vunpack.c.l.b16 %v466
      %v827 = vunpack.c.l.b16 %v467
      %v828 = vunpack.c.l.b16 %v468
      %v829 = vunpack.c.l.b16 %v469
      %v830 = vunpack.c.l.b16 %v470
      %v831 = vunpack.c.l.b16 %v471
      %v832 = vunpack.c.l.b16 %v472
      %v833 = vunpack.c.l.b16 %v473
      %v834 = vunpack.c.l.b16 %v474
      %v835 = vunpack.c.l.b16 %v475
      %v836 = vunpack.c.l.b16 %v476
      %v837 = vunpack.c.l.b16 %v477
      %v838 = vunpack.c.l.b16 %v478
      %v839 = vunpack.c.l.b16 %v479
      %v840 = vunpack.c.l.b16 %v480
      %v841 = vunpack.c.l.b16 %v481
      %v842 = vunpack.c.l.b16 %v482
      %v843 = vunpack.c.l.b16 %v483
      %v844 = vunpack.c.l.b16 %v484
      %v845 = vunpack.c.l.b16 %v485
      %v846 = vunpack.c.l.b16 %v486
      %v847 = vunpack.c.l.b16 %v487
      %v848 = vunpack.c.l.b16 %v488
      %v849 = vunpack.c.l.b16 %v489
      %v850 = vunpack.c.l.b16 %v490
      %v851 = vunpack.c.l.b16 %v491
      %v852 = vunpack.c.l.b16 %v492
      %v853 = vunpack.c.l.b16 %v493
      %v854 = vpack.c.b16 %v807, %v806
      %v855 = vpack.c.b16 %v809, %v808
      %v856 = vpack.c.b16 %v811, %v810
      %v857 = vpack.c.b16 %v813, %v812
      %v858 = vpack.c.b16 %v815, %v814
      %v859 = vpack.c.b16 %v817, %v816
      %v860 = vpack.c.b16 %v819, %v818
      %v861 = vpack.c.b16 %v821, %v820
      %v862 = vpack.c.b16 %v823, %v822
      %v863 = vpack.c.b16 %v825, %v824
      %v864 = vpack.c.b16 %v827, %v826
      %v865 = vpack.c.b16 %v829, %v828
      %v866 = vpack.c.b16 %v831, %v830
      %v867 = vpack.c.b16 %v833, %v832
      %v868 = vpack.c.b16 %v835, %v834
      %v869 = vpack.c.b16 %v837, %v836
      %v870 = vpack.c.b16 %v839, %v838
      %v871 = vpack.c.b16 %v841, %v840
      %v872 = vpack.c.b16 %v843, %v842
      %v873 = vpack.c.b16 %v845, %v844
      %v874 = vpack.c.b16 %v847, %v846
      %v875 = vpack.c.b16 %v849, %v848
      %v876 = vpack.c.b16 %v851, %v850
      %v877 = vpack.c.b16 %v853, %v852
      %902 = vmatprep.subr.bf16.mxu0 0
      %903 = vmatpush1.bf16.msra.mxu0 %v861
      %904 = vmatprep.subr.bf16.mxu0 0
      %905 = vmatpush1.bf16.msra.mxu0 %v860
      %906 = vmatprep.subr.bf16.mxu0 0
      %907 = vmatpush1.bf16.msra.mxu0 %v859
      %908 = vmatprep.subr.bf16.mxu0 0
      %909 = vmatpush1.bf16.msra.mxu0 %v858
      %910 = vmatprep.subr.bf16.mxu0 0
      %911 = vmatpush1.bf16.msra.mxu0 %v857
      %912 = vmatprep.subr.bf16.mxu0 0
      %913 = vmatpush1.bf16.msra.mxu0 %v856
      %914 = vmatprep.subr.bf16.mxu0 0
      %915 = vmatpush1.bf16.msra.mxu0 %v855
      %916 = vmatprep.subr.bf16.mxu0 0
      %917 = vmatpush1.bf16.msra.mxu0 %v854
      %918 = vmatprep.subr.bf16.mxu0 0
      %919 = vmatpush2.bf16.msra.mxu0 %v869
      %920 = vmatprep.subr.bf16.mxu0 0
      %921 = vmatpush2.bf16.msra.mxu0 %v868
      %922 = vmatprep.subr.bf16.mxu0 0
      %923 = vmatpush2.bf16.msra.mxu0 %v867
      %924 = vmatprep.subr.bf16.mxu0 0
      %925 = vmatpush2.bf16.msra.mxu0 %v866
      %926 = vmatprep.subr.bf16.mxu0 0
      %927 = vmatpush2.bf16.msra.mxu0 %v865
      %928 = vmatprep.subr.bf16.mxu0 0
      %929 = vmatpush2.bf16.msra.mxu0 %v864
      %930 = vmatprep.subr.bf16.mxu0 0
      %931 = vmatpush2.bf16.msra.mxu0 %v863
      %932 = vmatprep.subr.bf16.mxu0 0
      %933 = vmatpush2.bf16.msra.mxu0 %v862
      %934 = vmatprep.mubr.bf16.mxu0 %v687
      %935 = vmatmul.mubr.bf16.gmra.mxu0 %v686
      %v936 = vpop.f32.mrf.mxu0
      %v937 = vadd.f32 0.0, %v936
      %v938 = vpop.f32.mrf.mxu0
      %v939 = vpop.f32.mrf.mxu0
      %v940 = vadd.f32 0.0, %v939
      %v941 = vpop.f32.mrf.mxu0
      %942 = vmatprep.mubr.bf16.mxu0 %v690
      %943 = vmatmul.mubr.bf16.gmra.mxu0 %v689
      %v944 = vpop.f32.mrf.mxu0
      %v945 = vadd.f32 0.0, %v944
      %v946 = vpop.f32.mrf.mxu0
      %v947 = vpop.f32.mrf.mxu0
      %v948 = vadd.f32 0.0, %v947
      %v949 = vpop.f32.mrf.mxu0
      %950 = vmatprep.mubr.bf16.mxu0 %v693
      %951 = vmatmul.mubr.bf16.gmra.mxu0 %v692
      %v952 = vpop.f32.mrf.mxu0
      %v953 = vadd.f32 0.0, %v952
      %v954 = vpop.f32.mrf.mxu0
      %v955 = vpop.f32.mrf.mxu0
      %v956 = vadd.f32 0.0, %v955
      %v957 = vpop.f32.mrf.mxu0
      %958 = vmatprep.mubr.bf16.mxu0 %v696
      %959 = vmatmul.mubr.bf16.gmra.mxu0 %v695
      %v960 = vpop.f32.mrf.mxu0
      %v961 = vadd.f32 0.0, %v960
      %v962 = vpop.f32.mrf.mxu0
      %v963 = vpop.f32.mrf.mxu0
      %v964 = vadd.f32 0.0, %v963
      %v965 = vpop.f32.mrf.mxu0
      %966 = vmatprep.mubr.bf16.mxu0 %v699
      %967 = vmatmul.mubr.bf16.gmra.mxu0 %v698
      %v968 = vpop.f32.mrf.mxu0
      %v969 = vadd.f32 0.0, %v968
      %v970 = vpop.f32.mrf.mxu0
      %v971 = vpop.f32.mrf.mxu0
      %v972 = vadd.f32 0.0, %v971
      %v973 = vpop.f32.mrf.mxu0
      %974 = vmatprep.mubr.bf16.mxu0 %v702
      %975 = vmatmul.mubr.bf16.gmra.mxu0 %v701
      %v976 = vpop.f32.mrf.mxu0
      %v977 = vadd.f32 0.0, %v976
      %v978 = vpop.f32.mrf.mxu0
      %v979 = vpop.f32.mrf.mxu0
      %v980 = vadd.f32 0.0, %v979
      %v981 = vpop.f32.mrf.mxu0
      %982 = vmatprep.mubr.bf16.mxu0 %v705
      %983 = vmatmul.mubr.bf16.gmra.mxu0 %v704
      %v984 = vpop.f32.mrf.mxu0
      %v985 = vadd.f32 0.0, %v984
      %v986 = vpop.f32.mrf.mxu0
      %v987 = vpop.f32.mrf.mxu0
      %v988 = vadd.f32 0.0, %v987
      %v989 = vpop.f32.mrf.mxu0
      %990 = vmatprep.mubr.bf16.mxu0 %v708
      %991 = vmatmul.mubr.bf16.gmra.mxu0 %v707
      %v992 = vpop.f32.mrf.mxu0
      %v993 = vadd.f32 0.0, %v992
      %v994 = vpop.f32.mrf.mxu0
      %v995 = vpop.f32.mrf.mxu0
      %v996 = vadd.f32 0.0, %v995
      %v997 = vpop.f32.mrf.mxu0
      %998 = vmatprep.mubr.bf16.mxu0 %v711
      %999 = vmatmul.mubr.bf16.gmra.mxu0 %v710
      %v1000 = vpop.f32.mrf.mxu0
      %v1001 = vadd.f32 0.0, %v1000
      %v1002 = vpop.f32.mrf.mxu0
      %v1003 = vpop.f32.mrf.mxu0
      %v1004 = vadd.f32 0.0, %v1003
      %v1005 = vpop.f32.mrf.mxu0
      %1006 = vmatprep.mubr.bf16.mxu0 %v714
      %1007 = vmatmul.mubr.bf16.gmra.mxu0 %v713
      %v1008 = vpop.f32.mrf.mxu0
      %v1009 = vadd.f32 0.0, %v1008
      %v1010 = vpop.f32.mrf.mxu0
      %v1011 = vpop.f32.mrf.mxu0
      %v1012 = vadd.f32 0.0, %v1011
      %v1013 = vpop.f32.mrf.mxu0
      %1014 = vmatprep.mubr.bf16.mxu0 %v717
      %1015 = vmatmul.mubr.bf16.gmra.mxu0 %v716
      %v1016 = vpop.f32.mrf.mxu0
      %v1017 = vadd.f32 0.0, %v1016
      %v1018 = vpop.f32.mrf.mxu0
      %v1019 = vpop.f32.mrf.mxu0
      %v1020 = vadd.f32 0.0, %v1019
      %v1021 = vpop.f32.mrf.mxu0
      %1022 = vmatprep.mubr.bf16.mxu0 %v720
      %1023 = vmatmul.mubr.bf16.gmra.mxu0 %v719
      %v1024 = vpop.f32.mrf.mxu0
      %v1025 = vadd.f32 0.0, %v1024
      %v1026 = vpop.f32.mrf.mxu0
      %v1027 = vpop.f32.mrf.mxu0
      %v1028 = vadd.f32 0.0, %v1027
      %v1029 = vpop.f32.mrf.mxu0
      %1030 = vdwg.mxu0
      %1031 = vmatprep.subr.bf16.mxu0 0
      %1032 = vmatpush1.bf16.msra.mxu0 %v877
      %1033 = vmatprep.subr.bf16.mxu0 0
      %1034 = vmatpush1.bf16.msra.mxu0 %v876
      %1035 = vmatprep.subr.bf16.mxu0 0
      %1036 = vmatpush1.bf16.msra.mxu0 %v875
      %1037 = vmatprep.subr.bf16.mxu0 0
      %1038 = vmatpush1.bf16.msra.mxu0 %v874
      %1039 = vmatprep.subr.bf16.mxu0 0
      %1040 = vmatpush1.bf16.msra.mxu0 %v873
      %1041 = vmatprep.subr.bf16.mxu0 0
      %1042 = vmatpush1.bf16.msra.mxu0 %v872
      %1043 = vmatprep.subr.bf16.mxu0 0
      %1044 = vmatpush1.bf16.msra.mxu0 %v871
      %1045 = vmatprep.subr.bf16.mxu0 0
      %1046 = vmatpush1.bf16.msra.mxu0 %v870
      %1047 = vmatprep.subr.bf16.mxu0 0
      %1048 = vmatpush2.bf16.msra.mxu0 0
      %1049 = vmatprep.subr.bf16.mxu0 0
      %1050 = vmatpush2.bf16.msra.mxu0 0
      %1051 = vmatprep.subr.bf16.mxu0 0
      %1052 = vmatpush2.bf16.msra.mxu0 0
      %1053 = vmatprep.subr.bf16.mxu0 0
      %1054 = vmatpush2.bf16.msra.mxu0 0
      %1055 = vmatprep.subr.bf16.mxu0 0
      %1056 = vmatpush2.bf16.msra.mxu0 0
      %1057 = vmatprep.subr.bf16.mxu0 0
      %1058 = vmatpush2.bf16.msra.mxu0 0
      %1059 = vmatprep.subr.bf16.mxu0 0
      %1060 = vmatpush2.bf16.msra.mxu0 0
      %1061 = vmatprep.subr.bf16.mxu0 0
      %1062 = vmatpush2.bf16.msra.mxu0 0
      %1063 = vmatprep.mubr.bf16.mxu0 0
      %1064 = vmatmul.mubr.bf16.gmra.mxu0 %v688
      %v1065 = vpop.f32.mrf.mxu0
      %v1066 = vadd.f32 %v937, %v1065
      %v1067 = vpop.f32.mrf.mxu0
      %v1068 = vpop.f32.mrf.mxu0
      %v1069 = vadd.f32 %v940, %v1068
      %v1070 = vpop.f32.mrf.mxu0
      %1071 = vmatprep.mubr.bf16.mxu0 0
      %1072 = vmatmul.mubr.bf16.gmra.mxu0 %v691
      %v1073 = vpop.f32.mrf.mxu0
      %v1074 = vadd.f32 %v945, %v1073
      %v1075 = vpop.f32.mrf.mxu0
      %v1076 = vpop.f32.mrf.mxu0
      %v1077 = vadd.f32 %v948, %v1076
      %v1078 = vpop.f32.mrf.mxu0
      %1079 = vmatprep.mubr.bf16.mxu0 0
      %1080 = vmatmul.mubr.bf16.gmra.mxu0 %v694
      %v1081 = vpop.f32.mrf.mxu0
      %v1082 = vadd.f32 %v953, %v1081
      %v1083 = vpop.f32.mrf.mxu0
      %v1084 = vpop.f32.mrf.mxu0
      %v1085 = vadd.f32 %v956, %v1084
      %v1086 = vpop.f32.mrf.mxu0
      %1087 = vmatprep.mubr.bf16.mxu0 0
      %1088 = vmatmul.mubr.bf16.gmra.mxu0 %v697
      %v1089 = vpop.f32.mrf.mxu0
      %v1090 = vadd.f32 %v961, %v1089
      %v1091 = vpop.f32.mrf.mxu0
      %v1092 = vpop.f32.mrf.mxu0
      %v1093 = vadd.f32 %v964, %v1092
      %v1094 = vpop.f32.mrf.mxu0
      %1095 = vmatprep.mubr.bf16.mxu0 0
      %1096 = vmatmul.mubr.bf16.gmra.mxu0 %v700
      %v1097 = vpop.f32.mrf.mxu0
      %v1098 = vadd.f32 %v969, %v1097
      %v1099 = vpop.f32.mrf.mxu0
      %v1100 = vpop.f32.mrf.mxu0
      %v1101 = vadd.f32 %v972, %v1100
      %v1102 = vpop.f32.mrf.mxu0
      %1103 = vmatprep.mubr.bf16.mxu0 0
      %1104 = vmatmul.mubr.bf16.gmra.mxu0 %v703
      %v1105 = vpop.f32.mrf.mxu0
      %v1106 = vadd.f32 %v977, %v1105
      %v1107 = vpop.f32.mrf.mxu0
      %v1108 = vpop.f32.mrf.mxu0
      %v1109 = vadd.f32 %v980, %v1108
      %v1110 = vpop.f32.mrf.mxu0
      %1111 = vmatprep.mubr.bf16.mxu0 0
      %1112 = vmatmul.mubr.bf16.gmra.mxu0 %v706
      %v1113 = vpop.f32.mrf.mxu0
      %v1114 = vadd.f32 %v985, %v1113
      %v1115 = vpop.f32.mrf.mxu0
      %v1116 = vpop.f32.mrf.mxu0
      %v1117 = vadd.f32 %v988, %v1116
      %v1118 = vpop.f32.mrf.mxu0
      %1119 = vmatprep.mubr.bf16.mxu0 0
      %1120 = vmatmul.mubr.bf16.gmra.mxu0 %v709
      %v1121 = vpop.f32.mrf.mxu0
      %v1122 = vadd.f32 %v993, %v1121
      %v1123 = vpop.f32.mrf.mxu0
      %v1124 = vpop.f32.mrf.mxu0
      %v1125 = vadd.f32 %v996, %v1124
      %v1126 = vpop.f32.mrf.mxu0
      %1127 = vmatprep.mubr.bf16.mxu0 0
      %1128 = vmatmul.mubr.bf16.gmra.mxu0 %v712
      %v1129 = vpop.f32.mrf.mxu0
      %v1130 = vadd.f32 %v1001, %v1129
      %v1131 = vpop.f32.mrf.mxu0
      %v1132 = vpop.f32.mrf.mxu0
      %v1133 = vadd.f32 %v1004, %v1132
      %v1134 = vpop.f32.mrf.mxu0
      %1135 = vmatprep.mubr.bf16.mxu0 0
      %1136 = vmatmul.mubr.bf16.gmra.mxu0 %v715
      %v1137 = vpop.f32.mrf.mxu0
      %v1138 = vadd.f32 %v1009, %v1137
      %v1139 = vpop.f32.mrf.mxu0
      %v1140 = vpop.f32.mrf.mxu0
      %v1141 = vadd.f32 %v1012, %v1140
      %v1142 = vpop.f32.mrf.mxu0
      %1143 = vmatprep.mubr.bf16.mxu0 0
      %1144 = vmatmul.mubr.bf16.gmra.mxu0 %v718
      %v1145 = vpop.f32.mrf.mxu0
      %v1146 = vadd.f32 %v1017, %v1145
      %v1147 = vpop.f32.mrf.mxu0
      %v1148 = vpop.f32.mrf.mxu0
      %v1149 = vadd.f32 %v1020, %v1148
      %v1150 = vpop.f32.mrf.mxu0
      %1151 = vmatprep.mubr.bf16.mxu0 0
      %1152 = vmatmul.mubr.bf16.gmra.mxu0 %v721
      %v1153 = vpop.f32.mrf.mxu0
      %v1154 = vadd.f32 %v1025, %v1153
      %v1155 = vpop.f32.mrf.mxu0
      %v1156 = vpop.f32.mrf.mxu0
      %v1157 = vadd.f32 %v1028, %v1156
      %v1158 = vpop.f32.mrf.mxu0
      %1159 = vdwg.mxu0
      %v1160 = vadd.f32 %v494, %v1066
      %v1161 = vadd.f32 %v495, %v1069
      %v1162 = vadd.f32 %v496, %v1074
      %v1163 = vadd.f32 %v497, %v1077
      %v1164 = vadd.f32 %v498, %v1082
      %v1165 = vadd.f32 %v499, %v1085
      %v1166 = vadd.f32 %v500, %v1090
      %v1167 = vadd.f32 %v501, %v1093
      %v1168 = vadd.f32 %v502, %v1098
      %v1169 = vadd.f32 %v503, %v1101
      %v1170 = vadd.f32 %v504, %v1106
      %v1171 = vadd.f32 %v505, %v1109
      %v1172 = vadd.f32 %v506, %v1114
      %v1173 = vadd.f32 %v507, %v1117
      %v1174 = vadd.f32 %v508, %v1122
      %v1175 = vadd.f32 %v509, %v1125
      %v1176 = vadd.f32 %v510, %v1130
      %v1177 = vadd.f32 %v511, %v1133
      %v1178 = vadd.f32 %v512, %v1138
      %v1179 = vadd.f32 %v513, %v1141
      %v1180 = vadd.f32 %v514, %v1146
      %v1181 = vadd.f32 %v515, %v1149
      %v1182 = vadd.f32 %v516, %v1154
      %v1183 = vadd.f32 %v517, %v1157
      %vm1184 = vcmask 130048
      %1185 = vst.msk [vmem:[#allocation2] sm:$0xff] %vm1184, %v1160
      %1186 = vst.msk [vmem:[#allocation2 + $0x8] sm:$0xff] %vm1184, %v1161
      %1187 = vst.msk [vmem:[#allocation2 + $0x10] sm:$0xff] %vm1184, %v1162
      %1188 = vst.msk [vmem:[#allocation2 + $0x18] sm:$0xff] %vm1184, %v1163
      %1189 = vst.msk [vmem:[#allocation2 + $0x20] sm:$0xff] %vm1184, %v1164
      %1190 = vst.msk [vmem:[#allocation2 + $0x28] sm:$0xff] %vm1184, %v1165
      %1191 = vst.msk [vmem:[#allocation2 + $0x30] sm:$0xff] %vm1184, %v1166
      %1192 = vst.msk [vmem:[#allocation2 + $0x38] sm:$0xff] %vm1184, %v1167
      %1193 = vst.msk [vmem:[#allocation2 + $0x40] sm:$0xff] %vm1184, %v1168
      %1194 = vst.msk [vmem:[#allocation2 + $0x48] sm:$0xff] %vm1184, %v1169
      %1195 = vst.msk [vmem:[#allocation2 + $0x50] sm:$0xff] %vm1184, %v1170
      %1196 = vst.msk [vmem:[#allocation2 + $0x58] sm:$0xff] %vm1184, %v1171
      %1197 = vst.msk [vmem:[#allocation2 + $0x60] sm:$0xff] %vm1184, %v1172
      %1198 = vst.msk [vmem:[#allocation2 + $0x68] sm:$0xff] %vm1184, %v1173
      %1199 = vst.msk [vmem:[#allocation2 + $0x70] sm:$0xff] %vm1184, %v1174
      %1200 = vst.msk [vmem:[#allocation2 + $0x78] sm:$0xff] %vm1184, %v1175
      %1201 = vst.msk [vmem:[#allocation2 + $0x80] sm:$0xff] %vm1184, %v1176
      %1202 = vst.msk [vmem:[#allocation2 + $0x88] sm:$0xff] %vm1184, %v1177
      %1203 = vst.msk [vmem:[#allocation2 + $0x90] sm:$0xff] %vm1184, %v1178
      %1204 = vst.msk [vmem:[#allocation2 + $0x98] sm:$0xff] %vm1184, %v1179
      %1205 = vst.msk [vmem:[#allocation2 + $0xa0] sm:$0xff] %vm1184, %v1180
      %1206 = vst.msk [vmem:[#allocation2 + $0xa8] sm:$0xff] %vm1184, %v1181
      %1207 = vst.msk [vmem:[#allocation2 + $0xb0] sm:$0xff] %vm1184, %v1182
      %1208 = vst.msk [vmem:[#allocation2 + $0xb8] sm:$0xff] %vm1184, %v1183
      // Predicated region
      $region61: #{gcn_synthetic_forward.5} parent=55 // pred_check
        %p1209 = pneg %p412
      $region62: #{gcn_synthetic_forward.5} parent=55 // pred_check_branch
        %1211 = sbr.rel (%p1209) target = $region64
      $region63: #{gcn_synthetic_forward.5} parent=55 // pred_region
        %v1212 = vld [vmem:[#allocation2] sm:$0xff]
        %v1213 = vld [vmem:[#allocation2 + $0x8] sm:$0xff]
        %v1214 = vld [vmem:[#allocation2 + $0x10] sm:$0xff]
        %v1215 = vld [vmem:[#allocation2 + $0x18] sm:$0xff]
        %v1216 = vld [vmem:[#allocation2 + $0x20] sm:$0xff]
        %v1217 = vld [vmem:[#allocation2 + $0x28] sm:$0xff]
        %v1218 = vld [vmem:[#allocation2 + $0x30] sm:$0xff]
        %v1219 = vld [vmem:[#allocation2 + $0x38] sm:$0xff]
        %v1220 = vld [vmem:[#allocation2 + $0x40] sm:$0xff]
        %v1221 = vld [vmem:[#allocation2 + $0x48] sm:$0xff]
        %v1222 = vld [vmem:[#allocation2 + $0x50] sm:$0xff]
        %v1223 = vld [vmem:[#allocation2 + $0x58] sm:$0xff]
        %v1224 = vld [vmem:[#allocation2 + $0x60] sm:$0xff]
        %v1225 = vld [vmem:[#allocation2 + $0x68] sm:$0xff]
        %v1226 = vld [vmem:[#allocation2 + $0x70] sm:$0xff]
        %v1227 = vld [vmem:[#allocation2 + $0x78] sm:$0xff]
        %v1228 = vld [vmem:[#allocation2 + $0x80] sm:$0xff]
        %v1229 = vld [vmem:[#allocation2 + $0x88] sm:$0xff]
        %v1230 = vld [vmem:[#allocation2 + $0x90] sm:$0xff]
        %v1231 = vld [vmem:[#allocation2 + $0x98] sm:$0xff]
        %v1232 = vld [vmem:[#allocation2 + $0xa0] sm:$0xff]
        %v1233 = vld [vmem:[#allocation2 + $0xa8] sm:$0xff]
        %v1234 = vld [vmem:[#allocation2 + $0xb0] sm:$0xff]
        %v1235 = vld [vmem:[#allocation2 + $0xb8] sm:$0xff]
        %v1236 = vld [vmem:[%s4] sm:$0x1]
        %v1238 = vlaneseq
        %v1239 = vshrl.u32 %v1238, 7
        %v1240 = vsub.s32 0, %v1239
        %v1241 = vrot.slane %v1236, %v1240
        %v1243 = vadd.f32 %v1212, %v1241
        %v1244 = vadd.f32 %v1213, %v1241
        %v1245 = vadd.f32 %v1214, %v1241
        %v1246 = vadd.f32 %v1215, %v1241
        %v1247 = vadd.f32 %v1216, %v1241
        %v1248 = vadd.f32 %v1217, %v1241
        %v1249 = vadd.f32 %v1218, %v1241
        %v1250 = vadd.f32 %v1219, %v1241
        %v1251 = vadd.f32 %v1220, %v1241
        %v1252 = vadd.f32 %v1221, %v1241
        %v1253 = vadd.f32 %v1222, %v1241
        %v1254 = vadd.f32 %v1223, %v1241
        %v1255 = vadd.f32 %v1224, %v1241
        %v1256 = vadd.f32 %v1225, %v1241
        %v1257 = vadd.f32 %v1226, %v1241
        %v1258 = vadd.f32 %v1227, %v1241
        %v1259 = vadd.f32 %v1228, %v1241
        %v1260 = vadd.f32 %v1229, %v1241
        %v1261 = vadd.f32 %v1230, %v1241
        %v1262 = vadd.f32 %v1231, %v1241
        %v1263 = vadd.f32 %v1232, %v1241
        %v1264 = vadd.f32 %v1233, %v1241
        %v1265 = vadd.f32 %v1234, %v1241
        %v1266 = vadd.f32 %v1235, %v1241
        %v1267 = vld [vmem:[%s397] sm:$0xf]
        %v1268 = vld [vmem:[%s397 + $0x4] sm:$0xf]
        %v1269 = vld [vmem:[%s397 + $0x8] sm:$0xf]
        %v1270 = vld [vmem:[%s397 + $0xc] sm:$0xf]
        %v1271 = vld [vmem:[%s397 + $0x10] sm:$0xf]
        %v1272 = vld [vmem:[%s397 + $0x14] sm:$0xf]
        %v1273 = vld [vmem:[%s397 + $0x18] sm:$0xf]
        %v1274 = vld [vmem:[%s397 + $0x1c] sm:$0xf]
        %v1275 = vld [vmem:[%s397 + $0x20] sm:$0xf]
        %v1276 = vld [vmem:[%s397 + $0x24] sm:$0xf]
        %v1277 = vld [vmem:[%s397 + $0x28] sm:$0xf]
        %v1278 = vld [vmem:[%s397 + $0x2c] sm:$0xf]
        %v1279 = vld [vmem:[%s397 + $0x30] sm:$0xf]
        %v1280 = vld [vmem:[%s397 + $0x34] sm:$0xf]
        %v1281 = vld [vmem:[%s397 + $0x38] sm:$0xf]
        %v1282 = vld [vmem:[%s397 + $0x3c] sm:$0xf]
        %v1283 = vld [vmem:[%s397 + $0x40] sm:$0xf]
        %v1284 = vld [vmem:[%s397 + $0x44] sm:$0xf]
        %v1285 = vld [vmem:[%s397 + $0x48] sm:$0xf]
        %v1286 = vld [vmem:[%s397 + $0x4c] sm:$0xf]
        %v1287 = vld [vmem:[%s397 + $0x50] sm:$0xf]
        %v1288 = vld [vmem:[%s397 + $0x54] sm:$0xf]
        %v1289 = vld [vmem:[%s397 + $0x58] sm:$0xf]
        %v1290 = vld [vmem:[%s397 + $0x5c] sm:$0xf]
        %v1291 = vld [vmem:[%s5] sm:$0xf]
        %v1292 = vld [vmem:[%s5 + $0x4] sm:$0xf]
        %v1293 = vld [vmem:[%s5 + $0x8] sm:$0xf]
        %v1294 = vld [vmem:[%s5 + $0xc] sm:$0xf]
        %v1295 = vld [vmem:[%s403] sm:$0xf]
        %v1296 = vld [vmem:[%s403 + $0x4] sm:$0xf]
        %v1297 = vld [vmem:[%s403 + $0x8] sm:$0xf]
        %v1298 = vld [vmem:[%s403 + $0xc] sm:$0xf]
        %v1299 = vld [vmem:[%s403 + $0x10] sm:$0xf]
        %v1300 = vld [vmem:[%s403 + $0x14] sm:$0xf]
        %v1301 = vld [vmem:[%s403 + $0x18] sm:$0xf]
        %v1302 = vld [vmem:[%s403 + $0x1c] sm:$0xf]
        %v1303 = vld [vmem:[%s403 + $0x20] sm:$0xf]
        %v1304 = vld [vmem:[%s403 + $0x24] sm:$0xf]
        %v1305 = vld [vmem:[%s403 + $0x28] sm:$0xf]
        %v1306 = vld [vmem:[%s403 + $0x2c] sm:$0xf]
        %v1307 = vld [vmem:[%s403 + $0x30] sm:$0xf]
        %v1308 = vld [vmem:[%s403 + $0x34] sm:$0xf]
        %v1309 = vld [vmem:[%s403 + $0x38] sm:$0xf]
        %v1310 = vld [vmem:[%s403 + $0x3c] sm:$0xf]
        %v1311 = vld [vmem:[%s403 + $0x40] sm:$0xf]
        %v1312 = vld [vmem:[%s403 + $0x44] sm:$0xf]
        %v1313 = vld [vmem:[%s403 + $0x48] sm:$0xf]
        %v1314 = vld [vmem:[%s403 + $0x4c] sm:$0xf]
        %v1315 = vld [vmem:[%s403 + $0x50] sm:$0xf]
        %v1316 = vld [vmem:[%s403 + $0x54] sm:$0xf]
        %v1317 = vld [vmem:[%s403 + $0x58] sm:$0xf]
        %v1318 = vld [vmem:[%s403 + $0x5c] sm:$0xf]
        %v1319 = vld [vmem:[%s6] sm:$0xf]
        %v1320 = vld [vmem:[%s6 + $0x4] sm:$0xf]
        %v1321 = vld [vmem:[%s6 + $0x8] sm:$0xf]
        %v1322 = vld [vmem:[%s6 + $0xc] sm:$0xf]
        %v1347 = vunpack.c.l.b16 %v1295
        %v1348 = vunpack.c.l.b16 %v1296
        %v1349 = vunpack.c.l.b16 %v1297
        %v1350 = vunpack.c.l.b16 %v1298
        %v1351 = vunpack.c.l.b16 %v1299
        %v1352 = vunpack.c.l.b16 %v1300
        %v1353 = vunpack.c.l.b16 %v1301
        %v1354 = vunpack.c.l.b16 %v1302
        %v1355 = vunpack.c.l.b16 %v1303
        %v1356 = vunpack.c.l.b16 %v1304
        %v1357 = vunpack.c.l.b16 %v1305
        %v1358 = vunpack.c.l.b16 %v1306
        %v1359 = vunpack.c.l.b16 %v1307
        %v1360 = vunpack.c.l.b16 %v1308
        %v1361 = vunpack.c.l.b16 %v1309
        %v1362 = vunpack.c.l.b16 %v1310
        %v1363 = vunpack.c.l.b16 %v1311
        %v1364 = vunpack.c.l.b16 %v1312
        %v1365 = vunpack.c.l.b16 %v1313
        %v1366 = vunpack.c.l.b16 %v1314
        %v1367 = vunpack.c.l.b16 %v1315
        %v1368 = vunpack.c.l.b16 %v1316
        %v1369 = vunpack.c.l.b16 %v1317
        %v1370 = vunpack.c.l.b16 %v1318
        %v1371 = vpack.c.b16 %v1348, %v1347
        %v1372 = vpack.c.b16 %v1350, %v1349
        %v1373 = vpack.c.b16 %v1352, %v1351
        %v1374 = vpack.c.b16 %v1354, %v1353
        %v1375 = vpack.c.b16 %v1356, %v1355
        %v1376 = vpack.c.b16 %v1358, %v1357
        %v1377 = vpack.c.b16 %v1360, %v1359
        %v1378 = vpack.c.b16 %v1362, %v1361
        %v1379 = vpack.c.b16 %v1364, %v1363
        %v1380 = vpack.c.b16 %v1366, %v1365
        %v1381 = vpack.c.b16 %v1368, %v1367
        %v1382 = vpack.c.b16 %v1370, %v1369
        %v1387 = vunpack.c.l.b16 %v1319
        %v1388 = vunpack.c.l.b16 %v1320
        %v1389 = vunpack.c.l.b16 %v1321
        %v1390 = vunpack.c.l.b16 %v1322
        %v1391 = vpack.c.b16 %v1388, %v1387
        %v1392 = vpack.c.b16 %v1390, %v1389
        %vm1395 = vcmask 261120
        %v1397 = vsel %vm1395, %v1371, 0
        %v1400 = vsel %vm1395, %v1372, 0
        %v1403 = vsel %vm1395, %v1373, 0
        %v1406 = vsel %vm1395, %v1374, 0
        %v1409 = vsel %vm1395, %v1375, 0
        %v1412 = vsel %vm1395, %v1376, 0
        %v1415 = vsel %vm1395, %v1377, 0
        %v1418 = vsel %vm1395, %v1378, 0
        %v1421 = vsel %vm1395, %v1379, 0
        %v1424 = vsel %vm1395, %v1380, 0
        %v1427 = vsel %vm1395, %v1381, 0
        %v1430 = vsel %vm1395, %v1382, 0
        %1432 = vmatprep.subr.bf16.mxu0 0
        %1433 = vmatpush1.bf16.msra.mxu0 0
        %1434 = vmatprep.subr.bf16.mxu0 0
        %1435 = vmatpush1.bf16.msra.mxu0 0
        %1436 = vmatprep.subr.bf16.mxu0 0
        %1437 = vmatpush1.bf16.msra.mxu0 0
        %1438 = vmatprep.subr.bf16.mxu0 0
        %1439 = vmatpush1.bf16.msra.mxu0 0
        %1440 = vmatprep.subr.bf16.mxu0 0
        %1441 = vmatpush1.bf16.msra.mxu0 0
        %1442 = vmatprep.subr.bf16.mxu0 0
        %1443 = vmatpush1.bf16.msra.mxu0 0
        %1444 = vmatprep.subr.bf16.mxu0 0
        %1445 = vmatpush1.bf16.msra.mxu0 %v1392
        %1446 = vmatprep.subr.bf16.mxu0 0
        %1447 = vmatpush1.bf16.msra.mxu0 %v1391
        %1448 = vmatprep.subr.bf16.mxu0 0
        %1449 = vmatpush2.bf16.msra.mxu0 0
        %1450 = vmatprep.subr.bf16.mxu0 0
        %1451 = vmatpush2.bf16.msra.mxu0 0
        %1452 = vmatprep.subr.bf16.mxu0 0
        %1453 = vmatpush2.bf16.msra.mxu0 0
        %1454 = vmatprep.subr.bf16.mxu0 0
        %1455 = vmatpush2.bf16.msra.mxu0 0
        %1456 = vmatprep.subr.bf16.mxu0 0
        %1457 = vmatpush2.bf16.msra.mxu0 0
        %1458 = vmatprep.subr.bf16.mxu0 0
        %1459 = vmatpush2.bf16.msra.mxu0 0
        %1460 = vmatprep.subr.bf16.mxu0 0
        %1461 = vmatpush2.bf16.msra.mxu0 0
        %1462 = vmatprep.subr.bf16.mxu0 0
        %1463 = vmatpush2.bf16.msra.mxu0 0
        %1464 = vmatprep.mubr.bf16.mxu0 0
        %1465 = vmatmul.mubr.bf16.gmra.mxu0 %v1397
        %v1466 = vpop.f32.mrf.mxu0
        %v1467 = vadd.f32 0.0, %v1466
        %v1468 = vpop.f32.mrf.mxu0
        %v1469 = vpop.f32.mrf.mxu0
        %v1470 = vadd.f32 0.0, %v1469
        %v1471 = vpop.f32.mrf.mxu0
        %1472 = vmatprep.mubr.bf16.mxu0 0
        %1473 = vmatmul.mubr.bf16.gmra.mxu0 %v1400
        %v1474 = vpop.f32.mrf.mxu0
        %v1475 = vadd.f32 0.0, %v1474
        %v1476 = vpop.f32.mrf.mxu0
        %v1477 = vpop.f32.mrf.mxu0
        %v1478 = vadd.f32 0.0, %v1477
        %v1479 = vpop.f32.mrf.mxu0
        %1480 = vmatprep.mubr.bf16.mxu0 0
        %1481 = vmatmul.mubr.bf16.gmra.mxu0 %v1403
        %v1482 = vpop.f32.mrf.mxu0
        %v1483 = vadd.f32 0.0, %v1482
        %v1484 = vpop.f32.mrf.mxu0
        %v1485 = vpop.f32.mrf.mxu0
        %v1486 = vadd.f32 0.0, %v1485
        %v1487 = vpop.f32.mrf.mxu0
        %1488 = vmatprep.mubr.bf16.mxu0 0
        %1489 = vmatmul.mubr.bf16.gmra.mxu0 %v1406
        %v1490 = vpop.f32.mrf.mxu0
        %v1491 = vadd.f32 0.0, %v1490
        %v1492 = vpop.f32.mrf.mxu0
        %v1493 = vpop.f32.mrf.mxu0
        %v1494 = vadd.f32 0.0, %v1493
        %v1495 = vpop.f32.mrf.mxu0
        %1496 = vmatprep.mubr.bf16.mxu0 0
        %1497 = vmatmul.mubr.bf16.gmra.mxu0 %v1409
        %v1498 = vpop.f32.mrf.mxu0
        %v1499 = vadd.f32 0.0, %v1498
        %v1500 = vpop.f32.mrf.mxu0
        %v1501 = vpop.f32.mrf.mxu0
        %v1502 = vadd.f32 0.0, %v1501
        %v1503 = vpop.f32.mrf.mxu0
        %1504 = vmatprep.mubr.bf16.mxu0 0
        %1505 = vmatmul.mubr.bf16.gmra.mxu0 %v1412
        %v1506 = vpop.f32.mrf.mxu0
        %v1507 = vadd.f32 0.0, %v1506
        %v1508 = vpop.f32.mrf.mxu0
        %v1509 = vpop.f32.mrf.mxu0
        %v1510 = vadd.f32 0.0, %v1509
        %v1511 = vpop.f32.mrf.mxu0
        %1512 = vmatprep.mubr.bf16.mxu0 0
        %1513 = vmatmul.mubr.bf16.gmra.mxu0 %v1415
        %v1514 = vpop.f32.mrf.mxu0
        %v1515 = vadd.f32 0.0, %v1514
        %v1516 = vpop.f32.mrf.mxu0
        %v1517 = vpop.f32.mrf.mxu0
        %v1518 = vadd.f32 0.0, %v1517
        %v1519 = vpop.f32.mrf.mxu0
        %1520 = vmatprep.mubr.bf16.mxu0 0
        %1521 = vmatmul.mubr.bf16.gmra.mxu0 %v1418
        %v1522 = vpop.f32.mrf.mxu0
        %v1523 = vadd.f32 0.0, %v1522
        %v1524 = vpop.f32.mrf.mxu0
        %v1525 = vpop.f32.mrf.mxu0
        %v1526 = vadd.f32 0.0, %v1525
        %v1527 = vpop.f32.mrf.mxu0
        %1528 = vmatprep.mubr.bf16.mxu0 0
        %1529 = vmatmul.mubr.bf16.gmra.mxu0 %v1421
        %v1530 = vpop.f32.mrf.mxu0
        %v1531 = vadd.f32 0.0, %v1530
        %v1532 = vpop.f32.mrf.mxu0
        %v1533 = vpop.f32.mrf.mxu0
        %v1534 = vadd.f32 0.0, %v1533
        %v1535 = vpop.f32.mrf.mxu0
        %1536 = vmatprep.mubr.bf16.mxu0 0
        %1537 = vmatmul.mubr.bf16.gmra.mxu0 %v1424
        %v1538 = vpop.f32.mrf.mxu0
        %v1539 = vadd.f32 0.0, %v1538
        %v1540 = vpop.f32.mrf.mxu0
        %v1541 = vpop.f32.mrf.mxu0
        %v1542 = vadd.f32 0.0, %v1541
        %v1543 = vpop.f32.mrf.mxu0
        %1544 = vmatprep.mubr.bf16.mxu0 0
        %1545 = vmatmul.mubr.bf16.gmra.mxu0 %v1427
        %v1546 = vpop.f32.mrf.mxu0
        %v1547 = vadd.f32 0.0, %v1546
        %v1548 = vpop.f32.mrf.mxu0
        %v1549 = vpop.f32.mrf.mxu0
        %v1550 = vadd.f32 0.0, %v1549
        %v1551 = vpop.f32.mrf.mxu0
        %1552 = vmatprep.mubr.bf16.mxu0 0
        %1553 = vmatmul.mubr.bf16.gmra.mxu0 %v1430
        %v1554 = vpop.f32.mrf.mxu0
        %v1555 = vadd.f32 0.0, %v1554
        %v1556 = vpop.f32.mrf.mxu0
        %v1557 = vpop.f32.mrf.mxu0
        %v1558 = vadd.f32 0.0, %v1557
        %v1559 = vpop.f32.mrf.mxu0
        %1560 = vdwg.mxu0
        %v1585 = vunpack.c.l.b16 %v1267
        %v1586 = vunpack.c.l.b16 %v1268
        %v1587 = vunpack.c.l.b16 %v1269
        %v1588 = vunpack.c.l.b16 %v1270
        %v1589 = vunpack.c.l.b16 %v1271
        %v1590 = vunpack.c.l.b16 %v1272
        %v1591 = vunpack.c.l.b16 %v1273
        %v1592 = vunpack.c.l.b16 %v1274
        %v1593 = vunpack.c.l.b16 %v1275
        %v1594 = vunpack.c.l.b16 %v1276
        %v1595 = vunpack.c.l.b16 %v1277
        %v1596 = vunpack.c.l.b16 %v1278
        %v1597 = vunpack.c.l.b16 %v1279
        %v1598 = vunpack.c.l.b16 %v1280
        %v1599 = vunpack.c.l.b16 %v1281
        %v1600 = vunpack.c.l.b16 %v1282
        %v1601 = vunpack.c.l.b16 %v1283
        %v1602 = vunpack.c.l.b16 %v1284
        %v1603 = vunpack.c.l.b16 %v1285
        %v1604 = vunpack.c.l.b16 %v1286
        %v1605 = vunpack.c.l.b16 %v1287
        %v1606 = vunpack.c.l.b16 %v1288
        %v1607 = vunpack.c.l.b16 %v1289
        %v1608 = vunpack.c.l.b16 %v1290
        %v1609 = vpack.c.b16 %v1586, %v1585
        %v1610 = vpack.c.b16 %v1588, %v1587
        %v1611 = vpack.c.b16 %v1590, %v1589
        %v1612 = vpack.c.b16 %v1592, %v1591
        %v1613 = vpack.c.b16 %v1594, %v1593
        %v1614 = vpack.c.b16 %v1596, %v1595
        %v1615 = vpack.c.b16 %v1598, %v1597
        %v1616 = vpack.c.b16 %v1600, %v1599
        %v1617 = vpack.c.b16 %v1602, %v1601
        %v1618 = vpack.c.b16 %v1604, %v1603
        %v1619 = vpack.c.b16 %v1606, %v1605
        %v1620 = vpack.c.b16 %v1608, %v1607
        %v1625 = vunpack.c.l.b16 %v1291
        %v1626 = vunpack.c.l.b16 %v1292
        %v1627 = vunpack.c.l.b16 %v1293
        %v1628 = vunpack.c.l.b16 %v1294
        %v1629 = vpack.c.b16 %v1626, %v1625
        %v1630 = vpack.c.b16 %v1628, %v1627
        %v1634 = vsel %vm1395, %v1609, 0
        %v1637 = vsel %vm1395, %v1610, 0
        %v1640 = vsel %vm1395, %v1611, 0
        %v1643 = vsel %vm1395, %v1612, 0
        %v1646 = vsel %vm1395, %v1613, 0
        %v1649 = vsel %vm1395, %v1614, 0
        %v1652 = vsel %vm1395, %v1615, 0
        %v1655 = vsel %vm1395, %v1616, 0
        %v1658 = vsel %vm1395, %v1617, 0
        %v1661 = vsel %vm1395, %v1618, 0
        %v1664 = vsel %vm1395, %v1619, 0
        %v1667 = vsel %vm1395, %v1620, 0
        %1669 = vmatprep.subr.bf16.mxu0 0
        %1670 = vmatpush1.bf16.msra.mxu0 0
        %1671 = vmatprep.subr.bf16.mxu0 0
        %1672 = vmatpush1.bf16.msra.mxu0 0
        %1673 = vmatprep.subr.bf16.mxu0 0
        %1674 = vmatpush1.bf16.msra.mxu0 0
        %1675 = vmatprep.subr.bf16.mxu0 0
        %1676 = vmatpush1.bf16.msra.mxu0 0
        %1677 = vmatprep.subr.bf16.mxu0 0
        %1678 = vmatpush1.bf16.msra.mxu0 0
        %1679 = vmatprep.subr.bf16.mxu0 0
        %1680 = vmatpush1.bf16.msra.mxu0 0
        %1681 = vmatprep.subr.bf16.mxu0 0
        %1682 = vmatpush1.bf16.msra.mxu0 %v1630
        %1683 = vmatprep.subr.bf16.mxu0 0
        %1684 = vmatpush1.bf16.msra.mxu0 %v1629
        %1685 = vmatprep.subr.bf16.mxu0 0
        %1686 = vmatpush2.bf16.msra.mxu0 0
        %1687 = vmatprep.subr.bf16.mxu0 0
        %1688 = vmatpush2.bf16.msra.mxu0 0
        %1689 = vmatprep.subr.bf16.mxu0 0
        %1690 = vmatpush2.bf16.msra.mxu0 0
        %1691 = vmatprep.subr.bf16.mxu0 0
        %1692 = vmatpush2.bf16.msra.mxu0 0
        %1693 = vmatprep.subr.bf16.mxu0 0
        %1694 = vmatpush2.bf16.msra.mxu0 0
        %1695 = vmatprep.subr.bf16.mxu0 0
        %1696 = vmatpush2.bf16.msra.mxu0 0
        %1697 = vmatprep.subr.bf16.mxu0 0
        %1698 = vmatpush2.bf16.msra.mxu0 0
        %1699 = vmatprep.subr.bf16.mxu0 0
        %1700 = vmatpush2.bf16.msra.mxu0 0
        %1701 = vmatprep.mubr.bf16.mxu0 0
        %1702 = vmatmul.mubr.bf16.gmra.mxu0 %v1634
        %v1703 = vpop.f32.mrf.mxu0
        %v1704 = vadd.f32 %v1467, %v1703
        %v1705 = vpop.f32.mrf.mxu0
        %v1706 = vpop.f32.mrf.mxu0
        %v1707 = vadd.f32 %v1470, %v1706
        %v1708 = vpop.f32.mrf.mxu0
        %1709 = vmatprep.mubr.bf16.mxu0 0
        %1710 = vmatmul.mubr.bf16.gmra.mxu0 %v1637
        %v1711 = vpop.f32.mrf.mxu0
        %v1712 = vadd.f32 %v1475, %v1711
        %v1713 = vpop.f32.mrf.mxu0
        %v1714 = vpop.f32.mrf.mxu0
        %v1715 = vadd.f32 %v1478, %v1714
        %v1716 = vpop.f32.mrf.mxu0
        %1717 = vmatprep.mubr.bf16.mxu0 0
        %1718 = vmatmul.mubr.bf16.gmra.mxu0 %v1640
        %v1719 = vpop.f32.mrf.mxu0
        %v1720 = vadd.f32 %v1483, %v1719
        %v1721 = vpop.f32.mrf.mxu0
        %v1722 = vpop.f32.mrf.mxu0
        %v1723 = vadd.f32 %v1486, %v1722
        %v1724 = vpop.f32.mrf.mxu0
        %1725 = vmatprep.mubr.bf16.mxu0 0
        %1726 = vmatmul.mubr.bf16.gmra.mxu0 %v1643
        %v1727 = vpop.f32.mrf.mxu0
        %v1728 = vadd.f32 %v1491, %v1727
        %v1729 = vpop.f32.mrf.mxu0
        %v1730 = vpop.f32.mrf.mxu0
        %v1731 = vadd.f32 %v1494, %v1730
        %v1732 = vpop.f32.mrf.mxu0
        %1733 = vmatprep.mubr.bf16.mxu0 0
        %1734 = vmatmul.mubr.bf16.gmra.mxu0 %v1646
        %v1735 = vpop.f32.mrf.mxu0
        %v1736 = vadd.f32 %v1499, %v1735
        %v1737 = vpop.f32.mrf.mxu0
        %v1738 = vpop.f32.mrf.mxu0
        %v1739 = vadd.f32 %v1502, %v1738
        %v1740 = vpop.f32.mrf.mxu0
        %1741 = vmatprep.mubr.bf16.mxu0 0
        %1742 = vmatmul.mubr.bf16.gmra.mxu0 %v1649
        %v1743 = vpop.f32.mrf.mxu0
        %v1744 = vadd.f32 %v1507, %v1743
        %v1745 = vpop.f32.mrf.mxu0
        %v1746 = vpop.f32.mrf.mxu0
        %v1747 = vadd.f32 %v1510, %v1746
        %v1748 = vpop.f32.mrf.mxu0
        %1749 = vmatprep.mubr.bf16.mxu0 0
        %1750 = vmatmul.mubr.bf16.gmra.mxu0 %v1652
        %v1751 = vpop.f32.mrf.mxu0
        %v1752 = vadd.f32 %v1515, %v1751
        %v1753 = vpop.f32.mrf.mxu0
        %v1754 = vpop.f32.mrf.mxu0
        %v1755 = vadd.f32 %v1518, %v1754
        %v1756 = vpop.f32.mrf.mxu0
        %1757 = vmatprep.mubr.bf16.mxu0 0
        %1758 = vmatmul.mubr.bf16.gmra.mxu0 %v1655
        %v1759 = vpop.f32.mrf.mxu0
        %v1760 = vadd.f32 %v1523, %v1759
        %v1761 = vpop.f32.mrf.mxu0
        %v1762 = vpop.f32.mrf.mxu0
        %v1763 = vadd.f32 %v1526, %v1762
        %v1764 = vpop.f32.mrf.mxu0
        %1765 = vmatprep.mubr.bf16.mxu0 0
        %1766 = vmatmul.mubr.bf16.gmra.mxu0 %v1658
        %v1767 = vpop.f32.mrf.mxu0
        %v1768 = vadd.f32 %v1531, %v1767
        %v1769 = vpop.f32.mrf.mxu0
        %v1770 = vpop.f32.mrf.mxu0
        %v1771 = vadd.f32 %v1534, %v1770
        %v1772 = vpop.f32.mrf.mxu0
        %1773 = vmatprep.mubr.bf16.mxu0 0
        %1774 = vmatmul.mubr.bf16.gmra.mxu0 %v1661
        %v1775 = vpop.f32.mrf.mxu0
        %v1776 = vadd.f32 %v1539, %v1775
        %v1777 = vpop.f32.mrf.mxu0
        %v1778 = vpop.f32.mrf.mxu0
        %v1779 = vadd.f32 %v1542, %v1778
        %v1780 = vpop.f32.mrf.mxu0
        %1781 = vmatprep.mubr.bf16.mxu0 0
        %1782 = vmatmul.mubr.bf16.gmra.mxu0 %v1664
        %v1783 = vpop.f32.mrf.mxu0
        %v1784 = vadd.f32 %v1547, %v1783
        %v1785 = vpop.f32.mrf.mxu0
        %v1786 = vpop.f32.mrf.mxu0
        %v1787 = vadd.f32 %v1550, %v1786
        %v1788 = vpop.f32.mrf.mxu0
        %1789 = vmatprep.mubr.bf16.mxu0 0
        %1790 = vmatmul.mubr.bf16.gmra.mxu0 %v1667
        %v1791 = vpop.f32.mrf.mxu0
        %v1792 = vadd.f32 %v1555, %v1791
        %v1793 = vpop.f32.mrf.mxu0
        %v1794 = vpop.f32.mrf.mxu0
        %v1795 = vadd.f32 %v1558, %v1794
        %v1796 = vpop.f32.mrf.mxu0
        %1797 = vdwg.mxu0
        %v1798 = vpack.c.bf16 %v1244, %v1243
        %v1799 = vpack.c.bf16 %v1246, %v1245
        %v1800 = vpack.c.bf16 %v1248, %v1247
        %v1801 = vpack.c.bf16 %v1250, %v1249
        %v1802 = vpack.c.bf16 %v1252, %v1251
        %v1803 = vpack.c.bf16 %v1254, %v1253
        %v1804 = vpack.c.bf16 %v1256, %v1255
        %v1805 = vpack.c.bf16 %v1258, %v1257
        %v1806 = vpack.c.bf16 %v1260, %v1259
        %v1807 = vpack.c.bf16 %v1262, %v1261
        %v1808 = vpack.c.bf16 %v1264, %v1263
        %v1809 = vpack.c.bf16 %v1266, %v1265
        %v1810 = vld [vmem:[%s7] sm:$0xf]
        %v1811 = vld [vmem:[%s7 + $0x4] sm:$0xf]
        %v1814 = vunpack.c.l.b16 %v1810
        %v1815 = vunpack.c.l.b16 %v1811
        %v1816 = vpack.c.b16 %v1815, %v1814
        %v1819 = vsel %vm1184, %v1798, 0
        %v1822 = vsel %vm1184, %v1799, 0
        %v1825 = vsel %vm1184, %v1800, 0
        %v1828 = vsel %vm1184, %v1801, 0
        %v1831 = vsel %vm1184, %v1802, 0
        %v1834 = vsel %vm1184, %v1803, 0
        %v1837 = vsel %vm1184, %v1804, 0
        %v1840 = vsel %vm1184, %v1805, 0
        %v1843 = vsel %vm1184, %v1806, 0
        %v1846 = vsel %vm1184, %v1807, 0
        %v1849 = vsel %vm1184, %v1808, 0
        %v1852 = vsel %vm1184, %v1809, 0
        %1854 = vmatprep.subr.bf16.mxu0 0
        %1855 = vmatpush1.bf16.msra.mxu0 0
        %1856 = vmatprep.subr.bf16.mxu0 0
        %1857 = vmatpush1.bf16.msra.mxu0 0
        %1858 = vmatprep.subr.bf16.mxu0 0
        %1859 = vmatpush1.bf16.msra.mxu0 0
        %1860 = vmatprep.subr.bf16.mxu0 0
        %1861 = vmatpush1.bf16.msra.mxu0 0
        %1862 = vmatprep.subr.bf16.mxu0 0
        %1863 = vmatpush1.bf16.msra.mxu0 0
        %1864 = vmatprep.subr.bf16.mxu0 0
        %1865 = vmatpush1.bf16.msra.mxu0 0
        %1866 = vmatprep.subr.bf16.mxu0 0
        %1867 = vmatpush1.bf16.msra.mxu0 0
        %1868 = vmatprep.subr.bf16.mxu0 0
        %1869 = vmatpush1.bf16.msra.mxu0 %v1816
        %1870 = vmatprep.subr.bf16.mxu0 0
        %1871 = vmatpush2.bf16.msra.mxu0 0
        %1872 = vmatprep.subr.bf16.mxu0 0
        %1873 = vmatpush2.bf16.msra.mxu0 0
        %1874 = vmatprep.subr.bf16.mxu0 0
        %1875 = vmatpush2.bf16.msra.mxu0 0
        %1876 = vmatprep.subr.bf16.mxu0 0
        %1877 = vmatpush2.bf16.msra.mxu0 0
        %1878 = vmatprep.subr.bf16.mxu0 0
        %1879 = vmatpush2.bf16.msra.mxu0 0
        %1880 = vmatprep.subr.bf16.mxu0 0
        %1881 = vmatpush2.bf16.msra.mxu0 0
        %1882 = vmatprep.subr.bf16.mxu0 0
        %1883 = vmatpush2.bf16.msra.mxu0 0
        %1884 = vmatprep.subr.bf16.mxu0 0
        %1885 = vmatpush2.bf16.msra.mxu0 0
        %1886 = vmatprep.mubr.bf16.mxu0 0
        %1887 = vmatmul.mubr.bf16.gmra.mxu0 %v1819
        %v1888 = vpop.f32.mrf.mxu0
        %v1889 = vadd.f32 0.0, %v1888
        %v1890 = vpop.f32.mrf.mxu0
        %v1891 = vpop.f32.mrf.mxu0
        %v1892 = vadd.f32 0.0, %v1891
        %v1893 = vpop.f32.mrf.mxu0
        %1894 = vmatprep.mubr.bf16.mxu0 0
        %1895 = vmatmul.mubr.bf16.gmra.mxu0 %v1822
        %v1896 = vpop.f32.mrf.mxu0
        %v1897 = vadd.f32 0.0, %v1896
        %v1898 = vpop.f32.mrf.mxu0
        %v1899 = vpop.f32.mrf.mxu0
        %v1900 = vadd.f32 0.0, %v1899
        %v1901 = vpop.f32.mrf.mxu0
        %1902 = vmatprep.mubr.bf16.mxu0 0
        %1903 = vmatmul.mubr.bf16.gmra.mxu0 %v1825
        %v1904 = vpop.f32.mrf.mxu0
        %v1905 = vadd.f32 0.0, %v1904
        %v1906 = vpop.f32.mrf.mxu0
        %v1907 = vpop.f32.mrf.mxu0
        %v1908 = vadd.f32 0.0, %v1907
        %v1909 = vpop.f32.mrf.mxu0
        %1910 = vmatprep.mubr.bf16.mxu0 0
        %1911 = vmatmul.mubr.bf16.gmra.mxu0 %v1828
        %v1912 = vpop.f32.mrf.mxu0
        %v1913 = vadd.f32 0.0, %v1912
        %v1914 = vpop.f32.mrf.mxu0
        %v1915 = vpop.f32.mrf.mxu0
        %v1916 = vadd.f32 0.0, %v1915
        %v1917 = vpop.f32.mrf.mxu0
        %1918 = vmatprep.mubr.bf16.mxu0 0
        %1919 = vmatmul.mubr.bf16.gmra.mxu0 %v1831
        %v1920 = vpop.f32.mrf.mxu0
        %v1921 = vadd.f32 0.0, %v1920
        %v1922 = vpop.f32.mrf.mxu0
        %v1923 = vpop.f32.mrf.mxu0
        %v1924 = vadd.f32 0.0, %v1923
        %v1925 = vpop.f32.mrf.mxu0
        %1926 = vmatprep.mubr.bf16.mxu0 0
        %1927 = vmatmul.mubr.bf16.gmra.mxu0 %v1834
        %v1928 = vpop.f32.mrf.mxu0
        %v1929 = vadd.f32 0.0, %v1928
        %v1930 = vpop.f32.mrf.mxu0
        %v1931 = vpop.f32.mrf.mxu0
        %v1932 = vadd.f32 0.0, %v1931
        %v1933 = vpop.f32.mrf.mxu0
        %1934 = vmatprep.mubr.bf16.mxu0 0
        %1935 = vmatmul.mubr.bf16.gmra.mxu0 %v1837
        %v1936 = vpop.f32.mrf.mxu0
        %v1937 = vadd.f32 0.0, %v1936
        %v1938 = vpop.f32.mrf.mxu0
        %v1939 = vpop.f32.mrf.mxu0
        %v1940 = vadd.f32 0.0, %v1939
        %v1941 = vpop.f32.mrf.mxu0
        %1942 = vmatprep.mubr.bf16.mxu0 0
        %1943 = vmatmul.mubr.bf16.gmra.mxu0 %v1840
        %v1944 = vpop.f32.mrf.mxu0
        %v1945 = vadd.f32 0.0, %v1944
        %v1946 = vpop.f32.mrf.mxu0
        %v1947 = vpop.f32.mrf.mxu0
        %v1948 = vadd.f32 0.0, %v1947
        %v1949 = vpop.f32.mrf.mxu0
        %1950 = vmatprep.mubr.bf16.mxu0 0
        %1951 = vmatmul.mubr.bf16.gmra.mxu0 %v1843
        %v1952 = vpop.f32.mrf.mxu0
        %v1953 = vadd.f32 0.0, %v1952
        %v1954 = vpop.f32.mrf.mxu0
        %v1955 = vpop.f32.mrf.mxu0
        %v1956 = vadd.f32 0.0, %v1955
        %v1957 = vpop.f32.mrf.mxu0
        %1958 = vmatprep.mubr.bf16.mxu0 0
        %1959 = vmatmul.mubr.bf16.gmra.mxu0 %v1846
        %v1960 = vpop.f32.mrf.mxu0
        %v1961 = vadd.f32 0.0, %v1960
        %v1962 = vpop.f32.mrf.mxu0
        %v1963 = vpop.f32.mrf.mxu0
        %v1964 = vadd.f32 0.0, %v1963
        %v1965 = vpop.f32.mrf.mxu0
        %1966 = vmatprep.mubr.bf16.mxu0 0
        %1967 = vmatmul.mubr.bf16.gmra.mxu0 %v1849
        %v1968 = vpop.f32.mrf.mxu0
        %v1969 = vadd.f32 0.0, %v1968
        %v1970 = vpop.f32.mrf.mxu0
        %v1971 = vpop.f32.mrf.mxu0
        %v1972 = vadd.f32 0.0, %v1971
        %v1973 = vpop.f32.mrf.mxu0
        %1974 = vmatprep.mubr.bf16.mxu0 0
        %1975 = vmatmul.mubr.bf16.gmra.mxu0 %v1852
        %v1976 = vpop.f32.mrf.mxu0
        %v1977 = vadd.f32 0.0, %v1976
        %v1978 = vpop.f32.mrf.mxu0
        %v1979 = vpop.f32.mrf.mxu0
        %v1980 = vadd.f32 0.0, %v1979
        %v1981 = vpop.f32.mrf.mxu0
        %1982 = vdwg.mxu0
        %v1983 = vadd.f32 %v1704, %v1889
        %v1984 = vadd.f32 %v1707, %v1892
        %v1985 = vadd.f32 %v1712, %v1897
        %v1986 = vadd.f32 %v1715, %v1900
        %v1987 = vadd.f32 %v1720, %v1905
        %v1988 = vadd.f32 %v1723, %v1908
        %v1989 = vadd.f32 %v1728, %v1913
        %v1990 = vadd.f32 %v1731, %v1916
        %v1991 = vadd.f32 %v1736, %v1921
        %v1992 = vadd.f32 %v1739, %v1924
        %v1993 = vadd.f32 %v1744, %v1929
        %v1994 = vadd.f32 %v1747, %v1932
        %v1995 = vadd.f32 %v1752, %v1937
        %v1996 = vadd.f32 %v1755, %v1940
        %v1997 = vadd.f32 %v1760, %v1945
        %v1998 = vadd.f32 %v1763, %v1948
        %v1999 = vadd.f32 %v1768, %v1953
        %v2000 = vadd.f32 %v1771, %v1956
        %v2001 = vadd.f32 %v1776, %v1961
        %v2002 = vadd.f32 %v1779, %v1964
        %v2003 = vadd.f32 %v1784, %v1969
        %v2004 = vadd.f32 %v1787, %v1972
        %v2005 = vadd.f32 %v1792, %v1977
        %v2006 = vadd.f32 %v1795, %v1980
        %v2007 = vld [vmem:[%s8] sm:$0x1]
        %v2009 = vlaneseq
        %v2010 = vshrl.u32 %v2009, 7
        %v2011 = vsub.s32 0, %v2010
        %v2012 = vrot.slane %v2007, %v2011
        %v2014 = vadd.f32 %v1983, %v2012
        %v2015 = vadd.f32 %v1984, %v2012
        %v2016 = vadd.f32 %v1985, %v2012
        %v2017 = vadd.f32 %v1986, %v2012
        %v2018 = vadd.f32 %v1987, %v2012
        %v2019 = vadd.f32 %v1988, %v2012
        %v2020 = vadd.f32 %v1989, %v2012
        %v2021 = vadd.f32 %v1990, %v2012
        %v2022 = vadd.f32 %v1991, %v2012
        %v2023 = vadd.f32 %v1992, %v2012
        %v2024 = vadd.f32 %v1993, %v2012
        %v2025 = vadd.f32 %v1994, %v2012
        %v2026 = vadd.f32 %v1995, %v2012
        %v2027 = vadd.f32 %v1996, %v2012
        %v2028 = vadd.f32 %v1997, %v2012
        %v2029 = vadd.f32 %v1998, %v2012
        %v2030 = vadd.f32 %v1999, %v2012
        %v2031 = vadd.f32 %v2000, %v2012
        %v2032 = vadd.f32 %v2001, %v2012
        %v2033 = vadd.f32 %v2002, %v2012
        %v2034 = vadd.f32 %v2003, %v2012
        %v2035 = vadd.f32 %v2004, %v2012
        %v2036 = vadd.f32 %v2005, %v2012
        %v2037 = vadd.f32 %v2006, %v2012
        %2038 = vmax.xlane.f32.xlu0 %v2014
        %v2039 = vpop.xlane.xlu0 %2038
        %2040 = vmax.xlane.f32.xlu0 %v2015
        %v2041 = vpop.xlane.xlu0 %2040
        %2042 = vmax.xlane.f32.xlu0 %v2016
        %v2043 = vpop.xlane.xlu0 %2042
        %2044 = vmax.xlane.f32.xlu0 %v2017
        %v2045 = vpop.xlane.xlu0 %2044
        %2046 = vmax.xlane.f32.xlu0 %v2018
        %v2047 = vpop.xlane.xlu0 %2046
        %2048 = vmax.xlane.f32.xlu0 %v2019
        %v2049 = vpop.xlane.xlu0 %2048
        %2050 = vmax.xlane.f32.xlu0 %v2020
        %v2051 = vpop.xlane.xlu0 %2050
        %2052 = vmax.xlane.f32.xlu0 %v2021
        %v2053 = vpop.xlane.xlu0 %2052
        %2054 = vmax.xlane.f32.xlu0 %v2022
        %v2055 = vpop.xlane.xlu0 %2054
        %2056 = vmax.xlane.f32.xlu0 %v2023
        %v2057 = vpop.xlane.xlu0 %2056
        %2058 = vmax.xlane.f32.xlu0 %v2024
        %v2059 = vpop.xlane.xlu0 %2058
        %2060 = vmax.xlane.f32.xlu0 %v2025
        %v2061 = vpop.xlane.xlu0 %2060
        %2062 = vmax.xlane.f32.xlu0 %v2026
        %v2063 = vpop.xlane.xlu0 %2062
        %2064 = vmax.xlane.f32.xlu0 %v2027
        %v2065 = vpop.xlane.xlu0 %2064
        %2066 = vmax.xlane.f32.xlu0 %v2028
        %v2067 = vpop.xlane.xlu0 %2066
        %2068 = vmax.xlane.f32.xlu0 %v2029
        %v2069 = vpop.xlane.xlu0 %2068
        %2070 = vmax.xlane.f32.xlu0 %v2030
        %v2071 = vpop.xlane.xlu0 %2070
        %2072 = vmax.xlane.f32.xlu0 %v2031
        %v2073 = vpop.xlane.xlu0 %2072
        %2074 = vmax.xlane.f32.xlu0 %v2032
        %v2075 = vpop.xlane.xlu0 %2074
        %2076 = vmax.xlane.f32.xlu0 %v2033
        %v2077 = vpop.xlane.xlu0 %2076
        %2078 = vmax.xlane.f32.xlu0 %v2034
        %v2079 = vpop.xlane.xlu0 %2078
        %2080 = vmax.xlane.f32.xlu0 %v2035
        %v2081 = vpop.xlane.xlu0 %2080
        %2082 = vmax.xlane.f32.xlu0 %v2036
        %v2083 = vpop.xlane.xlu0 %2082
        %2084 = vmax.xlane.f32.xlu0 %v2037
        %v2085 = vpop.xlane.xlu0 %2084
        %v2086 = vsub.f32 %v2014, %v2039
        %v2087 = vsub.f32 %v2015, %v2041
        %v2088 = vsub.f32 %v2016, %v2043
        %v2089 = vsub.f32 %v2017, %v2045
        %v2090 = vsub.f32 %v2018, %v2047
        %v2091 = vsub.f32 %v2019, %v2049
        %v2092 = vsub.f32 %v2020, %v2051
        %v2093 = vsub.f32 %v2021, %v2053
        %v2094 = vsub.f32 %v2022, %v2055
        %v2095 = vsub.f32 %v2023, %v2057
        %v2096 = vsub.f32 %v2024, %v2059
        %v2097 = vsub.f32 %v2025, %v2061
        %v2098 = vsub.f32 %v2026, %v2063
        %v2099 = vsub.f32 %v2027, %v2065
        %v2100 = vsub.f32 %v2028, %v2067
        %v2101 = vsub.f32 %v2029, %v2069
        %v2102 = vsub.f32 %v2030, %v2071
        %v2103 = vsub.f32 %v2031, %v2073
        %v2104 = vsub.f32 %v2032, %v2075
        %v2105 = vsub.f32 %v2033, %v2077
        %v2106 = vsub.f32 %v2034, %v2079
        %v2107 = vsub.f32 %v2035, %v2081
        %v2108 = vsub.f32 %v2036, %v2083
        %v2109 = vsub.f32 %v2037, %v2085
        %v2110 = vmul.f32 %v2086, 1.442695
        %v2111 = vpow.pop %v2110
        %v2112 = vmul.f32 %v2087, 1.442695
        %v2113 = vpow.pop %v2112
        %v2114 = vmul.f32 %v2088, 1.442695
        %v2115 = vpow.pop %v2114
        %v2116 = vmul.f32 %v2089, 1.442695
        %v2117 = vpow.pop %v2116
        %v2118 = vmul.f32 %v2090, 1.442695
        %v2119 = vpow.pop %v2118
        %v2120 = vmul.f32 %v2091, 1.442695
        %v2121 = vpow.pop %v2120
        %v2122 = vmul.f32 %v2092, 1.442695
        %v2123 = vpow.pop %v2122
        %v2124 = vmul.f32 %v2093, 1.442695
        %v2125 = vpow.pop %v2124
        %v2126 = vmul.f32 %v2094, 1.442695
        %v2127 = vpow.pop %v2126
        %v2128 = vmul.f32 %v2095, 1.442695
        %v2129 = vpow.pop %v2128
        %v2130 = vmul.f32 %v2096, 1.442695
        %v2131 = vpow.pop %v2130
        %v2132 = vmul.f32 %v2097, 1.442695
        %v2133 = vpow.pop %v2132
        %v2134 = vmul.f32 %v2098, 1.442695
        %v2135 = vpow.pop %v2134
        %v2136 = vmul.f32 %v2099, 1.442695
        %v2137 = vpow.pop %v2136
        %v2138 = vmul.f32 %v2100, 1.442695
        %v2139 = vpow.pop %v2138
        %v2140 = vmul.f32 %v2101, 1.442695
        %v2141 = vpow.pop %v2140
        %v2142 = vmul.f32 %v2102, 1.442695
        %v2143 = vpow.pop %v2142
        %v2144 = vmul.f32 %v2103, 1.442695
        %v2145 = vpow.pop %v2144
        %v2146 = vmul.f32 %v2104, 1.442695
        %v2147 = vpow.pop %v2146
        %v2148 = vmul.f32 %v2105, 1.442695
        %v2149 = vpow.pop %v2148
        %v2150 = vmul.f32 %v2106, 1.442695
        %v2151 = vpow.pop %v2150
        %v2152 = vmul.f32 %v2107, 1.442695
        %v2153 = vpow.pop %v2152
        %v2154 = vmul.f32 %v2108, 1.442695
        %v2155 = vpow.pop %v2154
        %v2156 = vmul.f32 %v2109, 1.442695
        %v2157 = vpow.pop %v2156
        %2158 = vadd.xlane.f32.xlu0 %v2111
        %v2159 = vpop.xlane.xlu0 %2158
        %2160 = vadd.xlane.f32.xlu0 %v2113
        %v2161 = vpop.xlane.xlu0 %2160
        %2162 = vadd.xlane.f32.xlu0 %v2115
        %v2163 = vpop.xlane.xlu0 %2162
        %2164 = vadd.xlane.f32.xlu0 %v2117
        %v2165 = vpop.xlane.xlu0 %2164
        %2166 = vadd.xlane.f32.xlu0 %v2119
        %v2167 = vpop.xlane.xlu0 %2166
        %2168 = vadd.xlane.f32.xlu0 %v2121
        %v2169 = vpop.xlane.xlu0 %2168
        %2170 = vadd.xlane.f32.xlu0 %v2123
        %v2171 = vpop.xlane.xlu0 %2170
        %2172 = vadd.xlane.f32.xlu0 %v2125
        %v2173 = vpop.xlane.xlu0 %2172
        %2174 = vadd.xlane.f32.xlu0 %v2127
        %v2175 = vpop.xlane.xlu0 %2174
        %2176 = vadd.xlane.f32.xlu0 %v2129
        %v2177 = vpop.xlane.xlu0 %2176
        %2178 = vadd.xlane.f32.xlu0 %v2131
        %v2179 = vpop.xlane.xlu0 %2178
        %2180 = vadd.xlane.f32.xlu0 %v2133
        %v2181 = vpop.xlane.xlu0 %2180
        %2182 = vadd.xlane.f32.xlu0 %v2135
        %v2183 = vpop.xlane.xlu0 %2182
        %2184 = vadd.xlane.f32.xlu0 %v2137
        %v2185 = vpop.xlane.xlu0 %2184
        %2186 = vadd.xlane.f32.xlu0 %v2139
        %v2187 = vpop.xlane.xlu0 %2186
        %2188 = vadd.xlane.f32.xlu0 %v2141
        %v2189 = vpop.xlane.xlu0 %2188
        %2190 = vadd.xlane.f32.xlu0 %v2143
        %v2191 = vpop.xlane.xlu0 %2190
        %2192 = vadd.xlane.f32.xlu0 %v2145
        %v2193 = vpop.xlane.xlu0 %2192
        %2194 = vadd.xlane.f32.xlu0 %v2147
        %v2195 = vpop.xlane.xlu0 %2194
        %2196 = vadd.xlane.f32.xlu0 %v2149
        %v2197 = vpop.xlane.xlu0 %2196
        %2198 = vadd.xlane.f32.xlu0 %v2151
        %v2199 = vpop.xlane.xlu0 %2198
        %2200 = vadd.xlane.f32.xlu0 %v2153
        %v2201 = vpop.xlane.xlu0 %2200
        %2202 = vadd.xlane.f32.xlu0 %v2155
        %v2203 = vpop.xlane.xlu0 %2202
        %2204 = vadd.xlane.f32.xlu0 %v2157
        %v2205 = vpop.xlane.xlu0 %2204
        %v2206 = vlog2.pop %v2159
        %v2207 = vmul.f32 %v2206, 0.6931472
        %v2208 = vlog2.pop %v2161
        %v2209 = vmul.f32 %v2208, 0.6931472
        %v2210 = vlog2.pop %v2163
        %v2211 = vmul.f32 %v2210, 0.6931472
        %v2212 = vlog2.pop %v2165
        %v2213 = vmul.f32 %v2212, 0.6931472
        %v2214 = vlog2.pop %v2167
        %v2215 = vmul.f32 %v2214, 0.6931472
        %v2216 = vlog2.pop %v2169
        %v2217 = vmul.f32 %v2216, 0.6931472
        %v2218 = vlog2.pop %v2171
        %v2219 = vmul.f32 %v2218, 0.6931472
        %v2220 = vlog2.pop %v2173
        %v2221 = vmul.f32 %v2220, 0.6931472
        %v2222 = vlog2.pop %v2175
        %v2223 = vmul.f32 %v2222, 0.6931472
        %v2224 = vlog2.pop %v2177
        %v2225 = vmul.f32 %v2224, 0.6931472
        %v2226 = vlog2.pop %v2179
        %v2227 = vmul.f32 %v2226, 0.6931472
        %v2228 = vlog2.pop %v2181
        %v2229 = vmul.f32 %v2228, 0.6931472
        %v2230 = vlog2.pop %v2183
        %v2231 = vmul.f32 %v2230, 0.6931472
        %v2232 = vlog2.pop %v2185
        %v2233 = vmul.f32 %v2232, 0.6931472
        %v2234 = vlog2.pop %v2187
        %v2235 = vmul.f32 %v2234, 0.6931472
        %v2236 = vlog2.pop %v2189
        %v2237 = vmul.f32 %v2236, 0.6931472
        %v2238 = vlog2.pop %v2191
        %v2239 = vmul.f32 %v2238, 0.6931472
        %v2240 = vlog2.pop %v2193
        %v2241 = vmul.f32 %v2240, 0.6931472
        %v2242 = vlog2.pop %v2195
        %v2243 = vmul.f32 %v2242, 0.6931472
        %v2244 = vlog2.pop %v2197
        %v2245 = vmul.f32 %v2244, 0.6931472
        %v2246 = vlog2.pop %v2199
        %v2247 = vmul.f32 %v2246, 0.6931472
        %v2248 = vlog2.pop %v2201
        %v2249 = vmul.f32 %v2248, 0.6931472
        %v2250 = vlog2.pop %v2203
        %v2251 = vmul.f32 %v2250, 0.6931472
        %v2252 = vlog2.pop %v2205
        %v2253 = vmul.f32 %v2252, 0.6931472
        %v2254 = vadd.f32 %v2039, %v2207
        %v2255 = vadd.f32 %v2041, %v2209
        %v2256 = vadd.f32 %v2043, %v2211
        %v2257 = vadd.f32 %v2045, %v2213
        %v2258 = vadd.f32 %v2047, %v2215
        %v2259 = vadd.f32 %v2049, %v2217
        %v2260 = vadd.f32 %v2051, %v2219
        %v2261 = vadd.f32 %v2053, %v2221
        %v2262 = vadd.f32 %v2055, %v2223
        %v2263 = vadd.f32 %v2057, %v2225
        %v2264 = vadd.f32 %v2059, %v2227
        %v2265 = vadd.f32 %v2061, %v2229
        %v2266 = vadd.f32 %v2063, %v2231
        %v2267 = vadd.f32 %v2065, %v2233
        %v2268 = vadd.f32 %v2067, %v2235
        %v2269 = vadd.f32 %v2069, %v2237
        %v2270 = vadd.f32 %v2071, %v2239
        %v2271 = vadd.f32 %v2073, %v2241
        %v2272 = vadd.f32 %v2075, %v2243
        %v2273 = vadd.f32 %v2077, %v2245
        %v2274 = vadd.f32 %v2079, %v2247
        %v2275 = vadd.f32 %v2081, %v2249
        %v2276 = vadd.f32 %v2083, %v2251
        %v2277 = vadd.f32 %v2085, %v2253
        %v2278 = vsub.f32 %v2014, %v2254
        %v2279 = vsub.f32 %v2015, %v2255
        %v2280 = vsub.f32 %v2016, %v2256
        %v2281 = vsub.f32 %v2017, %v2257
        %v2282 = vsub.f32 %v2018, %v2258
        %v2283 = vsub.f32 %v2019, %v2259
        %v2284 = vsub.f32 %v2020, %v2260
        %v2285 = vsub.f32 %v2021, %v2261
        %v2286 = vsub.f32 %v2022, %v2262
        %v2287 = vsub.f32 %v2023, %v2263
        %v2288 = vsub.f32 %v2024, %v2264
        %v2289 = vsub.f32 %v2025, %v2265
        %v2290 = vsub.f32 %v2026, %v2266
        %v2291 = vsub.f32 %v2027, %v2267
        %v2292 = vsub.f32 %v2028, %v2268
        %v2293 = vsub.f32 %v2029, %v2269
        %v2294 = vsub.f32 %v2030, %v2270
        %v2295 = vsub.f32 %v2031, %v2271
        %v2296 = vsub.f32 %v2032, %v2272
        %v2297 = vsub.f32 %v2033, %v2273
        %v2298 = vsub.f32 %v2034, %v2274
        %v2299 = vsub.f32 %v2035, %v2275
        %v2300 = vsub.f32 %v2036, %v2276
        %v2301 = vsub.f32 %v2037, %v2277
        %2302 = vst [vmem:[%s409] sm:$0xff] %v2278
        %2303 = vst [vmem:[%s409 + $0x8] sm:$0xff] %v2279
        %2304 = vst [vmem:[%s409 + $0x10] sm:$0xff] %v2280
        %2305 = vst [vmem:[%s409 + $0x18] sm:$0xff] %v2281
        %2306 = vst [vmem:[%s409 + $0x20] sm:$0xff] %v2282
        %2307 = vst [vmem:[%s409 + $0x28] sm:$0xff] %v2283
        %2308 = vst [vmem:[%s409 + $0x30] sm:$0xff] %v2284
        %2309 = vst [vmem:[%s409 + $0x38] sm:$0xff] %v2285
        %2310 = vst [vmem:[%s409 + $0x40] sm:$0xff] %v2286
        %2311 = vst [vmem:[%s409 + $0x48] sm:$0xff] %v2287
        %2312 = vst [vmem:[%s409 + $0x50] sm:$0xff] %v2288
        %2313 = vst [vmem:[%s409 + $0x58] sm:$0xff] %v2289
        %2314 = vst [vmem:[%s409 + $0x60] sm:$0xff] %v2290
        %2315 = vst [vmem:[%s409 + $0x68] sm:$0xff] %v2291
        %2316 = vst [vmem:[%s409 + $0x70] sm:$0xff] %v2292
        %2317 = vst [vmem:[%s409 + $0x78] sm:$0xff] %v2293
        %2318 = vst [vmem:[%s409 + $0x80] sm:$0xff] %v2294
        %2319 = vst [vmem:[%s409 + $0x88] sm:$0xff] %v2295
        %2320 = vst [vmem:[%s409 + $0x90] sm:$0xff] %v2296
        %2321 = vst [vmem:[%s409 + $0x98] sm:$0xff] %v2297
        %2322 = vst [vmem:[%s409 + $0xa0] sm:$0xff] %v2298
        %2323 = vst [vmem:[%s409 + $0xa8] sm:$0xff] %v2299
        %2324 = vst [vmem:[%s409 + $0xb0] sm:$0xff] %v2300
        %2325 = vst [vmem:[%s409 + $0xb8] sm:$0xff] %v2301
      $region64: #{gcn_synthetic_forward.5} parent=55 // pred_fallthru
        _
      %s2326 = smul.u32 24, %s24
      %p2327 = scmp.lt.s32.totalorder %s2326, 47
      %s2328 = scalar_select %p2327, %s2326, 47
      %s2329 = smul.addr %s2328, 8
      %s2330 = scalar_lea.vmem %s9, %s2329
      // Predicated region
      $region65: #{gcn_synthetic_forward.5} parent=55 // pred_check
        %p2331 = pneg %p256
      $region66: #{gcn_synthetic_forward.5} parent=55 // pred_check_branch
        %2333 = sbr.rel (%p2331) target = $region68
      $region67: #{gcn_synthetic_forward.5} parent=55 // pred_region
        %s2334 = smul.u32 24, %s24
      $region68: #{gcn_synthetic_forward.5} parent=55 // pred_fallthru
        _
    $region56: #{gcn_synthetic_forward.5} parent=5 // pred_fallthru
      _
    %p2335 = scmp.le.s32.totalorder 2, %s15
    // Predicated region
    $region69: #{gcn_synthetic_forward.5} parent=5 // pred_check
      %p2336 = pneg %p2335
    $region70: #{gcn_synthetic_forward.5} parent=5 // pred_check_branch
      %2338 = sbr.rel (%p2336) target = $region72
    $region71: #{gcn_synthetic_forward.5} parent=5 // pred_region
      %s2339 = ssub.s32 %s15, 2
      // Predicated region
      $region73: #{gcn_synthetic_forward.5} parent=71 // pred_check
        %p2340 = pneg %p262
      $region74: #{gcn_synthetic_forward.5} parent=71 // pred_check_branch
        %2342 = sbr.rel (%p2340) target = $region76
      $region75: #{gcn_synthetic_forward.5} parent=71 // pred_region
        %s2343 = smul.u32 24, %s26
        %p2344 = scmp.lt.s32.totalorder %s2343, 47
        %s2345 = scalar_select %p2344, %s2343, 47
        %s2346 = smul.addr %s2345, 8
        %s2347 = scalar_lea.vmem %s9, %s2346
      $region76: #{gcn_synthetic_forward.5} parent=71 // pred_fallthru
        _
    $region72: #{gcn_synthetic_forward.5} parent=5 // pred_fallthru
      _
  $region6: #{gcn_synthetic_forward.5} parent=0 // loop_footer
    %s19 = sadd.s32 1, %s15
  $region7: #{gcn_synthetic_forward.5} parent=0 // loop_footer_branch
    %14 = sbr.rel target = $region3
  $region8: #{gcn_synthetic_forward.5} parent=0 // loop_exit
    _

</llo_original>
